<compile_context>
chip_gen: v7x
topology: tpu7x:2x2x1
jax: 0.10.0
libtpu: 0.0.40
codegen_flags: <defaults>
</compile_context>

<pallas_src>
import jax
import jax.numpy as jnp
import numpy as np
from jax.experimental import pallas as pl
from jax.experimental.pallas import tpu as pltpu


def lstm_classifier_kernel(
    x_ref,          # (S*B, E)       bf16, time-major flattened: row = t*B + b
    taps2_ref,      # ((S-1)*B, 2E)  bf16, wrapper-built im2col taps, kernel size 2
    taps3_ref,      # ((S-2)*B, 3E)  bf16, wrapper-built im2col taps, kernel size 3
    cw1_ref,        # (1*E, C)       bf16 im2col conv weight, kernel size 1
    cw2_ref,        # (2*E, C)       bf16 im2col conv weight, kernel size 2
    cw3_ref,        # (3*E, C)       bf16 im2col conv weight, kernel size 3
    cb_ref,         # (3, C)         f32  conv biases (stacked)
    wih_t_ref,      # (C, 4H)        bf16 LSTM input weights, pre-transposed
    whh_t_ref,      # (H, 4H)        bf16 LSTM hidden weights, pre-transposed
    b_lstm_ref,     # (1, 4H)        f32  b_ih + b_hh
    h0_ref, c0_ref, # (B, H)         f32  learned initial states (batch-padded)
    lw_t_ref,       # (H, O)         f32  label layer weight, pre-transposed
    lb_ref,         # (1, O)         f32
    out_ref,        # (B, O)         f32 logits
    conv_ref,       # scratch VMEM (L*B, C)  bf16 : concatenated ReLU conv outputs
    gates_ref,      # scratch VMEM (L*B, 4H) bf16 : x-projections + bias, all steps
):
    C = cb_ref.shape[1]
    B, H = h0_ref.shape
    S = x_ref.shape[0] // B
    L = gates_ref.shape[0] // B          # = 3*S - 3

    def conv_branch(taps, w_ref, idx, off, lk):
        # Conv1d(E->C, kernel k, VALID) as one im2col matmul + bias + ReLU; store
        # the lk timesteps of this branch into the shared conv scratch.
        y = jnp.dot(taps, w_ref[...], preferred_element_type=jnp.float32)
        y = jnp.maximum(y + cb_ref[idx:idx + 1, :], 0.0)          # (lk*B, C) f32
        conv_ref[off * B:(off + lk) * B, :] = y.astype(conv_ref.dtype)

    # offsets reproduce torch.cat(dim=2) + permute(2,0,1): conv1 | conv2 | conv3
    conv_branch(x_ref[...],     cw1_ref, 0, 0,         S)
    conv_branch(taps2_ref[...], cw2_ref, 1, S,         S - 1)
    conv_branch(taps3_ref[...], cw3_ref, 2, 2 * S - 1, S - 2)

    # Fused LSTM input projection for ALL timesteps: one weight push, one big matmul.
    gx = jnp.dot(conv_ref[...], wih_t_ref[...],
                 preferred_element_type=jnp.float32) + b_lstm_ref[...]
    gates_ref[...] = gx.astype(gates_ref.dtype)                   # (L*B, 4H) bf16

    whh_t = whh_t_ref[...]               # (H, 4H) bf16, resident across recurrence

    def step(t, carry):
        h, c = carry                                              # f32 carries
        row = pl.multiple_of(t * B, 16)                           # B is a multiple of 16
        gates = gates_ref[pl.ds(row, B), :].astype(jnp.float32) + jnp.dot(
            h.astype(jnp.bfloat16), whh_t, preferred_element_type=jnp.float32)
        # NOTE: i/f/o/g below are quarter-width (B, H) slices of a 128-lane vreg;
        # only worth widening/masking if a bundle dump shows VALU/slicing binds.
        sig = jax.nn.sigmoid(gates)          # one full 128-lane EUP pass for i/f/o
        g_g = jnp.tanh(gates[:, 2 * H:3 * H])
        i_g = sig[:, 0 * H:1 * H]
        f_g = sig[:, 1 * H:2 * H]
        o_g = sig[:, 3 * H:4 * H]
        c_new = f_g * c + i_g * g_g
        h_new = o_g * jnp.tanh(c_new)
        return h_new, c_new

    unroll = True if L <= 32 else 8      # full unroll only for short sequences
    h, _ = jax.lax.fori_loop(0, L, step, (h0_ref[...], c0_ref[...]), unroll=unroll)

    # TODO(synk): if O grows beyond toy size, pad the head to 128 lanes in the
    # wrapper to avoid the masked partial store (negligible at O=2).
    out_ref[...] = (jnp.dot(h, lw_t_ref[...], preferred_element_type=jnp.float32)
                    + lb_ref[...]).astype(out_ref.dtype)


def lstm_classifier_forward(tokens, params):
    """Glue: embedding gather + layout prep (pad/flatten/im2col/cast), one pallas_call."""
    emb = params["embedding"]                       # (V, E)
    x = jnp.take(emb, tokens, axis=0)               # (B, S, E)
    B, S, E = x.shape
    C = params["conv_w"][0].shape[0]
    H = params["h0"].shape[1]
    O = params["label_w"].shape[0]
    assert S >= 3, "need S >= 3 so all three conv branches produce output"
    assert C == E, "conv_hidden must equal embedding_length (nn.LSTM input size)"
    L = 3 * S - 3

    # pad batch to a multiple of 16 sublanes (bf16 packs 16 rows/vreg -> tile-aligned
    # tap slices and per-step gates slices)
    Bp = max(16, ((B + 15) // 16) * 16)
    pad = Bp - B
    if pad:
        x = jnp.pad(x, ((0, pad), (0, 0), (0, 0)))
    h0 = jnp.pad(params["h0"], ((0, pad), (0, 0))).astype(jnp.float32)
    c0 = jnp.pad(params["c0"], ((0, pad), (0, 0))).astype(jnp.float32)

    # time-major bf16, flattened 2D (row = t*Bp + b); wrapper-side im2col for k=2,3
    x_tm = jnp.transpose(x, (1, 0, 2)).astype(jnp.bfloat16)        # (S, Bp, E)
    x2d = x_tm.reshape(S * Bp, E)
    lk2, lk3 = S - 1, S - 2
    taps2 = jnp.concatenate([x_tm[0:lk2], x_tm[1:lk2 + 1]],
                            axis=-1).reshape(lk2 * Bp, 2 * E)      # (lk2*Bp, 2E)
    taps3 = jnp.concatenate([x_tm[0:lk3], x_tm[1:lk3 + 1], x_tm[2:lk3 + 2]],
                            axis=-1).reshape(lk3 * Bp, 3 * E)      # (lk3*Bp, 3E)

    # conv weights (C, E, k) -> im2col-stacked (k*E, C): row k*E+e <-> tap k, channel e
    cw = [jnp.transpose(w, (2, 1, 0)).reshape(-1, C).astype(jnp.bfloat16)
          for w in params["conv_w"]]
    cb = jnp.stack(params["conv_b"], axis=0).astype(jnp.float32)   # (3, C)

    wih_t = params["w_ih"].T.astype(jnp.bfloat16)                  # (C, 4H)
    whh_t = params["w_hh"].T.astype(jnp.bfloat16)                  # (H, 4H) bf16 (serial path)
    b_lstm = (params["b_ih"] + params["b_hh"]).reshape(1, -1).astype(jnp.float32)
    lw_t = params["label_w"].T.astype(jnp.float32)                 # (H, O)
    lb = params["label_b"].reshape(1, -1).astype(jnp.float32)      # (1, O)

    args = (x2d, taps2, taps3, cw[0], cw[1], cw[2], cb,
            wih_t, whh_t, b_lstm, h0, c0, lw_t, lb)

    # explicit VMEM budget: inputs + output + scratch, with margin, capped at v7x physical
    def _nbytes(a):
        return int(np.prod(a.shape)) * jnp.dtype(a.dtype).itemsize
    scratch_bytes = L * Bp * C * 2 + L * Bp * 4 * H * 2            # bf16 scratches
    need = sum(_nbytes(a) for a in args) + Bp * O * 4 + scratch_bytes
    vmem_limit = int(min(64 << 20, 2 * need + (8 << 20)))

    vspec = pl.BlockSpec(memory_space=pltpu.MemorySpace.VMEM)
    out = pl.pallas_call(
        lstm_classifier_kernel,
        out_shape=jax.ShapeDtypeStruct((Bp, O), jnp.float32),
        in_specs=[vspec] * len(args),
        out_specs=vspec,
        scratch_shapes=[pltpu.VMEM((L * Bp, C), jnp.bfloat16),
                        pltpu.VMEM((L * Bp, 4 * H), jnp.bfloat16)],
        compiler_params=pltpu.CompilerParams(vmem_limit_bytes=vmem_limit),
    )(*args)
    return out[:B]


def reference_forward(tokens, params):
    """Pure-JAX f32 reference mirroring the PyTorch forward (eval mode)."""
    x = jnp.take(params["embedding"], tokens, axis=0)               # (B, S, E)
    conv_in = jnp.transpose(x, (0, 2, 1))                           # (B, E, S)
    outs = []
    for w, b in zip(params["conv_w"], params["conv_b"]):
        y = jax.lax.conv_general_dilated(
            conv_in, w, window_strides=(1,), padding="VALID",
            dimension_numbers=("NCH", "OIH", "NCH"))
        outs.append(jax.nn.relu(y + b[None, :, None]))
    conv_out = jnp.concatenate(outs, axis=2)                        # (B, C, L)
    seq = jnp.transpose(conv_out, (2, 0, 1))                        # (L, B, C)

    w_ih, w_hh = params["w_ih"], params["w_hh"]
    b = params["b_ih"] + params["b_hh"]
    H = params["h0"].shape[1]

    def step(carry, x_t):
        h, c = carry
        gates = x_t @ w_ih.T + h @ w_hh.T + b
        i_g = jax.nn.sigmoid(gates[:, 0 * H:1 * H])
        f_g = jax.nn.sigmoid(gates[:, 1 * H:2 * H])
        g_g = jnp.tanh(gates[:, 2 * H:3 * H])
        o_g = jax.nn.sigmoid(gates[:, 3 * H:4 * H])
        c_new = f_g * c + i_g * g_g
        h_new = o_g * jnp.tanh(c_new)
        return (h_new, c_new), h_new

    (h, _), _ = jax.lax.scan(step, (params["h0"], params["c0"]), seq)
    return h @ params["label_w"].T + params["label_b"]


def make_params(key, B, V, E, H, O, C):
    ks = jax.random.split(key, 16)
    INI = 0.01
    u = lambda k, shape, lo, hi: jax.random.uniform(k, shape, jnp.float32, lo, hi)
    params = {
        "embedding": 0.1 * jax.random.normal(ks[0], (V, E), jnp.float32),
        "conv_w": [u(ks[1 + i], (C, E, i + 1), -0.1, 0.1) for i in range(3)],
        "conv_b": [u(ks[4 + i], (C,), -0.1, 0.1) for i in range(3)],
        "w_ih": u(ks[7], (4 * H, E), -0.1, 0.1),
        "w_hh": u(ks[8], (4 * H, H), -0.1, 0.1),
        "b_ih": u(ks[9], (4 * H,), -0.1, 0.1),
        "b_hh": u(ks[10], (4 * H,), -0.1, 0.1),
        "h0": u(ks[11], (B, H), -INI, INI),
        "c0": u(ks[12], (B, H), -INI, INI),
        "label_w": u(ks[13], (O, H), -0.1, 0.1),
        "label_b": u(ks[14], (O,), -0.1, 0.1),
    }
    return params, ks[15]


if __name__ == "__main__":
    B, S = 2, 8              # batch, sequence length
    V, E, H, O = 50, 32, 32, 2
    C = E                    # conv_hidden == embedding_length (required by the module)

    key = jax.random.PRNGKey(0)
    params, k_tok = make_params(key, B, V, E, H, O, C)
    tokens = jax.random.randint(k_tok, (B, S), 0, V, dtype=jnp.int32)

    out = lstm_classifier_forward(tokens, params)
    out = jax.block_until_ready(out)

    ref = jax.block_until_ready(reference_forward(tokens, params))
    np.testing.assert_allclose(np.asarray(out), np.asarray(ref),
                               atol=2e-2, rtol=2e-2)
    assert out.shape == (B, O)
    print("KERNEL_OK")
</pallas_src>

<mosaic_0001>
module attributes {stable_mosaic.version = 11 : i64} {
  func.func @lstm_classifier_kernel(%arg0: memref<128x32xbf16, #tpu.memory_space<vmem>>, %arg1: memref<112x64xbf16, #tpu.memory_space<vmem>>, %arg2: memref<96x96xbf16, #tpu.memory_space<vmem>>, %arg3: memref<32x32xbf16, #tpu.memory_space<vmem>>, %arg4: memref<64x32xbf16, #tpu.memory_space<vmem>>, %arg5: memref<96x32xbf16, #tpu.memory_space<vmem>>, %arg6: memref<3x32xf32, #tpu.memory_space<vmem>>, %arg7: memref<32x128xbf16, #tpu.memory_space<vmem>>, %arg8: memref<32x128xbf16, #tpu.memory_space<vmem>>, %arg9: memref<1x128xf32, #tpu.memory_space<vmem>>, %arg10: memref<16x32xf32, #tpu.memory_space<vmem>>, %arg11: memref<16x32xf32, #tpu.memory_space<vmem>>, %arg12: memref<32x2xf32, #tpu.memory_space<vmem>>, %arg13: memref<1x2xf32, #tpu.memory_space<vmem>>, %arg14: memref<16x2xf32, #tpu.memory_space<vmem>>, %arg15: memref<336x32xbf16, #tpu.memory_space<vmem>>, %arg16: memref<336x128xbf16, #tpu.memory_space<vmem>>) attributes {dimension_semantics = [], scalar_prefetch = 0 : i64, scratch_operands = 2 : i64, tpu.core_type = #tpu.core_type<tc>} {
    %c0 = arith.constant 0 : index
    %c0_0 = arith.constant 0 : index
    %0 = vector.load %arg0[%c0, %c0_0] : memref<128x32xbf16, #tpu.memory_space<vmem>>, vector<128x32xbf16>
    %c0_1 = arith.constant 0 : index
    %c0_2 = arith.constant 0 : index
    %1 = vector.load %arg3[%c0_1, %c0_2] : memref<32x32xbf16, #tpu.memory_space<vmem>>, vector<32x32xbf16>
    %cst = arith.constant dense<0.000000e+00> : vector<128x32xf32>
    %2 = tpu.matmul %0, %1, %cst {dimension_numbers = #tpu.dot_dimension_numbers<[1], [0], [0], [1], [0, 0, 1, 1], [], []>} : vector<128x32xbf16>, vector<32x32xbf16>, vector<128x32xf32> -> vector<128x32xf32>
    %c0_3 = arith.constant 0 : index
    %c0_4 = arith.constant 0 : index
    %3 = vector.load %arg6[%c0_3, %c0_4] : memref<3x32xf32, #tpu.memory_space<vmem>>, vector<1x32xf32>
    %4 = vector.broadcast %3 : vector<1x32xf32> to vector<128x32xf32>
    %5 = arith.addf %2, %4 : vector<128x32xf32>
    %cst_5 = arith.constant 0.000000e+00 : f32
    %6 = vector.broadcast %cst_5 : f32 to vector<128x32xf32>
    %7 = arith.maximumf %5, %6 : vector<128x32xf32>
    %8 = arith.truncf %7 : vector<128x32xf32> to vector<128x32xbf16>
    %c0_6 = arith.constant 0 : index
    %c0_7 = arith.constant 0 : index
    %9 = vector.load %arg15[%c0_6, %c0_7] : memref<336x32xbf16, #tpu.memory_space<vmem>>, vector<128x32xbf16>
    tpu.vector_store %arg15[%c0_6, %c0_7], %8 {strides = array<i32>} : memref<336x32xbf16, #tpu.memory_space<vmem>>, vector<128x32xbf16>,
    %c0_8 = arith.constant 0 : index
    %c0_9 = arith.constant 0 : index
    %10 = vector.load %arg1[%c0_8, %c0_9] : memref<112x64xbf16, #tpu.memory_space<vmem>>, vector<112x64xbf16>
    %c0_10 = arith.constant 0 : index
    %c0_11 = arith.constant 0 : index
    %11 = vector.load %arg4[%c0_10, %c0_11] : memref<64x32xbf16, #tpu.memory_space<vmem>>, vector<64x32xbf16>
    %cst_12 = arith.constant dense<0.000000e+00> : vector<112x32xf32>
    %12 = tpu.matmul %10, %11, %cst_12 {dimension_numbers = #tpu.dot_dimension_numbers<[1], [0], [0], [1], [0, 0, 1, 1], [], []>} : vector<112x64xbf16>, vector<64x32xbf16>, vector<112x32xf32> -> vector<112x32xf32>
    %c1 = arith.constant 1 : index
    %c0_13 = arith.constant 0 : index
    %13 = vector.load %arg6[%c1, %c0_13] : memref<3x32xf32, #tpu.memory_space<vmem>>, vector<1x32xf32>
    %14 = vector.broadcast %13 : vector<1x32xf32> to vector<112x32xf32>
    %15 = arith.addf %12, %14 : vector<112x32xf32>
    %cst_14 = arith.constant 0.000000e+00 : f32
    %16 = vector.broadcast %cst_14 : f32 to vector<112x32xf32>
    %17 = arith.maximumf %15, %16 : vector<112x32xf32>
    %18 = arith.truncf %17 : vector<112x32xf32> to vector<112x32xbf16>
    %c128 = arith.constant 128 : index
    %c0_15 = arith.constant 0 : index
    %19 = vector.load %arg15[%c128, %c0_15] : memref<336x32xbf16, #tpu.memory_space<vmem>>, vector<112x32xbf16>
    tpu.vector_store %arg15[%c128, %c0_15], %18 {strides = array<i32>} : memref<336x32xbf16, #tpu.memory_space<vmem>>, vector<112x32xbf16>,
    %c0_16 = arith.constant 0 : index
    %c0_17 = arith.constant 0 : index
    %20 = vector.load %arg2[%c0_16, %c0_17] : memref<96x96xbf16, #tpu.memory_space<vmem>>, vector<96x96xbf16>
    %c0_18 = arith.constant 0 : index
    %c0_19 = arith.constant 0 : index
    %21 = vector.load %arg5[%c0_18, %c0_19] : memref<96x32xbf16, #tpu.memory_space<vmem>>, vector<96x32xbf16>
    %cst_20 = arith.constant dense<0.000000e+00> : vector<96x32xf32>
    %22 = tpu.matmul %20, %21, %cst_20 {dimension_numbers = #tpu.dot_dimension_numbers<[1], [0], [0], [1], [0, 0, 1, 1], [], []>} : vector<96x96xbf16>, vector<96x32xbf16>, vector<96x32xf32> -> vector<96x32xf32>
    %c2 = arith.constant 2 : index
    %c0_21 = arith.constant 0 : index
    %23 = vector.load %arg6[%c2, %c0_21] : memref<3x32xf32, #tpu.memory_space<vmem>>, vector<1x32xf32>
    %24 = vector.broadcast %23 : vector<1x32xf32> to vector<96x32xf32>
    %25 = arith.addf %22, %24 : vector<96x32xf32>
    %cst_22 = arith.constant 0.000000e+00 : f32
    %26 = vector.broadcast %cst_22 : f32 to vector<96x32xf32>
    %27 = arith.maximumf %25, %26 : vector<96x32xf32>
    %28 = arith.truncf %27 : vector<96x32xf32> to vector<96x32xbf16>
    %c240 = arith.constant 240 : index
    %c0_23 = arith.constant 0 : index
    %29 = vector.load %arg15[%c240, %c0_23] : memref<336x32xbf16, #tpu.memory_space<vmem>>, vector<96x32xbf16>
    tpu.vector_store %arg15[%c240, %c0_23], %28 {strides = array<i32>} : memref<336x32xbf16, #tpu.memory_space<vmem>>, vector<96x32xbf16>,
    %c0_24 = arith.constant 0 : index
    %c0_25 = arith.constant 0 : index
    %30 = vector.load %arg15[%c0_24, %c0_25] : memref<336x32xbf16, #tpu.memory_space<vmem>>, vector<336x32xbf16>
    %c0_26 = arith.constant 0 : index
    %c0_27 = arith.constant 0 : index
    %31 = vector.load %arg7[%c0_26, %c0_27] : memref<32x128xbf16, #tpu.memory_space<vmem>>, vector<32x128xbf16>
    %cst_28 = arith.constant dense<0.000000e+00> : vector<336x128xf32>
    %32 = tpu.matmul %30, %31, %cst_28 {dimension_numbers = #tpu.dot_dimension_numbers<[1], [0], [0], [1], [0, 0, 1, 1], [], []>} : vector<336x32xbf16>, vector<32x128xbf16>, vector<336x128xf32> -> vector<336x128xf32>
    %c0_29 = arith.constant 0 : index
    %c0_30 = arith.constant 0 : index
    %33 = vector.load %arg9[%c0_29, %c0_30] : memref<1x128xf32, #tpu.memory_space<vmem>>, vector<1x128xf32>
    %34 = vector.broadcast %33 : vector<1x128xf32> to vector<336x128xf32>
    %35 = arith.addf %32, %34 : vector<336x128xf32>
    %36 = arith.truncf %35 : vector<336x128xf32> to vector<336x128xbf16>
    %c0_31 = arith.constant 0 : index
    %c0_32 = arith.constant 0 : index
    %37 = vector.load %arg16[%c0_31, %c0_32] : memref<336x128xbf16, #tpu.memory_space<vmem>>, vector<336x128xbf16>
    tpu.vector_store %arg16[%c0_31, %c0_32], %36 {strides = array<i32>} : memref<336x128xbf16, #tpu.memory_space<vmem>>, vector<336x128xbf16>,
    %c0_33 = arith.constant 0 : index
    %c0_34 = arith.constant 0 : index
    %38 = vector.load %arg8[%c0_33, %c0_34] : memref<32x128xbf16, #tpu.memory_space<vmem>>, vector<32x128xbf16>
    %c0_35 = arith.constant 0 : index
    %c0_36 = arith.constant 0 : index
    %39 = vector.load %arg10[%c0_35, %c0_36] : memref<16x32xf32, #tpu.memory_space<vmem>>, vector<16x32xf32>
    %c0_37 = arith.constant 0 : index
    %c0_38 = arith.constant 0 : index
    %40 = vector.load %arg11[%c0_37, %c0_38] : memref<16x32xf32, #tpu.memory_space<vmem>>, vector<16x32xf32>
    %c0_i32 = arith.constant 0 : i32
    %c16_i32 = arith.constant 16 : i32
    %41 = arith.muli %c0_i32, %c16_i32 : i32
    %42 = tpu.assume_multiple %41, 16 : i32
    %43 = arith.index_cast %42 : i32 to index
    %c0_39 = arith.constant 0 : index
    %44 = vector.load %arg16[%43, %c0_39] : memref<336x128xbf16, #tpu.memory_space<vmem>>, vector<16x128xbf16>
    %45 = arith.extf %44 : vector<16x128xbf16> to vector<16x128xf32>
    %46 = arith.truncf %39 : vector<16x32xf32> to vector<16x32xbf16>
    %cst_40 = arith.constant dense<0.000000e+00> : vector<16x128xf32>
    %47 = tpu.matmul %46, %38, %cst_40 {dimension_numbers = #tpu.dot_dimension_numbers<[1], [0], [0], [1], [0, 0, 1, 1], [], []>} : vector<16x32xbf16>, vector<32x128xbf16>, vector<16x128xf32> -> vector<16x128xf32>
    %48 = arith.addf %45, %47 : vector<16x128xf32>
    %49 = arith.negf %48 : vector<16x128xf32>
    %50 = math.exp %49 : vector<16x128xf32>
    %cst_41 = arith.constant 1.000000e+00 : f32
    %51 = vector.broadcast %cst_41 : f32 to vector<16x128xf32>
    %52 = arith.addf %51, %50 : vector<16x128xf32>
    %53 = arith.divf %51, %52 : vector<16x128xf32>
    %54 = vector.extract_strided_slice %48 {offsets = [0, 64], sizes = [16, 32], strides = [1, 1]} : vector<16x128xf32> to vector<16x32xf32>
    %55 = math.tanh %54 : vector<16x32xf32>
    %56 = vector.extract_strided_slice %53 {offsets = [0, 0], sizes = [16, 32], strides = [1, 1]} : vector<16x128xf32> to vector<16x32xf32>
    %57 = vector.extract_strided_slice %53 {offsets = [0, 32], sizes = [16, 32], strides = [1, 1]} : vector<16x128xf32> to vector<16x32xf32>
    %58 = vector.extract_strided_slice %53 {offsets = [0, 96], sizes = [16, 32], strides = [1, 1]} : vector<16x128xf32> to vector<16x32xf32>
    %59 = arith.mulf %57, %40 : vector<16x32xf32>
    %60 = arith.mulf %56, %55 : vector<16x32xf32>
    %61 = arith.addf %59, %60 : vector<16x32xf32>
    %62 = math.tanh %61 : vector<16x32xf32>
    %63 = arith.mulf %58, %62 : vector<16x32xf32>
    %c1_i32 = arith.constant 1 : i32
    %c16_i32_42 = arith.constant 16 : i32
    %64 = arith.muli %c1_i32, %c16_i32_42 : i32
    %65 = tpu.assume_multiple %64, 16 : i32
    %66 = arith.index_cast %65 : i32 to index
    %c0_43 = arith.constant 0 : index
    %67 = vector.load %arg16[%66, %c0_43] : memref<336x128xbf16, #tpu.memory_space<vmem>>, vector<16x128xbf16>
    %68 = arith.extf %67 : vector<16x128xbf16> to vector<16x128xf32>
    %69 = arith.truncf %63 : vector<16x32xf32> to vector<16x32xbf16>
    %cst_44 = arith.constant dense<0.000000e+00> : vector<16x128xf32>
    %70 = tpu.matmul %69, %38, %cst_44 {dimension_numbers = #tpu.dot_dimension_numbers<[1], [0], [0], [1], [0, 0, 1, 1], [], []>} : vector<16x32xbf16>, vector<32x128xbf16>, vector<16x128xf32> -> vector<16x128xf32>
    %71 = arith.addf %68, %70 : vector<16x128xf32>
    %72 = arith.negf %71 : vector<16x128xf32>
    %73 = math.exp %72 : vector<16x128xf32>
    %cst_45 = arith.constant 1.000000e+00 : f32
    %74 = vector.broadcast %cst_45 : f32 to vector<16x128xf32>
    %75 = arith.addf %74, %73 : vector<16x128xf32>
    %76 = arith.divf %74, %75 : vector<16x128xf32>
    %77 = vector.extract_strided_slice %71 {offsets = [0, 64], sizes = [16, 32], strides = [1, 1]} : vector<16x128xf32> to vector<16x32xf32>
    %78 = math.tanh %77 : vector<16x32xf32>
    %79 = vector.extract_strided_slice %76 {offsets = [0, 0], sizes = [16, 32], strides = [1, 1]} : vector<16x128xf32> to vector<16x32xf32>
    %80 = vector.extract_strided_slice %76 {offsets = [0, 32], sizes = [16, 32], strides = [1, 1]} : vector<16x128xf32> to vector<16x32xf32>
    %81 = vector.extract_strided_slice %76 {offsets = [0, 96], sizes = [16, 32], strides = [1, 1]} : vector<16x128xf32> to vector<16x32xf32>
    %82 = arith.mulf %80, %61 : vector<16x32xf32>
    %83 = arith.mulf %79, %78 : vector<16x32xf32>
    %84 = arith.addf %82, %83 : vector<16x32xf32>
    %85 = math.tanh %84 : vector<16x32xf32>
    %86 = arith.mulf %81, %85 : vector<16x32xf32>
    %c2_i32 = arith.constant 2 : i32
    %c16_i32_46 = arith.constant 16 : i32
    %87 = arith.muli %c2_i32, %c16_i32_46 : i32
    %88 = tpu.assume_multiple %87, 16 : i32
    %89 = arith.index_cast %88 : i32 to index
    %c0_47 = arith.constant 0 : index
    %90 = vector.load %arg16[%89, %c0_47] : memref<336x128xbf16, #tpu.memory_space<vmem>>, vector<16x128xbf16>
    %91 = arith.extf %90 : vector<16x128xbf16> to vector<16x128xf32>
    %92 = arith.truncf %86 : vector<16x32xf32> to vector<16x32xbf16>
    %cst_48 = arith.constant dense<0.000000e+00> : vector<16x128xf32>
    %93 = tpu.matmul %92, %38, %cst_48 {dimension_numbers = #tpu.dot_dimension_numbers<[1], [0], [0], [1], [0, 0, 1, 1], [], []>} : vector<16x32xbf16>, vector<32x128xbf16>, vector<16x128xf32> -> vector<16x128xf32>
    %94 = arith.addf %91, %93 : vector<16x128xf32>
    %95 = arith.negf %94 : vector<16x128xf32>
    %96 = math.exp %95 : vector<16x128xf32>
    %cst_49 = arith.constant 1.000000e+00 : f32
    %97 = vector.broadcast %cst_49 : f32 to vector<16x128xf32>
    %98 = arith.addf %97, %96 : vector<16x128xf32>
    %99 = arith.divf %97, %98 : vector<16x128xf32>
    %100 = vector.extract_strided_slice %94 {offsets = [0, 64], sizes = [16, 32], strides = [1, 1]} : vector<16x128xf32> to vector<16x32xf32>
    %101 = math.tanh %100 : vector<16x32xf32>
    %102 = vector.extract_strided_slice %99 {offsets = [0, 0], sizes = [16, 32], strides = [1, 1]} : vector<16x128xf32> to vector<16x32xf32>
    %103 = vector.extract_strided_slice %99 {offsets = [0, 32], sizes = [16, 32], strides = [1, 1]} : vector<16x128xf32> to vector<16x32xf32>
    %104 = vector.extract_strided_slice %99 {offsets = [0, 96], sizes = [16, 32], strides = [1, 1]} : vector<16x128xf32> to vector<16x32xf32>
    %105 = arith.mulf %103, %84 : vector<16x32xf32>
    %106 = arith.mulf %102, %101 : vector<16x32xf32>
    %107 = arith.addf %105, %106 : vector<16x32xf32>
    %108 = math.tanh %107 : vector<16x32xf32>
    %109 = arith.mulf %104, %108 : vector<16x32xf32>
    %c3_i32 = arith.constant 3 : i32
    %c16_i32_50 = arith.constant 16 : i32
    %110 = arith.muli %c3_i32, %c16_i32_50 : i32
    %111 = tpu.assume_multiple %110, 16 : i32
    %112 = arith.index_cast %111 : i32 to index
    %c0_51 = arith.constant 0 : index
    %113 = vector.load %arg16[%112, %c0_51] : memref<336x128xbf16, #tpu.memory_space<vmem>>, vector<16x128xbf16>
    %114 = arith.extf %113 : vector<16x128xbf16> to vector<16x128xf32>
    %115 = arith.truncf %109 : vector<16x32xf32> to vector<16x32xbf16>
    %cst_52 = arith.constant dense<0.000000e+00> : vector<16x128xf32>
    %116 = tpu.matmul %115, %38, %cst_52 {dimension_numbers = #tpu.dot_dimension_numbers<[1], [0], [0], [1], [0, 0, 1, 1], [], []>} : vector<16x32xbf16>, vector<32x128xbf16>, vector<16x128xf32> -> vector<16x128xf32>
    %117 = arith.addf %114, %116 : vector<16x128xf32>
    %118 = arith.negf %117 : vector<16x128xf32>
    %119 = math.exp %118 : vector<16x128xf32>
    %cst_53 = arith.constant 1.000000e+00 : f32
    %120 = vector.broadcast %cst_53 : f32 to vector<16x128xf32>
    %121 = arith.addf %120, %119 : vector<16x128xf32>
    %122 = arith.divf %120, %121 : vector<16x128xf32>
    %123 = vector.extract_strided_slice %117 {offsets = [0, 64], sizes = [16, 32], strides = [1, 1]} : vector<16x128xf32> to vector<16x32xf32>
    %124 = math.tanh %123 : vector<16x32xf32>
    %125 = vector.extract_strided_slice %122 {offsets = [0, 0], sizes = [16, 32], strides = [1, 1]} : vector<16x128xf32> to vector<16x32xf32>
    %126 = vector.extract_strided_slice %122 {offsets = [0, 32], sizes = [16, 32], strides = [1, 1]} : vector<16x128xf32> to vector<16x32xf32>
    %127 = vector.extract_strided_slice %122 {offsets = [0, 96], sizes = [16, 32], strides = [1, 1]} : vector<16x128xf32> to vector<16x32xf32>
    %128 = arith.mulf %126, %107 : vector<16x32xf32>
    %129 = arith.mulf %125, %124 : vector<16x32xf32>
    %130 = arith.addf %128, %129 : vector<16x32xf32>
    %131 = math.tanh %130 : vector<16x32xf32>
    %132 = arith.mulf %127, %131 : vector<16x32xf32>
    %c4_i32 = arith.constant 4 : i32
    %c16_i32_54 = arith.constant 16 : i32
    %133 = arith.muli %c4_i32, %c16_i32_54 : i32
    %134 = tpu.assume_multiple %133, 16 : i32
    %135 = arith.index_cast %134 : i32 to index
    %c0_55 = arith.constant 0 : index
    %136 = vector.load %arg16[%135, %c0_55] : memref<336x128xbf16, #tpu.memory_space<vmem>>, vector<16x128xbf16>
    %137 = arith.extf %136 : vector<16x128xbf16> to vector<16x128xf32>
    %138 = arith.truncf %132 : vector<16x32xf32> to vector<16x32xbf16>
    %cst_56 = arith.constant dense<0.000000e+00> : vector<16x128xf32>
    %139 = tpu.matmul %138, %38, %cst_56 {dimension_numbers = #tpu.dot_dimension_numbers<[1], [0], [0], [1], [0, 0, 1, 1], [], []>} : vector<16x32xbf16>, vector<32x128xbf16>, vector<16x128xf32> -> vector<16x128xf32>
    %140 = arith.addf %137, %139 : vector<16x128xf32>
    %141 = arith.negf %140 : vector<16x128xf32>
    %142 = math.exp %141 : vector<16x128xf32>
    %cst_57 = arith.constant 1.000000e+00 : f32
    %143 = vector.broadcast %cst_57 : f32 to vector<16x128xf32>
    %144 = arith.addf %143, %142 : vector<16x128xf32>
    %145 = arith.divf %143, %144 : vector<16x128xf32>
    %146 = vector.extract_strided_slice %140 {offsets = [0, 64], sizes = [16, 32], strides = [1, 1]} : vector<16x128xf32> to vector<16x32xf32>
    %147 = math.tanh %146 : vector<16x32xf32>
    %148 = vector.extract_strided_slice %145 {offsets = [0, 0], sizes = [16, 32], strides = [1, 1]} : vector<16x128xf32> to vector<16x32xf32>
    %149 = vector.extract_strided_slice %145 {offsets = [0, 32], sizes = [16, 32], strides = [1, 1]} : vector<16x128xf32> to vector<16x32xf32>
    %150 = vector.extract_strided_slice %145 {offsets = [0, 96], sizes = [16, 32], strides = [1, 1]} : vector<16x128xf32> to vector<16x32xf32>
    %151 = arith.mulf %149, %130 : vector<16x32xf32>
    %152 = arith.mulf %148, %147 : vector<16x32xf32>
    %153 = arith.addf %151, %152 : vector<16x32xf32>
    %154 = math.tanh %153 : vector<16x32xf32>
    %155 = arith.mulf %150, %154 : vector<16x32xf32>
    %c5_i32 = arith.constant 5 : i32
    %c16_i32_58 = arith.constant 16 : i32
    %156 = arith.muli %c5_i32, %c16_i32_58 : i32
    %157 = tpu.assume_multiple %156, 16 : i32
    %158 = arith.index_cast %157 : i32 to index
    %c0_59 = arith.constant 0 : index
    %159 = vector.load %arg16[%158, %c0_59] : memref<336x128xbf16, #tpu.memory_space<vmem>>, vector<16x128xbf16>
    %160 = arith.extf %159 : vector<16x128xbf16> to vector<16x128xf32>
    %161 = arith.truncf %155 : vector<16x32xf32> to vector<16x32xbf16>
    %cst_60 = arith.constant dense<0.000000e+00> : vector<16x128xf32>
    %162 = tpu.matmul %161, %38, %cst_60 {dimension_numbers = #tpu.dot_dimension_numbers<[1], [0], [0], [1], [0, 0, 1, 1], [], []>} : vector<16x32xbf16>, vector<32x128xbf16>, vector<16x128xf32> -> vector<16x128xf32>
    %163 = arith.addf %160, %162 : vector<16x128xf32>
    %164 = arith.negf %163 : vector<16x128xf32>
    %165 = math.exp %164 : vector<16x128xf32>
    %cst_61 = arith.constant 1.000000e+00 : f32
    %166 = vector.broadcast %cst_61 : f32 to vector<16x128xf32>
    %167 = arith.addf %166, %165 : vector<16x128xf32>
    %168 = arith.divf %166, %167 : vector<16x128xf32>
    %169 = vector.extract_strided_slice %163 {offsets = [0, 64], sizes = [16, 32], strides = [1, 1]} : vector<16x128xf32> to vector<16x32xf32>
    %170 = math.tanh %169 : vector<16x32xf32>
    %171 = vector.extract_strided_slice %168 {offsets = [0, 0], sizes = [16, 32], strides = [1, 1]} : vector<16x128xf32> to vector<16x32xf32>
    %172 = vector.extract_strided_slice %168 {offsets = [0, 32], sizes = [16, 32], strides = [1, 1]} : vector<16x128xf32> to vector<16x32xf32>
    %173 = vector.extract_strided_slice %168 {offsets = [0, 96], sizes = [16, 32], strides = [1, 1]} : vector<16x128xf32> to vector<16x32xf32>
    %174 = arith.mulf %172, %153 : vector<16x32xf32>
    %175 = arith.mulf %171, %170 : vector<16x32xf32>
    %176 = arith.addf %174, %175 : vector<16x32xf32>
    %177 = math.tanh %176 : vector<16x32xf32>
    %178 = arith.mulf %173, %177 : vector<16x32xf32>
    %c6_i32 = arith.constant 6 : i32
    %c16_i32_62 = arith.constant 16 : i32
    %179 = arith.muli %c6_i32, %c16_i32_62 : i32
    %180 = tpu.assume_multiple %179, 16 : i32
    %181 = arith.index_cast %180 : i32 to index
    %c0_63 = arith.constant 0 : index
    %182 = vector.load %arg16[%181, %c0_63] : memref<336x128xbf16, #tpu.memory_space<vmem>>, vector<16x128xbf16>
    %183 = arith.extf %182 : vector<16x128xbf16> to vector<16x128xf32>
    %184 = arith.truncf %178 : vector<16x32xf32> to vector<16x32xbf16>
    %cst_64 = arith.constant dense<0.000000e+00> : vector<16x128xf32>
    %185 = tpu.matmul %184, %38, %cst_64 {dimension_numbers = #tpu.dot_dimension_numbers<[1], [0], [0], [1], [0, 0, 1, 1], [], []>} : vector<16x32xbf16>, vector<32x128xbf16>, vector<16x128xf32> -> vector<16x128xf32>
    %186 = arith.addf %183, %185 : vector<16x128xf32>
    %187 = arith.negf %186 : vector<16x128xf32>
    %188 = math.exp %187 : vector<16x128xf32>
    %cst_65 = arith.constant 1.000000e+00 : f32
    %189 = vector.broadcast %cst_65 : f32 to vector<16x128xf32>
    %190 = arith.addf %189, %188 : vector<16x128xf32>
    %191 = arith.divf %189, %190 : vector<16x128xf32>
    %192 = vector.extract_strided_slice %186 {offsets = [0, 64], sizes = [16, 32], strides = [1, 1]} : vector<16x128xf32> to vector<16x32xf32>
    %193 = math.tanh %192 : vector<16x32xf32>
    %194 = vector.extract_strided_slice %191 {offsets = [0, 0], sizes = [16, 32], strides = [1, 1]} : vector<16x128xf32> to vector<16x32xf32>
    %195 = vector.extract_strided_slice %191 {offsets = [0, 32], sizes = [16, 32], strides = [1, 1]} : vector<16x128xf32> to vector<16x32xf32>
    %196 = vector.extract_strided_slice %191 {offsets = [0, 96], sizes = [16, 32], strides = [1, 1]} : vector<16x128xf32> to vector<16x32xf32>
    %197 = arith.mulf %195, %176 : vector<16x32xf32>
    %198 = arith.mulf %194, %193 : vector<16x32xf32>
    %199 = arith.addf %197, %198 : vector<16x32xf32>
    %200 = math.tanh %199 : vector<16x32xf32>
    %201 = arith.mulf %196, %200 : vector<16x32xf32>
    %c7_i32 = arith.constant 7 : i32
    %c16_i32_66 = arith.constant 16 : i32
    %202 = arith.muli %c7_i32, %c16_i32_66 : i32
    %203 = tpu.assume_multiple %202, 16 : i32
    %204 = arith.index_cast %203 : i32 to index
    %c0_67 = arith.constant 0 : index
    %205 = vector.load %arg16[%204, %c0_67] : memref<336x128xbf16, #tpu.memory_space<vmem>>, vector<16x128xbf16>
    %206 = arith.extf %205 : vector<16x128xbf16> to vector<16x128xf32>
    %207 = arith.truncf %201 : vector<16x32xf32> to vector<16x32xbf16>
    %cst_68 = arith.constant dense<0.000000e+00> : vector<16x128xf32>
    %208 = tpu.matmul %207, %38, %cst_68 {dimension_numbers = #tpu.dot_dimension_numbers<[1], [0], [0], [1], [0, 0, 1, 1], [], []>} : vector<16x32xbf16>, vector<32x128xbf16>, vector<16x128xf32> -> vector<16x128xf32>
    %209 = arith.addf %206, %208 : vector<16x128xf32>
    %210 = arith.negf %209 : vector<16x128xf32>
    %211 = math.exp %210 : vector<16x128xf32>
    %cst_69 = arith.constant 1.000000e+00 : f32
    %212 = vector.broadcast %cst_69 : f32 to vector<16x128xf32>
    %213 = arith.addf %212, %211 : vector<16x128xf32>
    %214 = arith.divf %212, %213 : vector<16x128xf32>
    %215 = vector.extract_strided_slice %209 {offsets = [0, 64], sizes = [16, 32], strides = [1, 1]} : vector<16x128xf32> to vector<16x32xf32>
    %216 = math.tanh %215 : vector<16x32xf32>
    %217 = vector.extract_strided_slice %214 {offsets = [0, 0], sizes = [16, 32], strides = [1, 1]} : vector<16x128xf32> to vector<16x32xf32>
    %218 = vector.extract_strided_slice %214 {offsets = [0, 32], sizes = [16, 32], strides = [1, 1]} : vector<16x128xf32> to vector<16x32xf32>
    %219 = vector.extract_strided_slice %214 {offsets = [0, 96], sizes = [16, 32], strides = [1, 1]} : vector<16x128xf32> to vector<16x32xf32>
    %220 = arith.mulf %218, %199 : vector<16x32xf32>
    %221 = arith.mulf %217, %216 : vector<16x32xf32>
    %222 = arith.addf %220, %221 : vector<16x32xf32>
    %223 = math.tanh %222 : vector<16x32xf32>
    %224 = arith.mulf %219, %223 : vector<16x32xf32>
    %c8_i32 = arith.constant 8 : i32
    %c16_i32_70 = arith.constant 16 : i32
    %225 = arith.muli %c8_i32, %c16_i32_70 : i32
    %226 = tpu.assume_multiple %225, 16 : i32
    %227 = arith.index_cast %226 : i32 to index
    %c0_71 = arith.constant 0 : index
    %228 = vector.load %arg16[%227, %c0_71] : memref<336x128xbf16, #tpu.memory_space<vmem>>, vector<16x128xbf16>
    %229 = arith.extf %228 : vector<16x128xbf16> to vector<16x128xf32>
    %230 = arith.truncf %224 : vector<16x32xf32> to vector<16x32xbf16>
    %cst_72 = arith.constant dense<0.000000e+00> : vector<16x128xf32>
    %231 = tpu.matmul %230, %38, %cst_72 {dimension_numbers = #tpu.dot_dimension_numbers<[1], [0], [0], [1], [0, 0, 1, 1], [], []>} : vector<16x32xbf16>, vector<32x128xbf16>, vector<16x128xf32> -> vector<16x128xf32>
    %232 = arith.addf %229, %231 : vector<16x128xf32>
    %233 = arith.negf %232 : vector<16x128xf32>
    %234 = math.exp %233 : vector<16x128xf32>
    %cst_73 = arith.constant 1.000000e+00 : f32
    %235 = vector.broadcast %cst_73 : f32 to vector<16x128xf32>
    %236 = arith.addf %235, %234 : vector<16x128xf32>
    %237 = arith.divf %235, %236 : vector<16x128xf32>
    %238 = vector.extract_strided_slice %232 {offsets = [0, 64], sizes = [16, 32], strides = [1, 1]} : vector<16x128xf32> to vector<16x32xf32>
    %239 = math.tanh %238 : vector<16x32xf32>
    %240 = vector.extract_strided_slice %237 {offsets = [0, 0], sizes = [16, 32], strides = [1, 1]} : vector<16x128xf32> to vector<16x32xf32>
    %241 = vector.extract_strided_slice %237 {offsets = [0, 32], sizes = [16, 32], strides = [1, 1]} : vector<16x128xf32> to vector<16x32xf32>
    %242 = vector.extract_strided_slice %237 {offsets = [0, 96], sizes = [16, 32], strides = [1, 1]} : vector<16x128xf32> to vector<16x32xf32>
    %243 = arith.mulf %241, %222 : vector<16x32xf32>
    %244 = arith.mulf %240, %239 : vector<16x32xf32>
    %245 = arith.addf %243, %244 : vector<16x32xf32>
    %246 = math.tanh %245 : vector<16x32xf32>
    %247 = arith.mulf %242, %246 : vector<16x32xf32>
    %c9_i32 = arith.constant 9 : i32
    %c16_i32_74 = arith.constant 16 : i32
    %248 = arith.muli %c9_i32, %c16_i32_74 : i32
    %249 = tpu.assume_multiple %248, 16 : i32
    %250 = arith.index_cast %249 : i32 to index
    %c0_75 = arith.constant 0 : index
    %251 = vector.load %arg16[%250, %c0_75] : memref<336x128xbf16, #tpu.memory_space<vmem>>, vector<16x128xbf16>
    %252 = arith.extf %251 : vector<16x128xbf16> to vector<16x128xf32>
    %253 = arith.truncf %247 : vector<16x32xf32> to vector<16x32xbf16>
    %cst_76 = arith.constant dense<0.000000e+00> : vector<16x128xf32>
    %254 = tpu.matmul %253, %38, %cst_76 {dimension_numbers = #tpu.dot_dimension_numbers<[1], [0], [0], [1], [0, 0, 1, 1], [], []>} : vector<16x32xbf16>, vector<32x128xbf16>, vector<16x128xf32> -> vector<16x128xf32>
    %255 = arith.addf %252, %254 : vector<16x128xf32>
    %256 = arith.negf %255 : vector<16x128xf32>
    %257 = math.exp %256 : vector<16x128xf32>
    %cst_77 = arith.constant 1.000000e+00 : f32
    %258 = vector.broadcast %cst_77 : f32 to vector<16x128xf32>
    %259 = arith.addf %258, %257 : vector<16x128xf32>
    %260 = arith.divf %258, %259 : vector<16x128xf32>
    %261 = vector.extract_strided_slice %255 {offsets = [0, 64], sizes = [16, 32], strides = [1, 1]} : vector<16x128xf32> to vector<16x32xf32>
    %262 = math.tanh %261 : vector<16x32xf32>
    %263 = vector.extract_strided_slice %260 {offsets = [0, 0], sizes = [16, 32], strides = [1, 1]} : vector<16x128xf32> to vector<16x32xf32>
    %264 = vector.extract_strided_slice %260 {offsets = [0, 32], sizes = [16, 32], strides = [1, 1]} : vector<16x128xf32> to vector<16x32xf32>
    %265 = vector.extract_strided_slice %260 {offsets = [0, 96], sizes = [16, 32], strides = [1, 1]} : vector<16x128xf32> to vector<16x32xf32>
    %266 = arith.mulf %264, %245 : vector<16x32xf32>
    %267 = arith.mulf %263, %262 : vector<16x32xf32>
    %268 = arith.addf %266, %267 : vector<16x32xf32>
    %269 = math.tanh %268 : vector<16x32xf32>
    %270 = arith.mulf %265, %269 : vector<16x32xf32>
    %c10_i32 = arith.constant 10 : i32
    %c16_i32_78 = arith.constant 16 : i32
    %271 = arith.muli %c10_i32, %c16_i32_78 : i32
    %272 = tpu.assume_multiple %271, 16 : i32
    %273 = arith.index_cast %272 : i32 to index
    %c0_79 = arith.constant 0 : index
    %274 = vector.load %arg16[%273, %c0_79] : memref<336x128xbf16, #tpu.memory_space<vmem>>, vector<16x128xbf16>
    %275 = arith.extf %274 : vector<16x128xbf16> to vector<16x128xf32>
    %276 = arith.truncf %270 : vector<16x32xf32> to vector<16x32xbf16>
    %cst_80 = arith.constant dense<0.000000e+00> : vector<16x128xf32>
    %277 = tpu.matmul %276, %38, %cst_80 {dimension_numbers = #tpu.dot_dimension_numbers<[1], [0], [0], [1], [0, 0, 1, 1], [], []>} : vector<16x32xbf16>, vector<32x128xbf16>, vector<16x128xf32> -> vector<16x128xf32>
    %278 = arith.addf %275, %277 : vector<16x128xf32>
    %279 = arith.negf %278 : vector<16x128xf32>
    %280 = math.exp %279 : vector<16x128xf32>
    %cst_81 = arith.constant 1.000000e+00 : f32
    %281 = vector.broadcast %cst_81 : f32 to vector<16x128xf32>
    %282 = arith.addf %281, %280 : vector<16x128xf32>
    %283 = arith.divf %281, %282 : vector<16x128xf32>
    %284 = vector.extract_strided_slice %278 {offsets = [0, 64], sizes = [16, 32], strides = [1, 1]} : vector<16x128xf32> to vector<16x32xf32>
    %285 = math.tanh %284 : vector<16x32xf32>
    %286 = vector.extract_strided_slice %283 {offsets = [0, 0], sizes = [16, 32], strides = [1, 1]} : vector<16x128xf32> to vector<16x32xf32>
    %287 = vector.extract_strided_slice %283 {offsets = [0, 32], sizes = [16, 32], strides = [1, 1]} : vector<16x128xf32> to vector<16x32xf32>
    %288 = vector.extract_strided_slice %283 {offsets = [0, 96], sizes = [16, 32], strides = [1, 1]} : vector<16x128xf32> to vector<16x32xf32>
    %289 = arith.mulf %287, %268 : vector<16x32xf32>
    %290 = arith.mulf %286, %285 : vector<16x32xf32>
    %291 = arith.addf %289, %290 : vector<16x32xf32>
    %292 = math.tanh %291 : vector<16x32xf32>
    %293 = arith.mulf %288, %292 : vector<16x32xf32>
    %c11_i32 = arith.constant 11 : i32
    %c16_i32_82 = arith.constant 16 : i32
    %294 = arith.muli %c11_i32, %c16_i32_82 : i32
    %295 = tpu.assume_multiple %294, 16 : i32
    %296 = arith.index_cast %295 : i32 to index
    %c0_83 = arith.constant 0 : index
    %297 = vector.load %arg16[%296, %c0_83] : memref<336x128xbf16, #tpu.memory_space<vmem>>, vector<16x128xbf16>
    %298 = arith.extf %297 : vector<16x128xbf16> to vector<16x128xf32>
    %299 = arith.truncf %293 : vector<16x32xf32> to vector<16x32xbf16>
    %cst_84 = arith.constant dense<0.000000e+00> : vector<16x128xf32>
    %300 = tpu.matmul %299, %38, %cst_84 {dimension_numbers = #tpu.dot_dimension_numbers<[1], [0], [0], [1], [0, 0, 1, 1], [], []>} : vector<16x32xbf16>, vector<32x128xbf16>, vector<16x128xf32> -> vector<16x128xf32>
    %301 = arith.addf %298, %300 : vector<16x128xf32>
    %302 = arith.negf %301 : vector<16x128xf32>
    %303 = math.exp %302 : vector<16x128xf32>
    %cst_85 = arith.constant 1.000000e+00 : f32
    %304 = vector.broadcast %cst_85 : f32 to vector<16x128xf32>
    %305 = arith.addf %304, %303 : vector<16x128xf32>
    %306 = arith.divf %304, %305 : vector<16x128xf32>
    %307 = vector.extract_strided_slice %301 {offsets = [0, 64], sizes = [16, 32], strides = [1, 1]} : vector<16x128xf32> to vector<16x32xf32>
    %308 = math.tanh %307 : vector<16x32xf32>
    %309 = vector.extract_strided_slice %306 {offsets = [0, 0], sizes = [16, 32], strides = [1, 1]} : vector<16x128xf32> to vector<16x32xf32>
    %310 = vector.extract_strided_slice %306 {offsets = [0, 32], sizes = [16, 32], strides = [1, 1]} : vector<16x128xf32> to vector<16x32xf32>
    %311 = vector.extract_strided_slice %306 {offsets = [0, 96], sizes = [16, 32], strides = [1, 1]} : vector<16x128xf32> to vector<16x32xf32>
    %312 = arith.mulf %310, %291 : vector<16x32xf32>
    %313 = arith.mulf %309, %308 : vector<16x32xf32>
    %314 = arith.addf %312, %313 : vector<16x32xf32>
    %315 = math.tanh %314 : vector<16x32xf32>
    %316 = arith.mulf %311, %315 : vector<16x32xf32>
    %c12_i32 = arith.constant 12 : i32
    %c16_i32_86 = arith.constant 16 : i32
    %317 = arith.muli %c12_i32, %c16_i32_86 : i32
    %318 = tpu.assume_multiple %317, 16 : i32
    %319 = arith.index_cast %318 : i32 to index
    %c0_87 = arith.constant 0 : index
    %320 = vector.load %arg16[%319, %c0_87] : memref<336x128xbf16, #tpu.memory_space<vmem>>, vector<16x128xbf16>
    %321 = arith.extf %320 : vector<16x128xbf16> to vector<16x128xf32>
    %322 = arith.truncf %316 : vector<16x32xf32> to vector<16x32xbf16>
    %cst_88 = arith.constant dense<0.000000e+00> : vector<16x128xf32>
    %323 = tpu.matmul %322, %38, %cst_88 {dimension_numbers = #tpu.dot_dimension_numbers<[1], [0], [0], [1], [0, 0, 1, 1], [], []>} : vector<16x32xbf16>, vector<32x128xbf16>, vector<16x128xf32> -> vector<16x128xf32>
    %324 = arith.addf %321, %323 : vector<16x128xf32>
    %325 = arith.negf %324 : vector<16x128xf32>
    %326 = math.exp %325 : vector<16x128xf32>
    %cst_89 = arith.constant 1.000000e+00 : f32
    %327 = vector.broadcast %cst_89 : f32 to vector<16x128xf32>
    %328 = arith.addf %327, %326 : vector<16x128xf32>
    %329 = arith.divf %327, %328 : vector<16x128xf32>
    %330 = vector.extract_strided_slice %324 {offsets = [0, 64], sizes = [16, 32], strides = [1, 1]} : vector<16x128xf32> to vector<16x32xf32>
    %331 = math.tanh %330 : vector<16x32xf32>
    %332 = vector.extract_strided_slice %329 {offsets = [0, 0], sizes = [16, 32], strides = [1, 1]} : vector<16x128xf32> to vector<16x32xf32>
    %333 = vector.extract_strided_slice %329 {offsets = [0, 32], sizes = [16, 32], strides = [1, 1]} : vector<16x128xf32> to vector<16x32xf32>
    %334 = vector.extract_strided_slice %329 {offsets = [0, 96], sizes = [16, 32], strides = [1, 1]} : vector<16x128xf32> to vector<16x32xf32>
    %335 = arith.mulf %333, %314 : vector<16x32xf32>
    %336 = arith.mulf %332, %331 : vector<16x32xf32>
    %337 = arith.addf %335, %336 : vector<16x32xf32>
    %338 = math.tanh %337 : vector<16x32xf32>
    %339 = arith.mulf %334, %338 : vector<16x32xf32>
    %c13_i32 = arith.constant 13 : i32
    %c16_i32_90 = arith.constant 16 : i32
    %340 = arith.muli %c13_i32, %c16_i32_90 : i32
    %341 = tpu.assume_multiple %340, 16 : i32
    %342 = arith.index_cast %341 : i32 to index
    %c0_91 = arith.constant 0 : index
    %343 = vector.load %arg16[%342, %c0_91] : memref<336x128xbf16, #tpu.memory_space<vmem>>, vector<16x128xbf16>
    %344 = arith.extf %343 : vector<16x128xbf16> to vector<16x128xf32>
    %345 = arith.truncf %339 : vector<16x32xf32> to vector<16x32xbf16>
    %cst_92 = arith.constant dense<0.000000e+00> : vector<16x128xf32>
    %346 = tpu.matmul %345, %38, %cst_92 {dimension_numbers = #tpu.dot_dimension_numbers<[1], [0], [0], [1], [0, 0, 1, 1], [], []>} : vector<16x32xbf16>, vector<32x128xbf16>, vector<16x128xf32> -> vector<16x128xf32>
    %347 = arith.addf %344, %346 : vector<16x128xf32>
    %348 = arith.negf %347 : vector<16x128xf32>
    %349 = math.exp %348 : vector<16x128xf32>
    %cst_93 = arith.constant 1.000000e+00 : f32
    %350 = vector.broadcast %cst_93 : f32 to vector<16x128xf32>
    %351 = arith.addf %350, %349 : vector<16x128xf32>
    %352 = arith.divf %350, %351 : vector<16x128xf32>
    %353 = vector.extract_strided_slice %347 {offsets = [0, 64], sizes = [16, 32], strides = [1, 1]} : vector<16x128xf32> to vector<16x32xf32>
    %354 = math.tanh %353 : vector<16x32xf32>
    %355 = vector.extract_strided_slice %352 {offsets = [0, 0], sizes = [16, 32], strides = [1, 1]} : vector<16x128xf32> to vector<16x32xf32>
    %356 = vector.extract_strided_slice %352 {offsets = [0, 32], sizes = [16, 32], strides = [1, 1]} : vector<16x128xf32> to vector<16x32xf32>
    %357 = vector.extract_strided_slice %352 {offsets = [0, 96], sizes = [16, 32], strides = [1, 1]} : vector<16x128xf32> to vector<16x32xf32>
    %358 = arith.mulf %356, %337 : vector<16x32xf32>
    %359 = arith.mulf %355, %354 : vector<16x32xf32>
    %360 = arith.addf %358, %359 : vector<16x32xf32>
    %361 = math.tanh %360 : vector<16x32xf32>
    %362 = arith.mulf %357, %361 : vector<16x32xf32>
    %c14_i32 = arith.constant 14 : i32
    %c16_i32_94 = arith.constant 16 : i32
    %363 = arith.muli %c14_i32, %c16_i32_94 : i32
    %364 = tpu.assume_multiple %363, 16 : i32
    %365 = arith.index_cast %364 : i32 to index
    %c0_95 = arith.constant 0 : index
    %366 = vector.load %arg16[%365, %c0_95] : memref<336x128xbf16, #tpu.memory_space<vmem>>, vector<16x128xbf16>
    %367 = arith.extf %366 : vector<16x128xbf16> to vector<16x128xf32>
    %368 = arith.truncf %362 : vector<16x32xf32> to vector<16x32xbf16>
    %cst_96 = arith.constant dense<0.000000e+00> : vector<16x128xf32>
    %369 = tpu.matmul %368, %38, %cst_96 {dimension_numbers = #tpu.dot_dimension_numbers<[1], [0], [0], [1], [0, 0, 1, 1], [], []>} : vector<16x32xbf16>, vector<32x128xbf16>, vector<16x128xf32> -> vector<16x128xf32>
    %370 = arith.addf %367, %369 : vector<16x128xf32>
    %371 = arith.negf %370 : vector<16x128xf32>
    %372 = math.exp %371 : vector<16x128xf32>
    %cst_97 = arith.constant 1.000000e+00 : f32
    %373 = vector.broadcast %cst_97 : f32 to vector<16x128xf32>
    %374 = arith.addf %373, %372 : vector<16x128xf32>
    %375 = arith.divf %373, %374 : vector<16x128xf32>
    %376 = vector.extract_strided_slice %370 {offsets = [0, 64], sizes = [16, 32], strides = [1, 1]} : vector<16x128xf32> to vector<16x32xf32>
    %377 = math.tanh %376 : vector<16x32xf32>
    %378 = vector.extract_strided_slice %375 {offsets = [0, 0], sizes = [16, 32], strides = [1, 1]} : vector<16x128xf32> to vector<16x32xf32>
    %379 = vector.extract_strided_slice %375 {offsets = [0, 32], sizes = [16, 32], strides = [1, 1]} : vector<16x128xf32> to vector<16x32xf32>
    %380 = vector.extract_strided_slice %375 {offsets = [0, 96], sizes = [16, 32], strides = [1, 1]} : vector<16x128xf32> to vector<16x32xf32>
    %381 = arith.mulf %379, %360 : vector<16x32xf32>
    %382 = arith.mulf %378, %377 : vector<16x32xf32>
    %383 = arith.addf %381, %382 : vector<16x32xf32>
    %384 = math.tanh %383 : vector<16x32xf32>
    %385 = arith.mulf %380, %384 : vector<16x32xf32>
    %c15_i32 = arith.constant 15 : i32
    %c16_i32_98 = arith.constant 16 : i32
    %386 = arith.muli %c15_i32, %c16_i32_98 : i32
    %387 = tpu.assume_multiple %386, 16 : i32
    %388 = arith.index_cast %387 : i32 to index
    %c0_99 = arith.constant 0 : index
    %389 = vector.load %arg16[%388, %c0_99] : memref<336x128xbf16, #tpu.memory_space<vmem>>, vector<16x128xbf16>
    %390 = arith.extf %389 : vector<16x128xbf16> to vector<16x128xf32>
    %391 = arith.truncf %385 : vector<16x32xf32> to vector<16x32xbf16>
    %cst_100 = arith.constant dense<0.000000e+00> : vector<16x128xf32>
    %392 = tpu.matmul %391, %38, %cst_100 {dimension_numbers = #tpu.dot_dimension_numbers<[1], [0], [0], [1], [0, 0, 1, 1], [], []>} : vector<16x32xbf16>, vector<32x128xbf16>, vector<16x128xf32> -> vector<16x128xf32>
    %393 = arith.addf %390, %392 : vector<16x128xf32>
    %394 = arith.negf %393 : vector<16x128xf32>
    %395 = math.exp %394 : vector<16x128xf32>
    %cst_101 = arith.constant 1.000000e+00 : f32
    %396 = vector.broadcast %cst_101 : f32 to vector<16x128xf32>
    %397 = arith.addf %396, %395 : vector<16x128xf32>
    %398 = arith.divf %396, %397 : vector<16x128xf32>
    %399 = vector.extract_strided_slice %393 {offsets = [0, 64], sizes = [16, 32], strides = [1, 1]} : vector<16x128xf32> to vector<16x32xf32>
    %400 = math.tanh %399 : vector<16x32xf32>
    %401 = vector.extract_strided_slice %398 {offsets = [0, 0], sizes = [16, 32], strides = [1, 1]} : vector<16x128xf32> to vector<16x32xf32>
    %402 = vector.extract_strided_slice %398 {offsets = [0, 32], sizes = [16, 32], strides = [1, 1]} : vector<16x128xf32> to vector<16x32xf32>
    %403 = vector.extract_strided_slice %398 {offsets = [0, 96], sizes = [16, 32], strides = [1, 1]} : vector<16x128xf32> to vector<16x32xf32>
    %404 = arith.mulf %402, %383 : vector<16x32xf32>
    %405 = arith.mulf %401, %400 : vector<16x32xf32>
    %406 = arith.addf %404, %405 : vector<16x32xf32>
    %407 = math.tanh %406 : vector<16x32xf32>
    %408 = arith.mulf %403, %407 : vector<16x32xf32>
    %c16_i32_102 = arith.constant 16 : i32
    %c16_i32_103 = arith.constant 16 : i32
    %409 = arith.muli %c16_i32_102, %c16_i32_103 : i32
    %410 = tpu.assume_multiple %409, 16 : i32
    %411 = arith.index_cast %410 : i32 to index
    %c0_104 = arith.constant 0 : index
    %412 = vector.load %arg16[%411, %c0_104] : memref<336x128xbf16, #tpu.memory_space<vmem>>, vector<16x128xbf16>
    %413 = arith.extf %412 : vector<16x128xbf16> to vector<16x128xf32>
    %414 = arith.truncf %408 : vector<16x32xf32> to vector<16x32xbf16>
    %cst_105 = arith.constant dense<0.000000e+00> : vector<16x128xf32>
    %415 = tpu.matmul %414, %38, %cst_105 {dimension_numbers = #tpu.dot_dimension_numbers<[1], [0], [0], [1], [0, 0, 1, 1], [], []>} : vector<16x32xbf16>, vector<32x128xbf16>, vector<16x128xf32> -> vector<16x128xf32>
    %416 = arith.addf %413, %415 : vector<16x128xf32>
    %417 = arith.negf %416 : vector<16x128xf32>
    %418 = math.exp %417 : vector<16x128xf32>
    %cst_106 = arith.constant 1.000000e+00 : f32
    %419 = vector.broadcast %cst_106 : f32 to vector<16x128xf32>
    %420 = arith.addf %419, %418 : vector<16x128xf32>
    %421 = arith.divf %419, %420 : vector<16x128xf32>
    %422 = vector.extract_strided_slice %416 {offsets = [0, 64], sizes = [16, 32], strides = [1, 1]} : vector<16x128xf32> to vector<16x32xf32>
    %423 = math.tanh %422 : vector<16x32xf32>
    %424 = vector.extract_strided_slice %421 {offsets = [0, 0], sizes = [16, 32], strides = [1, 1]} : vector<16x128xf32> to vector<16x32xf32>
    %425 = vector.extract_strided_slice %421 {offsets = [0, 32], sizes = [16, 32], strides = [1, 1]} : vector<16x128xf32> to vector<16x32xf32>
    %426 = vector.extract_strided_slice %421 {offsets = [0, 96], sizes = [16, 32], strides = [1, 1]} : vector<16x128xf32> to vector<16x32xf32>
    %427 = arith.mulf %425, %406 : vector<16x32xf32>
    %428 = arith.mulf %424, %423 : vector<16x32xf32>
    %429 = arith.addf %427, %428 : vector<16x32xf32>
    %430 = math.tanh %429 : vector<16x32xf32>
    %431 = arith.mulf %426, %430 : vector<16x32xf32>
    %c17_i32 = arith.constant 17 : i32
    %c16_i32_107 = arith.constant 16 : i32
    %432 = arith.muli %c17_i32, %c16_i32_107 : i32
    %433 = tpu.assume_multiple %432, 16 : i32
    %434 = arith.index_cast %433 : i32 to index
    %c0_108 = arith.constant 0 : index
    %435 = vector.load %arg16[%434, %c0_108] : memref<336x128xbf16, #tpu.memory_space<vmem>>, vector<16x128xbf16>
    %436 = arith.extf %435 : vector<16x128xbf16> to vector<16x128xf32>
    %437 = arith.truncf %431 : vector<16x32xf32> to vector<16x32xbf16>
    %cst_109 = arith.constant dense<0.000000e+00> : vector<16x128xf32>
    %438 = tpu.matmul %437, %38, %cst_109 {dimension_numbers = #tpu.dot_dimension_numbers<[1], [0], [0], [1], [0, 0, 1, 1], [], []>} : vector<16x32xbf16>, vector<32x128xbf16>, vector<16x128xf32> -> vector<16x128xf32>
    %439 = arith.addf %436, %438 : vector<16x128xf32>
    %440 = arith.negf %439 : vector<16x128xf32>
    %441 = math.exp %440 : vector<16x128xf32>
    %cst_110 = arith.constant 1.000000e+00 : f32
    %442 = vector.broadcast %cst_110 : f32 to vector<16x128xf32>
    %443 = arith.addf %442, %441 : vector<16x128xf32>
    %444 = arith.divf %442, %443 : vector<16x128xf32>
    %445 = vector.extract_strided_slice %439 {offsets = [0, 64], sizes = [16, 32], strides = [1, 1]} : vector<16x128xf32> to vector<16x32xf32>
    %446 = math.tanh %445 : vector<16x32xf32>
    %447 = vector.extract_strided_slice %444 {offsets = [0, 0], sizes = [16, 32], strides = [1, 1]} : vector<16x128xf32> to vector<16x32xf32>
    %448 = vector.extract_strided_slice %444 {offsets = [0, 32], sizes = [16, 32], strides = [1, 1]} : vector<16x128xf32> to vector<16x32xf32>
    %449 = vector.extract_strided_slice %444 {offsets = [0, 96], sizes = [16, 32], strides = [1, 1]} : vector<16x128xf32> to vector<16x32xf32>
    %450 = arith.mulf %448, %429 : vector<16x32xf32>
    %451 = arith.mulf %447, %446 : vector<16x32xf32>
    %452 = arith.addf %450, %451 : vector<16x32xf32>
    %453 = math.tanh %452 : vector<16x32xf32>
    %454 = arith.mulf %449, %453 : vector<16x32xf32>
    %c18_i32 = arith.constant 18 : i32
    %c16_i32_111 = arith.constant 16 : i32
    %455 = arith.muli %c18_i32, %c16_i32_111 : i32
    %456 = tpu.assume_multiple %455, 16 : i32
    %457 = arith.index_cast %456 : i32 to index
    %c0_112 = arith.constant 0 : index
    %458 = vector.load %arg16[%457, %c0_112] : memref<336x128xbf16, #tpu.memory_space<vmem>>, vector<16x128xbf16>
    %459 = arith.extf %458 : vector<16x128xbf16> to vector<16x128xf32>
    %460 = arith.truncf %454 : vector<16x32xf32> to vector<16x32xbf16>
    %cst_113 = arith.constant dense<0.000000e+00> : vector<16x128xf32>
    %461 = tpu.matmul %460, %38, %cst_113 {dimension_numbers = #tpu.dot_dimension_numbers<[1], [0], [0], [1], [0, 0, 1, 1], [], []>} : vector<16x32xbf16>, vector<32x128xbf16>, vector<16x128xf32> -> vector<16x128xf32>
    %462 = arith.addf %459, %461 : vector<16x128xf32>
    %463 = arith.negf %462 : vector<16x128xf32>
    %464 = math.exp %463 : vector<16x128xf32>
    %cst_114 = arith.constant 1.000000e+00 : f32
    %465 = vector.broadcast %cst_114 : f32 to vector<16x128xf32>
    %466 = arith.addf %465, %464 : vector<16x128xf32>
    %467 = arith.divf %465, %466 : vector<16x128xf32>
    %468 = vector.extract_strided_slice %462 {offsets = [0, 64], sizes = [16, 32], strides = [1, 1]} : vector<16x128xf32> to vector<16x32xf32>
    %469 = math.tanh %468 : vector<16x32xf32>
    %470 = vector.extract_strided_slice %467 {offsets = [0, 0], sizes = [16, 32], strides = [1, 1]} : vector<16x128xf32> to vector<16x32xf32>
    %471 = vector.extract_strided_slice %467 {offsets = [0, 32], sizes = [16, 32], strides = [1, 1]} : vector<16x128xf32> to vector<16x32xf32>
    %472 = vector.extract_strided_slice %467 {offsets = [0, 96], sizes = [16, 32], strides = [1, 1]} : vector<16x128xf32> to vector<16x32xf32>
    %473 = arith.mulf %471, %452 : vector<16x32xf32>
    %474 = arith.mulf %470, %469 : vector<16x32xf32>
    %475 = arith.addf %473, %474 : vector<16x32xf32>
    %476 = math.tanh %475 : vector<16x32xf32>
    %477 = arith.mulf %472, %476 : vector<16x32xf32>
    %c19_i32 = arith.constant 19 : i32
    %c16_i32_115 = arith.constant 16 : i32
    %478 = arith.muli %c19_i32, %c16_i32_115 : i32
    %479 = tpu.assume_multiple %478, 16 : i32
    %480 = arith.index_cast %479 : i32 to index
    %c0_116 = arith.constant 0 : index
    %481 = vector.load %arg16[%480, %c0_116] : memref<336x128xbf16, #tpu.memory_space<vmem>>, vector<16x128xbf16>
    %482 = arith.extf %481 : vector<16x128xbf16> to vector<16x128xf32>
    %483 = arith.truncf %477 : vector<16x32xf32> to vector<16x32xbf16>
    %cst_117 = arith.constant dense<0.000000e+00> : vector<16x128xf32>
    %484 = tpu.matmul %483, %38, %cst_117 {dimension_numbers = #tpu.dot_dimension_numbers<[1], [0], [0], [1], [0, 0, 1, 1], [], []>} : vector<16x32xbf16>, vector<32x128xbf16>, vector<16x128xf32> -> vector<16x128xf32>
    %485 = arith.addf %482, %484 : vector<16x128xf32>
    %486 = arith.negf %485 : vector<16x128xf32>
    %487 = math.exp %486 : vector<16x128xf32>
    %cst_118 = arith.constant 1.000000e+00 : f32
    %488 = vector.broadcast %cst_118 : f32 to vector<16x128xf32>
    %489 = arith.addf %488, %487 : vector<16x128xf32>
    %490 = arith.divf %488, %489 : vector<16x128xf32>
    %491 = vector.extract_strided_slice %485 {offsets = [0, 64], sizes = [16, 32], strides = [1, 1]} : vector<16x128xf32> to vector<16x32xf32>
    %492 = math.tanh %491 : vector<16x32xf32>
    %493 = vector.extract_strided_slice %490 {offsets = [0, 0], sizes = [16, 32], strides = [1, 1]} : vector<16x128xf32> to vector<16x32xf32>
    %494 = vector.extract_strided_slice %490 {offsets = [0, 32], sizes = [16, 32], strides = [1, 1]} : vector<16x128xf32> to vector<16x32xf32>
    %495 = vector.extract_strided_slice %490 {offsets = [0, 96], sizes = [16, 32], strides = [1, 1]} : vector<16x128xf32> to vector<16x32xf32>
    %496 = arith.mulf %494, %475 : vector<16x32xf32>
    %497 = arith.mulf %493, %492 : vector<16x32xf32>
    %498 = arith.addf %496, %497 : vector<16x32xf32>
    %499 = math.tanh %498 : vector<16x32xf32>
    %500 = arith.mulf %495, %499 : vector<16x32xf32>
    %c20_i32 = arith.constant 20 : i32
    %c16_i32_119 = arith.constant 16 : i32
    %501 = arith.muli %c20_i32, %c16_i32_119 : i32
    %502 = tpu.assume_multiple %501, 16 : i32
    %503 = arith.index_cast %502 : i32 to index
    %c0_120 = arith.constant 0 : index
    %504 = vector.load %arg16[%503, %c0_120] : memref<336x128xbf16, #tpu.memory_space<vmem>>, vector<16x128xbf16>
    %505 = arith.extf %504 : vector<16x128xbf16> to vector<16x128xf32>
    %506 = arith.truncf %500 : vector<16x32xf32> to vector<16x32xbf16>
    %cst_121 = arith.constant dense<0.000000e+00> : vector<16x128xf32>
    %507 = tpu.matmul %506, %38, %cst_121 {dimension_numbers = #tpu.dot_dimension_numbers<[1], [0], [0], [1], [0, 0, 1, 1], [], []>} : vector<16x32xbf16>, vector<32x128xbf16>, vector<16x128xf32> -> vector<16x128xf32>
    %508 = arith.addf %505, %507 : vector<16x128xf32>
    %509 = arith.negf %508 : vector<16x128xf32>
    %510 = math.exp %509 : vector<16x128xf32>
    %cst_122 = arith.constant 1.000000e+00 : f32
    %511 = vector.broadcast %cst_122 : f32 to vector<16x128xf32>
    %512 = arith.addf %511, %510 : vector<16x128xf32>
    %513 = arith.divf %511, %512 : vector<16x128xf32>
    %514 = vector.extract_strided_slice %508 {offsets = [0, 64], sizes = [16, 32], strides = [1, 1]} : vector<16x128xf32> to vector<16x32xf32>
    %515 = math.tanh %514 : vector<16x32xf32>
    %516 = vector.extract_strided_slice %513 {offsets = [0, 0], sizes = [16, 32], strides = [1, 1]} : vector<16x128xf32> to vector<16x32xf32>
    %517 = vector.extract_strided_slice %513 {offsets = [0, 32], sizes = [16, 32], strides = [1, 1]} : vector<16x128xf32> to vector<16x32xf32>
    %518 = vector.extract_strided_slice %513 {offsets = [0, 96], sizes = [16, 32], strides = [1, 1]} : vector<16x128xf32> to vector<16x32xf32>
    %519 = arith.mulf %517, %498 : vector<16x32xf32>
    %520 = arith.mulf %516, %515 : vector<16x32xf32>
    %521 = arith.addf %519, %520 : vector<16x32xf32>
    %522 = math.tanh %521 : vector<16x32xf32>
    %523 = arith.mulf %518, %522 : vector<16x32xf32>
    %c21_i32 = arith.constant 21 : i32
    %c0_123 = arith.constant 0 : index
    %c0_124 = arith.constant 0 : index
    %524 = vector.load %arg12[%c0_123, %c0_124] : memref<32x2xf32, #tpu.memory_space<vmem>>, vector<32x2xf32>
    %cst_125 = arith.constant dense<0.000000e+00> : vector<16x2xf32>
    %525 = tpu.matmul %523, %524, %cst_125 {dimension_numbers = #tpu.dot_dimension_numbers<[1], [0], [0], [1], [0, 0, 1, 1], [], []>} : vector<16x32xf32>, vector<32x2xf32>, vector<16x2xf32> -> vector<16x2xf32>
    %c0_126 = arith.constant 0 : index
    %c0_127 = arith.constant 0 : index
    %526 = vector.load %arg13[%c0_126, %c0_127] : memref<1x2xf32, #tpu.memory_space<vmem>>, vector<1x2xf32>
    %527 = vector.broadcast %526 : vector<1x2xf32> to vector<16x2xf32>
    %528 = arith.addf %525, %527 : vector<16x2xf32>
    %c0_128 = arith.constant 0 : index
    %c0_129 = arith.constant 0 : index
    %529 = vector.load %arg14[%c0_128, %c0_129] : memref<16x2xf32, #tpu.memory_space<vmem>>, vector<16x2xf32>
    tpu.vector_store %arg14[%c0_128, %c0_129], %528 {strides = array<i32>} : memref<16x2xf32, #tpu.memory_space<vmem>>, vector<16x2xf32>,
    return
  }
}

</mosaic_0001>

<llo_original>
// kernel: tpu_custom_call.1
$region0: #{tpu_custom_call.1}
  #allocation0 [shape = 'u32[]', space=smem, size = 0x4, offset = 0x4, fixed_abs, tag = 'smem constant byte address 0x4 - core index']
  #allocation1 [shape = 'u32[144,128]{1,0:T(1,128)}', space=vmem, size = 0x12000, scoped, tag = 'internal scratch']
  #allocation2 [shape = 'bf16[336,32]{1,0:T(16,128)(2,1)}', space=vmem, size = 0x15000, scoped, tag = 'scratch operand']
  #allocation3 [shape = 'bf16[336,128]{1,0:T(16,128)(2,1)}', space=vmem, size = 0x15000, scoped, tag = 'scratch operand']
  %s0 = inlined_call_operand.vmem [shape: bf16[128,32], index: 0, kind: input, shape index: {}]
  %s1 = inlined_call_operand.vmem [shape: bf16[112,64], index: 1, kind: input, shape index: {}]
  %s2 = inlined_call_operand.vmem [shape: bf16[96,96], index: 2, kind: input, shape index: {}]
  %s3 = inlined_call_operand.vmem [shape: bf16[32,32], index: 3, kind: input, shape index: {}]
  %s4 = inlined_call_operand.vmem [shape: bf16[64,32], index: 4, kind: input, shape index: {}]
  %s5 = inlined_call_operand.vmem [shape: bf16[96,32], index: 5, kind: input, shape index: {}]
  %s6 = inlined_call_operand.vmem [shape: f32[3,32], index: 6, kind: input, shape index: {}]
  %s7 = inlined_call_operand.vmem [shape: bf16[32,128], index: 7, kind: input, shape index: {}]
  %s8 = inlined_call_operand.vmem [shape: bf16[32,128], index: 8, kind: input, shape index: {}]
  %s9 = inlined_call_operand.vmem [shape: f32[1,128], index: 9, kind: input, shape index: {}]
  %s10 = inlined_call_operand.vmem [shape: f32[16,32], index: 10, kind: input, shape index: {}]
  %s11 = inlined_call_operand.vmem [shape: f32[16,32], index: 11, kind: input, shape index: {}]
  %s12 = inlined_call_operand.vmem [shape: f32[32,2], index: 12, kind: input, shape index: {}]
  %s13 = inlined_call_operand.vmem [shape: f32[1,2], index: 13, kind: input, shape index: {}]
  %s14 = inlined_call_operand.vmem [shape: f32[16,2], index: 14, kind: output, shape index: {}]
  %s15 = sld [smem:[#allocation0]]
  $region66: #{tpu_custom_call.1} parent=0
    _
  %s17 = ssub.s32 1, %s15
  %s18 = scalar_select 0, %s17, %s15
  // Predicated region
  $region2: #{tpu_custom_call.1} parent=0 // pred_check
    _
  $region3: #{tpu_custom_call.1} parent=0 // pred_check_branch
    %20 = sbr.rel (0) target = $region5
  $region4: #{tpu_custom_call.1} parent=0 // pred_region
    _
  $region5: #{tpu_custom_call.1} parent=0 // pred_fallthru
    _
  // Predicated region
  $region6: #{tpu_custom_call.1} parent=0 // pred_check
    _
  $region7: #{tpu_custom_call.1} parent=0 // pred_check_branch
    %22 = sbr.rel (0) target = $region9
  $region8: #{tpu_custom_call.1} parent=0 // pred_region
    _
  $region9: #{tpu_custom_call.1} parent=0 // pred_fallthru
    _
  // Predicated region
  $region10: #{tpu_custom_call.1} parent=0 // pred_check
    _
  $region11: #{tpu_custom_call.1} parent=0 // pred_check_branch
    %24 = sbr.rel (0) target = $region13
  $region12: #{tpu_custom_call.1} parent=0 // pred_region
    _
  $region13: #{tpu_custom_call.1} parent=0 // pred_fallthru
    _
  // Predicated region
  $region14: #{tpu_custom_call.1} parent=0 // pred_check
    _
  $region15: #{tpu_custom_call.1} parent=0 // pred_check_branch
    %26 = sbr.rel (0) target = $region17
  $region16: #{tpu_custom_call.1} parent=0 // pred_region
    _
  $region17: #{tpu_custom_call.1} parent=0 // pred_fallthru
    _
  // Predicated region
  $region18: #{tpu_custom_call.1} parent=0 // pred_check
    _
  $region19: #{tpu_custom_call.1} parent=0 // pred_check_branch
    %28 = sbr.rel (0) target = $region21
  $region20: #{tpu_custom_call.1} parent=0 // pred_region
    _
  $region21: #{tpu_custom_call.1} parent=0 // pred_fallthru
    _
  // Predicated region
  $region22: #{tpu_custom_call.1} parent=0 // pred_check
    _
  $region23: #{tpu_custom_call.1} parent=0 // pred_check_branch
    %30 = sbr.rel (0) target = $region25
  $region24: #{tpu_custom_call.1} parent=0 // pred_region
    _
  $region25: #{tpu_custom_call.1} parent=0 // pred_fallthru
    _
  // Predicated region
  $region26: #{tpu_custom_call.1} parent=0 // pred_check
    _
  $region27: #{tpu_custom_call.1} parent=0 // pred_check_branch
    %32 = sbr.rel (0) target = $region29
  $region28: #{tpu_custom_call.1} parent=0 // pred_region
    _
  $region29: #{tpu_custom_call.1} parent=0 // pred_fallthru
    _
  // Predicated region
  $region30: #{tpu_custom_call.1} parent=0 // pred_check
    _
  $region31: #{tpu_custom_call.1} parent=0 // pred_check_branch
    %34 = sbr.rel (0) target = $region33
  $region32: #{tpu_custom_call.1} parent=0 // pred_region
    _
  $region33: #{tpu_custom_call.1} parent=0 // pred_fallthru
    _
  // Predicated region
  $region34: #{tpu_custom_call.1} parent=0 // pred_check
    _
  $region35: #{tpu_custom_call.1} parent=0 // pred_check_branch
    %36 = sbr.rel (0) target = $region37
  $region36: #{tpu_custom_call.1} parent=0 // pred_region
    _
  $region37: #{tpu_custom_call.1} parent=0 // pred_fallthru
    _
  // Predicated region
  $region38: #{tpu_custom_call.1} parent=0 // pred_check
    _
  $region39: #{tpu_custom_call.1} parent=0 // pred_check_branch
    %38 = sbr.rel (0) target = $region41
  $region40: #{tpu_custom_call.1} parent=0 // pred_region
    _
  $region41: #{tpu_custom_call.1} parent=0 // pred_fallthru
    _
  // Predicated region
  $region42: #{tpu_custom_call.1} parent=0 // pred_check
    _
  $region43: #{tpu_custom_call.1} parent=0 // pred_check_branch
    %40 = sbr.rel (0) target = $region45
  $region44: #{tpu_custom_call.1} parent=0 // pred_region
    _
  $region45: #{tpu_custom_call.1} parent=0 // pred_fallthru
    _
  // Predicated region
  $region46: #{tpu_custom_call.1} parent=0 // pred_check
    _
  $region47: #{tpu_custom_call.1} parent=0 // pred_check_branch
    %42 = sbr.rel (0) target = $region49
  $region48: #{tpu_custom_call.1} parent=0 // pred_region
    _
  $region49: #{tpu_custom_call.1} parent=0 // pred_fallthru
    _
  // Predicated region
  $region50: #{tpu_custom_call.1} parent=0 // pred_check
    _
  $region51: #{tpu_custom_call.1} parent=0 // pred_check_branch
    %44 = sbr.rel (0) target = $region53
  $region52: #{tpu_custom_call.1} parent=0 // pred_region
    _
  $region53: #{tpu_custom_call.1} parent=0 // pred_fallthru
    _
  // Predicated region
  $region54: #{tpu_custom_call.1} parent=0 // pred_check
    _
  $region55: #{tpu_custom_call.1} parent=0 // pred_check_branch
    %46 = sbr.rel (0) target = $region57
  $region56: #{tpu_custom_call.1} parent=0 // pred_region
    _
  $region57: #{tpu_custom_call.1} parent=0 // pred_fallthru
    _
  %v48 = vld [vmem:[%s0] sm:$0xf]
  %v49 = vld [vmem:[%s0 + $0x4] sm:$0xf]
  %v50 = vld [vmem:[%s0 + $0x8] sm:$0xf]
  %v51 = vld [vmem:[%s0 + $0xc] sm:$0xf]
  %v52 = vld [vmem:[%s0 + $0x10] sm:$0xf]
  %v53 = vld [vmem:[%s0 + $0x14] sm:$0xf]
  %v54 = vld [vmem:[%s0 + $0x18] sm:$0xf]
  %v55 = vld [vmem:[%s0 + $0x1c] sm:$0xf]
  %v56 = vld [vmem:[%s0 + $0x20] sm:$0xf]
  %v57 = vld [vmem:[%s0 + $0x24] sm:$0xf]
  %v58 = vld [vmem:[%s0 + $0x28] sm:$0xf]
  %v59 = vld [vmem:[%s0 + $0x2c] sm:$0xf]
  %v60 = vld [vmem:[%s0 + $0x30] sm:$0xf]
  %v61 = vld [vmem:[%s0 + $0x34] sm:$0xf]
  %v62 = vld [vmem:[%s0 + $0x38] sm:$0xf]
  %v63 = vld [vmem:[%s0 + $0x3c] sm:$0xf]
  %v64 = vld [vmem:[%s3] sm:$0xf]
  %v65 = vld [vmem:[%s3 + $0x4] sm:$0xf]
  %v66 = vld [vmem:[%s3 + $0x8] sm:$0xf]
  %v67 = vld [vmem:[%s3 + $0xc] sm:$0xf]
  %v68 = vld [vmem:[%s6] sm:$0x1]
  %v69 = vlaneseq
  %v70 = vshrl.u32 %v69, 7
  %v71 = vsub.s32 0, %v70
  %v72 = vrot.slane %v68, %v71
  %v89 = vunpack.c.l.b16 %v48
  %v90 = vunpack.c.l.b16 %v49
  %v91 = vunpack.c.l.b16 %v50
  %v92 = vunpack.c.l.b16 %v51
  %v93 = vunpack.c.l.b16 %v52
  %v94 = vunpack.c.l.b16 %v53
  %v95 = vunpack.c.l.b16 %v54
  %v96 = vunpack.c.l.b16 %v55
  %v97 = vunpack.c.l.b16 %v56
  %v98 = vunpack.c.l.b16 %v57
  %v99 = vunpack.c.l.b16 %v58
  %v100 = vunpack.c.l.b16 %v59
  %v101 = vunpack.c.l.b16 %v60
  %v102 = vunpack.c.l.b16 %v61
  %v103 = vunpack.c.l.b16 %v62
  %v104 = vunpack.c.l.b16 %v63
  %v105 = vpack.c.b16 %v90, %v89
  %v106 = vpack.c.b16 %v92, %v91
  %v107 = vpack.c.b16 %v94, %v93
  %v108 = vpack.c.b16 %v96, %v95
  %v109 = vpack.c.b16 %v98, %v97
  %v110 = vpack.c.b16 %v100, %v99
  %v111 = vpack.c.b16 %v102, %v101
  %v112 = vpack.c.b16 %v104, %v103
  %v117 = vunpack.c.l.b16 %v64
  %v118 = vunpack.c.l.b16 %v65
  %v119 = vunpack.c.l.b16 %v66
  %v120 = vunpack.c.l.b16 %v67
  %v121 = vpack.c.b16 %v118, %v117
  %v122 = vpack.c.b16 %v120, %v119
  %vm125 = vcmask 261120
  %v127 = vsel %vm125, %v105, 0
  %v130 = vsel %vm125, %v106, 0
  %v133 = vsel %vm125, %v107, 0
  %v136 = vsel %vm125, %v108, 0
  %v139 = vsel %vm125, %v109, 0
  %v142 = vsel %vm125, %v110, 0
  %v145 = vsel %vm125, %v111, 0
  %v148 = vsel %vm125, %v112, 0
  %150 = vmatprep.subr.bf16.mxu0 0
  %151 = vmatpush1.bf16.msra.mxu0 %v121
  %152 = vmatprep.subr.bf16.mxu0 0
  %153 = vmatpush1.bf16.msra.mxu0 %v122
  %154 = vmatprep.subr.bf16.mxu0 0
  %155 = vmatpush1.bf16.msra.mxu0 0
  %156 = vmatprep.subr.bf16.mxu0 0
  %157 = vmatpush1.bf16.msra.mxu0 0
  %158 = vmatprep.subr.bf16.mxu0 0
  %159 = vmatpush1.bf16.msra.mxu0 0
  %160 = vmatprep.subr.bf16.mxu0 0
  %161 = vmatpush1.bf16.msra.mxu0 0
  %162 = vmatprep.subr.bf16.mxu0 0
  %163 = vmatpush1.bf16.msra.mxu0 0
  %164 = vmatprep.subr.bf16.mxu0 0
  %165 = vmatpush1.bf16.msra.mxu0 0
  %166 = vmatprep.subr.bf16.mxu0 0
  %167 = vmatpush1.bf16.msra.mxu0 0
  %168 = vmatprep.subr.bf16.mxu0 0
  %169 = vmatpush1.bf16.msra.mxu0 0
  %170 = vmatprep.subr.bf16.mxu0 0
  %171 = vmatpush1.bf16.msra.mxu0 0
  %172 = vmatprep.subr.bf16.mxu0 0
  %173 = vmatpush1.bf16.msra.mxu0 0
  %174 = vmatprep.subr.bf16.mxu0 0
  %175 = vmatpush1.bf16.msra.mxu0 0
  %176 = vmatprep.subr.bf16.mxu0 0
  %177 = vmatpush1.bf16.msra.mxu0 0
  %178 = vmatprep.subr.bf16.mxu0 0
  %179 = vmatpush1.bf16.msra.mxu0 0
  %180 = vmatprep.subr.bf16.mxu0 0
  %181 = vmatpush1.bf16.msra.mxu0 0
  %182 = vmatprep.mubr.bf16.mxu0 0
  %183 = vmatmul.mubr.bf16.gmra.mrb[0].mxu0 %v127
  %v184 = vpop.f32.mrb[0].mxu0
  %v185 = vadd.f32 %v72, %v184
  %v186 = vpop.f32.mrb[0].mxu0
  %v187 = vpop.f32.mrb[0].mxu0
  %v188 = vadd.f32 %v72, %v187
  %v189 = vpop.f32.mrb[0].mxu0
  %190 = vmatprep.mubr.bf16.mxu0 0
  %191 = vmatmul.mubr.bf16.gmra.mrb[0].mxu0 %v130
  %v192 = vpop.f32.mrb[0].mxu0
  %v193 = vadd.f32 %v72, %v192
  %v194 = vpop.f32.mrb[0].mxu0
  %v195 = vpop.f32.mrb[0].mxu0
  %v196 = vadd.f32 %v72, %v195
  %v197 = vpop.f32.mrb[0].mxu0
  %198 = vmatprep.mubr.bf16.mxu0 0
  %199 = vmatmul.mubr.bf16.gmra.mrb[0].mxu0 %v133
  %v200 = vpop.f32.mrb[0].mxu0
  %v201 = vadd.f32 %v72, %v200
  %v202 = vpop.f32.mrb[0].mxu0
  %v203 = vpop.f32.mrb[0].mxu0
  %v204 = vadd.f32 %v72, %v203
  %v205 = vpop.f32.mrb[0].mxu0
  %206 = vmatprep.mubr.bf16.mxu0 0
  %207 = vmatmul.mubr.bf16.gmra.mrb[0].mxu0 %v136
  %v208 = vpop.f32.mrb[0].mxu0
  %v209 = vadd.f32 %v72, %v208
  %v210 = vpop.f32.mrb[0].mxu0
  %v211 = vpop.f32.mrb[0].mxu0
  %v212 = vadd.f32 %v72, %v211
  %v213 = vpop.f32.mrb[0].mxu0
  %214 = vmatprep.mubr.bf16.mxu0 0
  %215 = vmatmul.mubr.bf16.gmra.mrb[0].mxu0 %v139
  %v216 = vpop.f32.mrb[0].mxu0
  %v217 = vadd.f32 %v72, %v216
  %v218 = vpop.f32.mrb[0].mxu0
  %v219 = vpop.f32.mrb[0].mxu0
  %v220 = vadd.f32 %v72, %v219
  %v221 = vpop.f32.mrb[0].mxu0
  %222 = vmatprep.mubr.bf16.mxu0 0
  %223 = vmatmul.mubr.bf16.gmra.mrb[0].mxu0 %v142
  %v224 = vpop.f32.mrb[0].mxu0
  %v225 = vadd.f32 %v72, %v224
  %v226 = vpop.f32.mrb[0].mxu0
  %v227 = vpop.f32.mrb[0].mxu0
  %v228 = vadd.f32 %v72, %v227
  %v229 = vpop.f32.mrb[0].mxu0
  %230 = vmatprep.mubr.bf16.mxu0 0
  %231 = vmatmul.mubr.bf16.gmra.mrb[0].mxu0 %v145
  %v232 = vpop.f32.mrb[0].mxu0
  %v233 = vadd.f32 %v72, %v232
  %v234 = vpop.f32.mrb[0].mxu0
  %v235 = vpop.f32.mrb[0].mxu0
  %v236 = vadd.f32 %v72, %v235
  %v237 = vpop.f32.mrb[0].mxu0
  %238 = vmatprep.mubr.bf16.mxu0 0
  %239 = vmatmul.mubr.bf16.gmra.mrb[0].mxu0 %v148
  %v240 = vpop.f32.mrb[0].mxu0
  %v241 = vadd.f32 %v72, %v240
  %v242 = vpop.f32.mrb[0].mxu0
  %v243 = vpop.f32.mrb[0].mxu0
  %v244 = vadd.f32 %v72, %v243
  %v245 = vpop.f32.mrb[0].mxu0
  %246 = vdwg.mxu0
  %v247 = vmax.f32 %v185, 0.0
  %v248 = vmax.f32 %v188, 0.0
  %v249 = vmax.f32 %v193, 0.0
  %v250 = vmax.f32 %v196, 0.0
  %v251 = vmax.f32 %v201, 0.0
  %v252 = vmax.f32 %v204, 0.0
  %v253 = vmax.f32 %v209, 0.0
  %v254 = vmax.f32 %v212, 0.0
  %v255 = vmax.f32 %v217, 0.0
  %v256 = vmax.f32 %v220, 0.0
  %v257 = vmax.f32 %v225, 0.0
  %v258 = vmax.f32 %v228, 0.0
  %v259 = vmax.f32 %v233, 0.0
  %v260 = vmax.f32 %v236, 0.0
  %v261 = vmax.f32 %v241, 0.0
  %v262 = vmax.f32 %v244, 0.0
  %v263 = vpack.c.bf16 %v248, %v247
  %v264 = vpack.c.bf16 %v250, %v249
  %v265 = vpack.c.bf16 %v252, %v251
  %v266 = vpack.c.bf16 %v254, %v253
  %v267 = vpack.c.bf16 %v256, %v255
  %v268 = vpack.c.bf16 %v258, %v257
  %v269 = vpack.c.bf16 %v260, %v259
  %v270 = vpack.c.bf16 %v262, %v261
  %271 = vst.msk [vmem:[#allocation2] sm:$0xff] %vm125, %v263
  %272 = vst.msk [vmem:[#allocation2 + $0x8] sm:$0xff] %vm125, %v264
  %273 = vst.msk [vmem:[#allocation2 + $0x10] sm:$0xff] %vm125, %v265
  %274 = vst.msk [vmem:[#allocation2 + $0x18] sm:$0xff] %vm125, %v266
  %275 = vst.msk [vmem:[#allocation2 + $0x20] sm:$0xff] %vm125, %v267
  %276 = vst.msk [vmem:[#allocation2 + $0x28] sm:$0xff] %vm125, %v268
  %277 = vst.msk [vmem:[#allocation2 + $0x30] sm:$0xff] %vm125, %v269
  %278 = vst.msk [vmem:[#allocation2 + $0x38] sm:$0xff] %vm125, %v270
  %v279 = vld [vmem:[%s1] sm:$0xf]
  %v280 = vld [vmem:[%s1 + $0x4] sm:$0xf]
  %v281 = vld [vmem:[%s1 + $0x8] sm:$0xf]
  %v282 = vld [vmem:[%s1 + $0xc] sm:$0xf]
  %v283 = vld [vmem:[%s1 + $0x10] sm:$0xf]
  %v284 = vld [vmem:[%s1 + $0x14] sm:$0xf]
  %v285 = vld [vmem:[%s1 + $0x18] sm:$0xf]
  %v286 = vld [vmem:[%s1 + $0x1c] sm:$0xf]
  %v287 = vld [vmem:[%s1 + $0x20] sm:$0xf]
  %v288 = vld [vmem:[%s1 + $0x24] sm:$0xf]
  %v289 = vld [vmem:[%s1 + $0x28] sm:$0xf]
  %v290 = vld [vmem:[%s1 + $0x2c] sm:$0xf]
  %v291 = vld [vmem:[%s1 + $0x30] sm:$0xf]
  %v292 = vld [vmem:[%s1 + $0x34] sm:$0xf]
  %v293 = vld [vmem:[%s4] sm:$0xf]
  %v294 = vld [vmem:[%s4 + $0x4] sm:$0xf]
  %v295 = vld [vmem:[%s4 + $0x8] sm:$0xf]
  %v296 = vld [vmem:[%s4 + $0xc] sm:$0xf]
  %v297 = vld [vmem:[%s4 + $0x10] sm:$0xf]
  %v298 = vld [vmem:[%s4 + $0x14] sm:$0xf]
  %v299 = vld [vmem:[%s4 + $0x18] sm:$0xf]
  %v300 = vld [vmem:[%s4 + $0x1c] sm:$0xf]
  %v301 = vld [vmem:[%s6 + $0x1] sm:$0x1]
  %v302 = vlaneseq
  %v303 = vshrl.u32 %v302, 7
  %v304 = vsub.s32 0, %v303
  %v305 = vrot.slane %v301, %v304
  %v320 = vunpack.c.l.b16 %v279
  %v321 = vunpack.c.l.b16 %v280
  %v322 = vunpack.c.l.b16 %v281
  %v323 = vunpack.c.l.b16 %v282
  %v324 = vunpack.c.l.b16 %v283
  %v325 = vunpack.c.l.b16 %v284
  %v326 = vunpack.c.l.b16 %v285
  %v327 = vunpack.c.l.b16 %v286
  %v328 = vunpack.c.l.b16 %v287
  %v329 = vunpack.c.l.b16 %v288
  %v330 = vunpack.c.l.b16 %v289
  %v331 = vunpack.c.l.b16 %v290
  %v332 = vunpack.c.l.b16 %v291
  %v333 = vunpack.c.l.b16 %v292
  %v334 = vpack.c.b16 %v321, %v320
  %v335 = vpack.c.b16 %v323, %v322
  %v336 = vpack.c.b16 %v325, %v324
  %v337 = vpack.c.b16 %v327, %v326
  %v338 = vpack.c.b16 %v329, %v328
  %v339 = vpack.c.b16 %v331, %v330
  %v340 = vpack.c.b16 %v333, %v332
  %v349 = vunpack.c.l.b16 %v293
  %v350 = vunpack.c.l.b16 %v294
  %v351 = vunpack.c.l.b16 %v295
  %v352 = vunpack.c.l.b16 %v296
  %v353 = vunpack.c.l.b16 %v297
  %v354 = vunpack.c.l.b16 %v298
  %v355 = vunpack.c.l.b16 %v299
  %v356 = vunpack.c.l.b16 %v300
  %v357 = vpack.c.b16 %v350, %v349
  %v358 = vpack.c.b16 %v352, %v351
  %v359 = vpack.c.b16 %v354, %v353
  %v360 = vpack.c.b16 %v356, %v355
  %vm365 = vcmask 523264
  %v367 = vsel %vm365, %v334, 0
  %v370 = vsel %vm365, %v335, 0
  %v373 = vsel %vm365, %v336, 0
  %v376 = vsel %vm365, %v337, 0
  %v379 = vsel %vm365, %v338, 0
  %v382 = vsel %vm365, %v339, 0
  %v385 = vsel %vm365, %v340, 0
  %387 = vmatprep.subr.bf16.mxu0 0
  %388 = vmatpush1.bf16.msra.mxu0 %v357
  %389 = vmatprep.subr.bf16.mxu0 0
  %390 = vmatpush1.bf16.msra.mxu0 %v358
  %391 = vmatprep.subr.bf16.mxu0 0
  %392 = vmatpush1.bf16.msra.mxu0 %v359
  %393 = vmatprep.subr.bf16.mxu0 0
  %394 = vmatpush1.bf16.msra.mxu0 %v360
  %395 = vmatprep.subr.bf16.mxu0 0
  %396 = vmatpush1.bf16.msra.mxu0 0
  %397 = vmatprep.subr.bf16.mxu0 0
  %398 = vmatpush1.bf16.msra.mxu0 0
  %399 = vmatprep.subr.bf16.mxu0 0
  %400 = vmatpush1.bf16.msra.mxu0 0
  %401 = vmatprep.subr.bf16.mxu0 0
  %402 = vmatpush1.bf16.msra.mxu0 0
  %403 = vmatprep.subr.bf16.mxu0 0
  %404 = vmatpush1.bf16.msra.mxu0 0
  %405 = vmatprep.subr.bf16.mxu0 0
  %406 = vmatpush1.bf16.msra.mxu0 0
  %407 = vmatprep.subr.bf16.mxu0 0
  %408 = vmatpush1.bf16.msra.mxu0 0
  %409 = vmatprep.subr.bf16.mxu0 0
  %410 = vmatpush1.bf16.msra.mxu0 0
  %411 = vmatprep.subr.bf16.mxu0 0
  %412 = vmatpush1.bf16.msra.mxu0 0
  %413 = vmatprep.subr.bf16.mxu0 0
  %414 = vmatpush1.bf16.msra.mxu0 0
  %415 = vmatprep.subr.bf16.mxu0 0
  %416 = vmatpush1.bf16.msra.mxu0 0
  %417 = vmatprep.subr.bf16.mxu0 0
  %418 = vmatpush1.bf16.msra.mxu0 0
  %419 = vmatprep.mubr.bf16.mxu0 0
  %420 = vmatmul.mubr.bf16.gmra.mrb[0].mxu0 %v367
  %v421 = vpop.f32.mrb[0].mxu0
  %v422 = vadd.f32 %v305, %v421
  %v423 = vpop.f32.mrb[0].mxu0
  %v424 = vpop.f32.mrb[0].mxu0
  %v425 = vadd.f32 %v305, %v424
  %v426 = vpop.f32.mrb[0].mxu0
  %427 = vmatprep.mubr.bf16.mxu0 0
  %428 = vmatmul.mubr.bf16.gmra.mrb[0].mxu0 %v370
  %v429 = vpop.f32.mrb[0].mxu0
  %v430 = vadd.f32 %v305, %v429
  %v431 = vpop.f32.mrb[0].mxu0
  %v432 = vpop.f32.mrb[0].mxu0
  %v433 = vadd.f32 %v305, %v432
  %v434 = vpop.f32.mrb[0].mxu0
  %435 = vmatprep.mubr.bf16.mxu0 0
  %436 = vmatmul.mubr.bf16.gmra.mrb[0].mxu0 %v373
  %v437 = vpop.f32.mrb[0].mxu0
  %v438 = vadd.f32 %v305, %v437
  %v439 = vpop.f32.mrb[0].mxu0
  %v440 = vpop.f32.mrb[0].mxu0
  %v441 = vadd.f32 %v305, %v440
  %v442 = vpop.f32.mrb[0].mxu0
  %443 = vmatprep.mubr.bf16.mxu0 0
  %444 = vmatmul.mubr.bf16.gmra.mrb[0].mxu0 %v376
  %v445 = vpop.f32.mrb[0].mxu0
  %v446 = vadd.f32 %v305, %v445
  %v447 = vpop.f32.mrb[0].mxu0
  %v448 = vpop.f32.mrb[0].mxu0
  %v449 = vadd.f32 %v305, %v448
  %v450 = vpop.f32.mrb[0].mxu0
  %451 = vmatprep.mubr.bf16.mxu0 0
  %452 = vmatmul.mubr.bf16.gmra.mrb[0].mxu0 %v379
  %v453 = vpop.f32.mrb[0].mxu0
  %v454 = vadd.f32 %v305, %v453
  %v455 = vpop.f32.mrb[0].mxu0
  %v456 = vpop.f32.mrb[0].mxu0
  %v457 = vadd.f32 %v305, %v456
  %v458 = vpop.f32.mrb[0].mxu0
  %459 = vmatprep.mubr.bf16.mxu0 0
  %460 = vmatmul.mubr.bf16.gmra.mrb[0].mxu0 %v382
  %v461 = vpop.f32.mrb[0].mxu0
  %v462 = vadd.f32 %v305, %v461
  %v463 = vpop.f32.mrb[0].mxu0
  %v464 = vpop.f32.mrb[0].mxu0
  %v465 = vadd.f32 %v305, %v464
  %v466 = vpop.f32.mrb[0].mxu0
  %467 = vmatprep.mubr.bf16.mxu0 0
  %468 = vmatmul.mubr.bf16.gmra.mrb[0].mxu0 %v385
  %v469 = vpop.f32.mrb[0].mxu0
  %v470 = vadd.f32 %v305, %v469
  %v471 = vpop.f32.mrb[0].mxu0
  %v472 = vpop.f32.mrb[0].mxu0
  %v473 = vadd.f32 %v305, %v472
  %v474 = vpop.f32.mrb[0].mxu0
  %475 = vdwg.mxu0
  %v476 = vmax.f32 %v422, 0.0
  %v477 = vmax.f32 %v425, 0.0
  %v478 = vmax.f32 %v430, 0.0
  %v479 = vmax.f32 %v433, 0.0
  %v480 = vmax.f32 %v438, 0.0
  %v481 = vmax.f32 %v441, 0.0
  %v482 = vmax.f32 %v446, 0.0
  %v483 = vmax.f32 %v449, 0.0
  %v484 = vmax.f32 %v454, 0.0
  %v485 = vmax.f32 %v457, 0.0
  %v486 = vmax.f32 %v462, 0.0
  %v487 = vmax.f32 %v465, 0.0
  %v488 = vmax.f32 %v470, 0.0
  %v489 = vmax.f32 %v473, 0.0
  %v490 = vpack.c.bf16 %v477, %v476
  %v491 = vpack.c.bf16 %v479, %v478
  %v492 = vpack.c.bf16 %v481, %v480
  %v493 = vpack.c.bf16 %v483, %v482
  %v494 = vpack.c.bf16 %v485, %v484
  %v495 = vpack.c.bf16 %v487, %v486
  %v496 = vpack.c.bf16 %v489, %v488
  %497 = vst.msk [vmem:[#allocation2 + $0x40] sm:$0xff] %vm125, %v490
  %498 = vst.msk [vmem:[#allocation2 + $0x48] sm:$0xff] %vm125, %v491
  %499 = vst.msk [vmem:[#allocation2 + $0x50] sm:$0xff] %vm125, %v492
  %500 = vst.msk [vmem:[#allocation2 + $0x58] sm:$0xff] %vm125, %v493
  %501 = vst.msk [vmem:[#allocation2 + $0x60] sm:$0xff] %vm125, %v494
  %502 = vst.msk [vmem:[#allocation2 + $0x68] sm:$0xff] %vm125, %v495
  %503 = vst.msk [vmem:[#allocation2 + $0x70] sm:$0xff] %vm125, %v496
  %v504 = vld [vmem:[%s2] sm:$0xf]
  %v505 = vld [vmem:[%s2 + $0x4] sm:$0xf]
  %v506 = vld [vmem:[%s2 + $0x8] sm:$0xf]
  %v507 = vld [vmem:[%s2 + $0xc] sm:$0xf]
  %v508 = vld [vmem:[%s2 + $0x10] sm:$0xf]
  %v509 = vld [vmem:[%s2 + $0x14] sm:$0xf]
  %v510 = vld [vmem:[%s2 + $0x18] sm:$0xf]
  %v511 = vld [vmem:[%s2 + $0x1c] sm:$0xf]
  %v512 = vld [vmem:[%s2 + $0x20] sm:$0xf]
  %v513 = vld [vmem:[%s2 + $0x24] sm:$0xf]
  %v514 = vld [vmem:[%s2 + $0x28] sm:$0xf]
  %v515 = vld [vmem:[%s2 + $0x2c] sm:$0xf]
  %v516 = vld [vmem:[%s5] sm:$0xf]
  %v517 = vld [vmem:[%s5 + $0x4] sm:$0xf]
  %v518 = vld [vmem:[%s5 + $0x8] sm:$0xf]
  %v519 = vld [vmem:[%s5 + $0xc] sm:$0xf]
  %v520 = vld [vmem:[%s5 + $0x10] sm:$0xf]
  %v521 = vld [vmem:[%s5 + $0x14] sm:$0xf]
  %v522 = vld [vmem:[%s5 + $0x18] sm:$0xf]
  %v523 = vld [vmem:[%s5 + $0x1c] sm:$0xf]
  %v524 = vld [vmem:[%s5 + $0x20] sm:$0xf]
  %v525 = vld [vmem:[%s5 + $0x24] sm:$0xf]
  %v526 = vld [vmem:[%s5 + $0x28] sm:$0xf]
  %v527 = vld [vmem:[%s5 + $0x2c] sm:$0xf]
  %v528 = vld [vmem:[%s6 + $0x2] sm:$0x1]
  %v529 = vlaneseq
  %v530 = vshrl.u32 %v529, 7
  %v531 = vsub.s32 0, %v530
  %v532 = vrot.slane %v528, %v531
  %v545 = vunpack.c.l.b16 %v504
  %v546 = vunpack.c.l.b16 %v505
  %v547 = vunpack.c.l.b16 %v506
  %v548 = vunpack.c.l.b16 %v507
  %v549 = vunpack.c.l.b16 %v508
  %v550 = vunpack.c.l.b16 %v509
  %v551 = vunpack.c.l.b16 %v510
  %v552 = vunpack.c.l.b16 %v511
  %v553 = vunpack.c.l.b16 %v512
  %v554 = vunpack.c.l.b16 %v513
  %v555 = vunpack.c.l.b16 %v514
  %v556 = vunpack.c.l.b16 %v515
  %v557 = vpack.c.b16 %v546, %v545
  %v558 = vpack.c.b16 %v548, %v547
  %v559 = vpack.c.b16 %v550, %v549
  %v560 = vpack.c.b16 %v552, %v551
  %v561 = vpack.c.b16 %v554, %v553
  %v562 = vpack.c.b16 %v556, %v555
  %v575 = vunpack.c.l.b16 %v516
  %v576 = vunpack.c.l.b16 %v517
  %v577 = vunpack.c.l.b16 %v518
  %v578 = vunpack.c.l.b16 %v519
  %v579 = vunpack.c.l.b16 %v520
  %v580 = vunpack.c.l.b16 %v521
  %v581 = vunpack.c.l.b16 %v522
  %v582 = vunpack.c.l.b16 %v523
  %v583 = vunpack.c.l.b16 %v524
  %v584 = vunpack.c.l.b16 %v525
  %v585 = vunpack.c.l.b16 %v526
  %v586 = vunpack.c.l.b16 %v527
  %v587 = vpack.c.b16 %v576, %v575
  %v588 = vpack.c.b16 %v578, %v577
  %v589 = vpack.c.b16 %v580, %v579
  %v590 = vpack.c.b16 %v582, %v581
  %v591 = vpack.c.b16 %v584, %v583
  %v592 = vpack.c.b16 %v586, %v585
  %vm599 = vcmask 785408
  %v601 = vsel %vm599, %v557, 0
  %v604 = vsel %vm599, %v558, 0
  %v607 = vsel %vm599, %v559, 0
  %v610 = vsel %vm599, %v560, 0
  %v613 = vsel %vm599, %v561, 0
  %v616 = vsel %vm599, %v562, 0
  %618 = vmatprep.subr.bf16.mxu0 0
  %619 = vmatpush1.bf16.msra.mxu0 %v587
  %620 = vmatprep.subr.bf16.mxu0 0
  %621 = vmatpush1.bf16.msra.mxu0 %v588
  %622 = vmatprep.subr.bf16.mxu0 0
  %623 = vmatpush1.bf16.msra.mxu0 %v589
  %624 = vmatprep.subr.bf16.mxu0 0
  %625 = vmatpush1.bf16.msra.mxu0 %v590
  %626 = vmatprep.subr.bf16.mxu0 0
  %627 = vmatpush1.bf16.msra.mxu0 %v591
  %628 = vmatprep.subr.bf16.mxu0 0
  %629 = vmatpush1.bf16.msra.mxu0 %v592
  %630 = vmatprep.subr.bf16.mxu0 0
  %631 = vmatpush1.bf16.msra.mxu0 0
  %632 = vmatprep.subr.bf16.mxu0 0
  %633 = vmatpush1.bf16.msra.mxu0 0
  %634 = vmatprep.subr.bf16.mxu0 0
  %635 = vmatpush1.bf16.msra.mxu0 0
  %636 = vmatprep.subr.bf16.mxu0 0
  %637 = vmatpush1.bf16.msra.mxu0 0
  %638 = vmatprep.subr.bf16.mxu0 0
  %639 = vmatpush1.bf16.msra.mxu0 0
  %640 = vmatprep.subr.bf16.mxu0 0
  %641 = vmatpush1.bf16.msra.mxu0 0
  %642 = vmatprep.subr.bf16.mxu0 0
  %643 = vmatpush1.bf16.msra.mxu0 0
  %644 = vmatprep.subr.bf16.mxu0 0
  %645 = vmatpush1.bf16.msra.mxu0 0
  %646 = vmatprep.subr.bf16.mxu0 0
  %647 = vmatpush1.bf16.msra.mxu0 0
  %648 = vmatprep.subr.bf16.mxu0 0
  %649 = vmatpush1.bf16.msra.mxu0 0
  %650 = vmatprep.mubr.bf16.mxu0 0
  %651 = vmatmul.mubr.bf16.gmra.mrb[0].mxu0 %v601
  %v652 = vpop.f32.mrb[0].mxu0
  %v653 = vadd.f32 %v532, %v652
  %v654 = vpop.f32.mrb[0].mxu0
  %v655 = vpop.f32.mrb[0].mxu0
  %v656 = vadd.f32 %v532, %v655
  %v657 = vpop.f32.mrb[0].mxu0
  %658 = vmatprep.mubr.bf16.mxu0 0
  %659 = vmatmul.mubr.bf16.gmra.mrb[0].mxu0 %v604
  %v660 = vpop.f32.mrb[0].mxu0
  %v661 = vadd.f32 %v532, %v660
  %v662 = vpop.f32.mrb[0].mxu0
  %v663 = vpop.f32.mrb[0].mxu0
  %v664 = vadd.f32 %v532, %v663
  %v665 = vpop.f32.mrb[0].mxu0
  %666 = vmatprep.mubr.bf16.mxu0 0
  %667 = vmatmul.mubr.bf16.gmra.mrb[0].mxu0 %v607
  %v668 = vpop.f32.mrb[0].mxu0
  %v669 = vadd.f32 %v532, %v668
  %v670 = vpop.f32.mrb[0].mxu0
  %v671 = vpop.f32.mrb[0].mxu0
  %v672 = vadd.f32 %v532, %v671
  %v673 = vpop.f32.mrb[0].mxu0
  %674 = vmatprep.mubr.bf16.mxu0 0
  %675 = vmatmul.mubr.bf16.gmra.mrb[0].mxu0 %v610
  %v676 = vpop.f32.mrb[0].mxu0
  %v677 = vadd.f32 %v532, %v676
  %v678 = vpop.f32.mrb[0].mxu0
  %v679 = vpop.f32.mrb[0].mxu0
  %v680 = vadd.f32 %v532, %v679
  %v681 = vpop.f32.mrb[0].mxu0
  %682 = vmatprep.mubr.bf16.mxu0 0
  %683 = vmatmul.mubr.bf16.gmra.mrb[0].mxu0 %v613
  %v684 = vpop.f32.mrb[0].mxu0
  %v685 = vadd.f32 %v532, %v684
  %v686 = vpop.f32.mrb[0].mxu0
  %v687 = vpop.f32.mrb[0].mxu0
  %v688 = vadd.f32 %v532, %v687
  %v689 = vpop.f32.mrb[0].mxu0
  %690 = vmatprep.mubr.bf16.mxu0 0
  %691 = vmatmul.mubr.bf16.gmra.mrb[0].mxu0 %v616
  %v692 = vpop.f32.mrb[0].mxu0
  %v693 = vadd.f32 %v532, %v692
  %v694 = vpop.f32.mrb[0].mxu0
  %v695 = vpop.f32.mrb[0].mxu0
  %v696 = vadd.f32 %v532, %v695
  %v697 = vpop.f32.mrb[0].mxu0
  %698 = vdwg.mxu0
  %v699 = vmax.f32 %v653, 0.0
  %v700 = vmax.f32 %v656, 0.0
  %v701 = vmax.f32 %v661, 0.0
  %v702 = vmax.f32 %v664, 0.0
  %v703 = vmax.f32 %v669, 0.0
  %v704 = vmax.f32 %v672, 0.0
  %v705 = vmax.f32 %v677, 0.0
  %v706 = vmax.f32 %v680, 0.0
  %v707 = vmax.f32 %v685, 0.0
  %v708 = vmax.f32 %v688, 0.0
  %v709 = vmax.f32 %v693, 0.0
  %v710 = vmax.f32 %v696, 0.0
  %v711 = vpack.c.bf16 %v700, %v699
  %v712 = vpack.c.bf16 %v702, %v701
  %v713 = vpack.c.bf16 %v704, %v703
  %v714 = vpack.c.bf16 %v706, %v705
  %v715 = vpack.c.bf16 %v708, %v707
  %v716 = vpack.c.bf16 %v710, %v709
  %717 = vst.msk [vmem:[#allocation2 + $0x78] sm:$0xff] %vm125, %v711
  %718 = vst.msk [vmem:[#allocation2 + $0x80] sm:$0xff] %vm125, %v712
  %719 = vst.msk [vmem:[#allocation2 + $0x88] sm:$0xff] %vm125, %v713
  %720 = vst.msk [vmem:[#allocation2 + $0x90] sm:$0xff] %vm125, %v714
  %721 = vst.msk [vmem:[#allocation2 + $0x98] sm:$0xff] %vm125, %v715
  %722 = vst.msk [vmem:[#allocation2 + $0xa0] sm:$0xff] %vm125, %v716
  %v723 = vld [vmem:[#allocation2] sm:$0xff]
  %v724 = vld [vmem:[#allocation2 + $0x8] sm:$0xff]
  %v725 = vld [vmem:[#allocation2 + $0x10] sm:$0xff]
  %v726 = vld [vmem:[#allocation2 + $0x18] sm:$0xff]
  %v727 = vld [vmem:[#allocation2 + $0x20] sm:$0xff]
  %v728 = vld [vmem:[#allocation2 + $0x28] sm:$0xff]
  %v729 = vld [vmem:[#allocation2 + $0x30] sm:$0xff]
  %v730 = vld [vmem:[#allocation2 + $0x38] sm:$0xff]
  %v731 = vld [vmem:[#allocation2 + $0x40] sm:$0xff]
  %v732 = vld [vmem:[#allocation2 + $0x48] sm:$0xff]
  %v733 = vld [vmem:[#allocation2 + $0x50] sm:$0xff]
  %v734 = vld [vmem:[#allocation2 + $0x58] sm:$0xff]
  %v735 = vld [vmem:[#allocation2 + $0x60] sm:$0xff]
  %v736 = vld [vmem:[#allocation2 + $0x68] sm:$0xff]
  %v737 = vld [vmem:[#allocation2 + $0x70] sm:$0xff]
  %v738 = vld [vmem:[#allocation2 + $0x78] sm:$0xff]
  %v739 = vld [vmem:[#allocation2 + $0x80] sm:$0xff]
  %v740 = vld [vmem:[#allocation2 + $0x88] sm:$0xff]
  %v741 = vld [vmem:[#allocation2 + $0x90] sm:$0xff]
  %v742 = vld [vmem:[#allocation2 + $0x98] sm:$0xff]
  %v743 = vld [vmem:[#allocation2 + $0xa0] sm:$0xff]
  %v744 = vld [vmem:[%s7] sm:$0xf]
  %v745 = vld [vmem:[%s7 + $0x4] sm:$0xf]
  %v746 = vld [vmem:[%s7 + $0x8] sm:$0xf]
  %v747 = vld [vmem:[%s7 + $0xc] sm:$0xf]
  %v748 = vld [vmem:[%s9] sm:$0x1]
  %v750 = vlaneseq
  %v751 = vshrl.u32 %v750, 7
  %v752 = vsub.s32 0, %v751
  %v753 = vrot.slane %v748, %v752
  %v759 = vunpack.c.l.b16 %v744
  %v760 = vunpack.c.l.b16 %v745
  %v761 = vunpack.c.l.b16 %v746
  %v762 = vunpack.c.l.b16 %v747
  %v763 = vpack.c.b16 %v760, %v759
  %v764 = vpack.c.b16 %v762, %v761
  %v768 = vsel %vm125, %v723, 0
  %v771 = vsel %vm125, %v724, 0
  %v774 = vsel %vm125, %v725, 0
  %v777 = vsel %vm125, %v726, 0
  %v780 = vsel %vm125, %v727, 0
  %v783 = vsel %vm125, %v728, 0
  %v786 = vsel %vm125, %v729, 0
  %v789 = vsel %vm125, %v730, 0
  %v792 = vsel %vm125, %v731, 0
  %v795 = vsel %vm125, %v732, 0
  %v798 = vsel %vm125, %v733, 0
  %v801 = vsel %vm125, %v734, 0
  %v804 = vsel %vm125, %v735, 0
  %v807 = vsel %vm125, %v736, 0
  %v810 = vsel %vm125, %v737, 0
  %v813 = vsel %vm125, %v738, 0
  %v816 = vsel %vm125, %v739, 0
  %v819 = vsel %vm125, %v740, 0
  %v822 = vsel %vm125, %v741, 0
  %v825 = vsel %vm125, %v742, 0
  %v828 = vsel %vm125, %v743, 0
  %830 = vmatprep.subr.bf16.mxu0 0
  %831 = vmatpush1.bf16.msra.mxu0 %v763
  %832 = vmatprep.subr.bf16.mxu0 0
  %833 = vmatpush1.bf16.msra.mxu0 %v764
  %834 = vmatprep.subr.bf16.mxu0 0
  %835 = vmatpush1.bf16.msra.mxu0 0
  %836 = vmatprep.subr.bf16.mxu0 0
  %837 = vmatpush1.bf16.msra.mxu0 0
  %838 = vmatprep.subr.bf16.mxu0 0
  %839 = vmatpush1.bf16.msra.mxu0 0
  %840 = vmatprep.subr.bf16.mxu0 0
  %841 = vmatpush1.bf16.msra.mxu0 0
  %842 = vmatprep.subr.bf16.mxu0 0
  %843 = vmatpush1.bf16.msra.mxu0 0
  %844 = vmatprep.subr.bf16.mxu0 0
  %845 = vmatpush1.bf16.msra.mxu0 0
  %846 = vmatprep.subr.bf16.mxu0 0
  %847 = vmatpush1.bf16.msra.mxu0 0
  %848 = vmatprep.subr.bf16.mxu0 0
  %849 = vmatpush1.bf16.msra.mxu0 0
  %850 = vmatprep.subr.bf16.mxu0 0
  %851 = vmatpush1.bf16.msra.mxu0 0
  %852 = vmatprep.subr.bf16.mxu0 0
  %853 = vmatpush1.bf16.msra.mxu0 0
  %854 = vmatprep.subr.bf16.mxu0 0
  %855 = vmatpush1.bf16.msra.mxu0 0
  %856 = vmatprep.subr.bf16.mxu0 0
  %857 = vmatpush1.bf16.msra.mxu0 0
  %858 = vmatprep.subr.bf16.mxu0 0
  %859 = vmatpush1.bf16.msra.mxu0 0
  %860 = vmatprep.subr.bf16.mxu0 0
  %861 = vmatpush1.bf16.msra.mxu0 0
  %862 = vmatprep.mubr.bf16.mxu0 0
  %863 = vmatmul.mubr.bf16.gmra.mrb[0].mxu0 %v768
  %v864 = vpop.f32.mrb[0].mxu0
  %v865 = vadd.f32 %v753, %v864
  %v866 = vpop.f32.mrb[0].mxu0
  %v867 = vpop.f32.mrb[0].mxu0
  %v868 = vadd.f32 %v753, %v867
  %v869 = vpop.f32.mrb[0].mxu0
  %870 = vmatprep.mubr.bf16.mxu0 0
  %871 = vmatmul.mubr.bf16.gmra.mrb[0].mxu0 %v771
  %v872 = vpop.f32.mrb[0].mxu0
  %v873 = vadd.f32 %v753, %v872
  %v874 = vpop.f32.mrb[0].mxu0
  %v875 = vpop.f32.mrb[0].mxu0
  %v876 = vadd.f32 %v753, %v875
  %v877 = vpop.f32.mrb[0].mxu0
  %878 = vmatprep.mubr.bf16.mxu0 0
  %879 = vmatmul.mubr.bf16.gmra.mrb[0].mxu0 %v774
  %v880 = vpop.f32.mrb[0].mxu0
  %v881 = vadd.f32 %v753, %v880
  %v882 = vpop.f32.mrb[0].mxu0
  %v883 = vpop.f32.mrb[0].mxu0
  %v884 = vadd.f32 %v753, %v883
  %v885 = vpop.f32.mrb[0].mxu0
  %886 = vmatprep.mubr.bf16.mxu0 0
  %887 = vmatmul.mubr.bf16.gmra.mrb[0].mxu0 %v777
  %v888 = vpop.f32.mrb[0].mxu0
  %v889 = vadd.f32 %v753, %v888
  %v890 = vpop.f32.mrb[0].mxu0
  %v891 = vpop.f32.mrb[0].mxu0
  %v892 = vadd.f32 %v753, %v891
  %v893 = vpop.f32.mrb[0].mxu0
  %894 = vmatprep.mubr.bf16.mxu0 0
  %895 = vmatmul.mubr.bf16.gmra.mrb[0].mxu0 %v780
  %v896 = vpop.f32.mrb[0].mxu0
  %v897 = vadd.f32 %v753, %v896
  %v898 = vpop.f32.mrb[0].mxu0
  %v899 = vpop.f32.mrb[0].mxu0
  %v900 = vadd.f32 %v753, %v899
  %v901 = vpop.f32.mrb[0].mxu0
  %902 = vmatprep.mubr.bf16.mxu0 0
  %903 = vmatmul.mubr.bf16.gmra.mrb[0].mxu0 %v783
  %v904 = vpop.f32.mrb[0].mxu0
  %v905 = vadd.f32 %v753, %v904
  %v906 = vpop.f32.mrb[0].mxu0
  %v907 = vpop.f32.mrb[0].mxu0
  %v908 = vadd.f32 %v753, %v907
  %v909 = vpop.f32.mrb[0].mxu0
  %910 = vmatprep.mubr.bf16.mxu0 0
  %911 = vmatmul.mubr.bf16.gmra.mrb[0].mxu0 %v786
  %v912 = vpop.f32.mrb[0].mxu0
  %v913 = vadd.f32 %v753, %v912
  %v914 = vpop.f32.mrb[0].mxu0
  %v915 = vpop.f32.mrb[0].mxu0
  %v916 = vadd.f32 %v753, %v915
  %v917 = vpop.f32.mrb[0].mxu0
  %918 = vmatprep.mubr.bf16.mxu0 0
  %919 = vmatmul.mubr.bf16.gmra.mrb[0].mxu0 %v789
  %v920 = vpop.f32.mrb[0].mxu0
  %v921 = vadd.f32 %v753, %v920
  %v922 = vpop.f32.mrb[0].mxu0
  %v923 = vpop.f32.mrb[0].mxu0
  %v924 = vadd.f32 %v753, %v923
  %v925 = vpop.f32.mrb[0].mxu0
  %926 = vmatprep.mubr.bf16.mxu0 0
  %927 = vmatmul.mubr.bf16.gmra.mrb[0].mxu0 %v792
  %v928 = vpop.f32.mrb[0].mxu0
  %v929 = vadd.f32 %v753, %v928
  %v930 = vpop.f32.mrb[0].mxu0
  %v931 = vpop.f32.mrb[0].mxu0
  %v932 = vadd.f32 %v753, %v931
  %v933 = vpop.f32.mrb[0].mxu0
  %934 = vmatprep.mubr.bf16.mxu0 0
  %935 = vmatmul.mubr.bf16.gmra.mrb[0].mxu0 %v795
  %v936 = vpop.f32.mrb[0].mxu0
  %v937 = vadd.f32 %v753, %v936
  %v938 = vpop.f32.mrb[0].mxu0
  %v939 = vpop.f32.mrb[0].mxu0
  %v940 = vadd.f32 %v753, %v939
  %v941 = vpop.f32.mrb[0].mxu0
  %942 = vmatprep.mubr.bf16.mxu0 0
  %943 = vmatmul.mubr.bf16.gmra.mrb[0].mxu0 %v798
  %v944 = vpop.f32.mrb[0].mxu0
  %v945 = vadd.f32 %v753, %v944
  %v946 = vpop.f32.mrb[0].mxu0
  %v947 = vpop.f32.mrb[0].mxu0
  %v948 = vadd.f32 %v753, %v947
  %v949 = vpop.f32.mrb[0].mxu0
  %950 = vmatprep.mubr.bf16.mxu0 0
  %951 = vmatmul.mubr.bf16.gmra.mrb[0].mxu0 %v801
  %v952 = vpop.f32.mrb[0].mxu0
  %v953 = vadd.f32 %v753, %v952
  %v954 = vpop.f32.mrb[0].mxu0
  %v955 = vpop.f32.mrb[0].mxu0
  %v956 = vadd.f32 %v753, %v955
  %v957 = vpop.f32.mrb[0].mxu0
  %958 = vmatprep.mubr.bf16.mxu0 0
  %959 = vmatmul.mubr.bf16.gmra.mrb[0].mxu0 %v804
  %v960 = vpop.f32.mrb[0].mxu0
  %v961 = vadd.f32 %v753, %v960
  %v962 = vpop.f32.mrb[0].mxu0
  %v963 = vpop.f32.mrb[0].mxu0
  %v964 = vadd.f32 %v753, %v963
  %v965 = vpop.f32.mrb[0].mxu0
  %966 = vmatprep.mubr.bf16.mxu0 0
  %967 = vmatmul.mubr.bf16.gmra.mrb[0].mxu0 %v807
  %v968 = vpop.f32.mrb[0].mxu0
  %v969 = vadd.f32 %v753, %v968
  %v970 = vpop.f32.mrb[0].mxu0
  %v971 = vpop.f32.mrb[0].mxu0
  %v972 = vadd.f32 %v753, %v971
  %v973 = vpop.f32.mrb[0].mxu0
  %974 = vmatprep.mubr.bf16.mxu0 0
  %975 = vmatmul.mubr.bf16.gmra.mrb[0].mxu0 %v810
  %v976 = vpop.f32.mrb[0].mxu0
  %v977 = vadd.f32 %v753, %v976
  %v978 = vpop.f32.mrb[0].mxu0
  %v979 = vpop.f32.mrb[0].mxu0
  %v980 = vadd.f32 %v753, %v979
  %v981 = vpop.f32.mrb[0].mxu0
  %982 = vmatprep.mubr.bf16.mxu0 0
  %983 = vmatmul.mubr.bf16.gmra.mrb[0].mxu0 %v813
  %v984 = vpop.f32.mrb[0].mxu0
  %v985 = vadd.f32 %v753, %v984
  %v986 = vpop.f32.mrb[0].mxu0
  %v987 = vpop.f32.mrb[0].mxu0
  %v988 = vadd.f32 %v753, %v987
  %v989 = vpop.f32.mrb[0].mxu0
  %990 = vmatprep.mubr.bf16.mxu0 0
  %991 = vmatmul.mubr.bf16.gmra.mrb[0].mxu0 %v816
  %v992 = vpop.f32.mrb[0].mxu0
  %v993 = vadd.f32 %v753, %v992
  %v994 = vpop.f32.mrb[0].mxu0
  %v995 = vpop.f32.mrb[0].mxu0
  %v996 = vadd.f32 %v753, %v995
  %v997 = vpop.f32.mrb[0].mxu0
  %998 = vmatprep.mubr.bf16.mxu0 0
  %999 = vmatmul.mubr.bf16.gmra.mrb[0].mxu0 %v819
  %v1000 = vpop.f32.mrb[0].mxu0
  %v1001 = vadd.f32 %v753, %v1000
  %v1002 = vpop.f32.mrb[0].mxu0
  %v1003 = vpop.f32.mrb[0].mxu0
  %v1004 = vadd.f32 %v753, %v1003
  %v1005 = vpop.f32.mrb[0].mxu0
  %1006 = vmatprep.mubr.bf16.mxu0 0
  %1007 = vmatmul.mubr.bf16.gmra.mrb[0].mxu0 %v822
  %v1008 = vpop.f32.mrb[0].mxu0
  %v1009 = vadd.f32 %v753, %v1008
  %v1010 = vpop.f32.mrb[0].mxu0
  %v1011 = vpop.f32.mrb[0].mxu0
  %v1012 = vadd.f32 %v753, %v1011
  %v1013 = vpop.f32.mrb[0].mxu0
  %1014 = vmatprep.mubr.bf16.mxu0 0
  %1015 = vmatmul.mubr.bf16.gmra.mrb[0].mxu0 %v825
  %v1016 = vpop.f32.mrb[0].mxu0
  %v1017 = vadd.f32 %v753, %v1016
  %v1018 = vpop.f32.mrb[0].mxu0
  %v1019 = vpop.f32.mrb[0].mxu0
  %v1020 = vadd.f32 %v753, %v1019
  %v1021 = vpop.f32.mrb[0].mxu0
  %1022 = vmatprep.mubr.bf16.mxu0 0
  %1023 = vmatmul.mubr.bf16.gmra.mrb[0].mxu0 %v828
  %v1024 = vpop.f32.mrb[0].mxu0
  %v1025 = vadd.f32 %v753, %v1024
  %v1026 = vpop.f32.mrb[0].mxu0
  %v1027 = vpop.f32.mrb[0].mxu0
  %v1028 = vadd.f32 %v753, %v1027
  %v1029 = vpop.f32.mrb[0].mxu0
  %1030 = vdwg.mxu0
  %v1031 = vpack.c.bf16 %v868, %v865
  %v1032 = vpack.c.bf16 %v876, %v873
  %v1033 = vpack.c.bf16 %v884, %v881
  %v1034 = vpack.c.bf16 %v892, %v889
  %v1035 = vpack.c.bf16 %v900, %v897
  %v1036 = vpack.c.bf16 %v908, %v905
  %v1037 = vpack.c.bf16 %v916, %v913
  %v1038 = vpack.c.bf16 %v924, %v921
  %v1039 = vpack.c.bf16 %v932, %v929
  %v1040 = vpack.c.bf16 %v940, %v937
  %v1041 = vpack.c.bf16 %v948, %v945
  %v1042 = vpack.c.bf16 %v956, %v953
  %v1043 = vpack.c.bf16 %v964, %v961
  %v1044 = vpack.c.bf16 %v972, %v969
  %v1045 = vpack.c.bf16 %v980, %v977
  %v1046 = vpack.c.bf16 %v988, %v985
  %v1047 = vpack.c.bf16 %v996, %v993
  %v1048 = vpack.c.bf16 %v1004, %v1001
  %v1049 = vpack.c.bf16 %v1012, %v1009
  %v1050 = vpack.c.bf16 %v1020, %v1017
  %v1051 = vpack.c.bf16 %v1028, %v1025
  %1052 = vst [vmem:[#allocation3] sm:$0xff] %v1031
  %1053 = vst [vmem:[#allocation3 + $0x8] sm:$0xff] %v1032
  %1054 = vst [vmem:[#allocation3 + $0x10] sm:$0xff] %v1033
  %1055 = vst [vmem:[#allocation3 + $0x18] sm:$0xff] %v1034
  %1056 = vst [vmem:[#allocation3 + $0x20] sm:$0xff] %v1035
  %1057 = vst [vmem:[#allocation3 + $0x28] sm:$0xff] %v1036
  %1058 = vst [vmem:[#allocation3 + $0x30] sm:$0xff] %v1037
  %1059 = vst [vmem:[#allocation3 + $0x38] sm:$0xff] %v1038
  %1060 = vst [vmem:[#allocation3 + $0x40] sm:$0xff] %v1039
  %1061 = vst [vmem:[#allocation3 + $0x48] sm:$0xff] %v1040
  %1062 = vst [vmem:[#allocation3 + $0x50] sm:$0xff] %v1041
  %1063 = vst [vmem:[#allocation3 + $0x58] sm:$0xff] %v1042
  %1064 = vst [vmem:[#allocation3 + $0x60] sm:$0xff] %v1043
  %1065 = vst [vmem:[#allocation3 + $0x68] sm:$0xff] %v1044
  %1066 = vst [vmem:[#allocation3 + $0x70] sm:$0xff] %v1045
  %1067 = vst [vmem:[#allocation3 + $0x78] sm:$0xff] %v1046
  %1068 = vst [vmem:[#allocation3 + $0x80] sm:$0xff] %v1047
  %1069 = vst [vmem:[#allocation3 + $0x88] sm:$0xff] %v1048
  %1070 = vst [vmem:[#allocation3 + $0x90] sm:$0xff] %v1049
  %1071 = vst [vmem:[#allocation3 + $0x98] sm:$0xff] %v1050
  %1072 = vst [vmem:[#allocation3 + $0xa0] sm:$0xff] %v1051
  %v1073 = vld [vmem:[%s8] sm:$0xf]
  %v1074 = vld [vmem:[%s8 + $0x4] sm:$0xf]
  %v1075 = vld [vmem:[%s8 + $0x8] sm:$0xf]
  %v1076 = vld [vmem:[%s8 + $0xc] sm:$0xf]
  %v1077 = vld [vmem:[%s10] sm:$0xff]
  %v1078 = vld [vmem:[%s10 + $0x8] sm:$0xff]
  %v1079 = vld [vmem:[%s11] sm:$0xff]
  %v1080 = vld [vmem:[%s11 + $0x8] sm:$0xff]
  %v1081 = vld [vmem:[#allocation3] sm:$0xff]
  %v1082 = vunpack.c.l.bf16 %v1081
  %v1083 = vunpack.c.h.bf16 %v1081
  %v1084 = vpack.c.bf16 %v1078, %v1077
  %v1089 = vunpack.c.l.b16 %v1073
  %v1090 = vunpack.c.l.b16 %v1074
  %v1091 = vunpack.c.l.b16 %v1075
  %v1092 = vunpack.c.l.b16 %v1076
  %v1093 = vpack.c.b16 %v1090, %v1089
  %v1094 = vpack.c.b16 %v1092, %v1091
  %v1098 = vsel %vm125, %v1084, 0
  %1100 = vmatprep.subr.bf16.mxu0 0
  %1101 = vmatpush1.bf16.msra.mxu0 %v1093
  %1102 = vmatprep.subr.bf16.mxu0 0
  %1103 = vmatpush1.bf16.msra.mxu0 %v1094
  %1104 = vmatprep.subr.bf16.mxu0 0
  %1105 = vmatpush1.bf16.msra.mxu0 0
  %1106 = vmatprep.subr.bf16.mxu0 0
  %1107 = vmatpush1.bf16.msra.mxu0 0
  %1108 = vmatprep.subr.bf16.mxu0 0
  %1109 = vmatpush1.bf16.msra.mxu0 0
  %1110 = vmatprep.subr.bf16.mxu0 0
  %1111 = vmatpush1.bf16.msra.mxu0 0
  %1112 = vmatprep.subr.bf16.mxu0 0
  %1113 = vmatpush1.bf16.msra.mxu0 0
  %1114 = vmatprep.subr.bf16.mxu0 0
  %1115 = vmatpush1.bf16.msra.mxu0 0
  %1116 = vmatprep.subr.bf16.mxu0 0
  %1117 = vmatpush1.bf16.msra.mxu0 0
  %1118 = vmatprep.subr.bf16.mxu0 0
  %1119 = vmatpush1.bf16.msra.mxu0 0
  %1120 = vmatprep.subr.bf16.mxu0 0
  %1121 = vmatpush1.bf16.msra.mxu0 0
  %1122 = vmatprep.subr.bf16.mxu0 0
  %1123 = vmatpush1.bf16.msra.mxu0 0
  %1124 = vmatprep.subr.bf16.mxu0 0
  %1125 = vmatpush1.bf16.msra.mxu0 0
  %1126 = vmatprep.subr.bf16.mxu0 0
  %1127 = vmatpush1.bf16.msra.mxu0 0
  %1128 = vmatprep.subr.bf16.mxu0 0
  %1129 = vmatpush1.bf16.msra.mxu0 0
  %1130 = vmatprep.subr.bf16.mxu0 0
  %1131 = vmatpush1.bf16.msra.mxu0 0
  %1132 = vmatprep.mubr.bf16.mxu0 0
  %1133 = vmatmul.mubr.bf16.gmra.mrb[0].mxu0 %v1098
  %v1134 = vpop.f32.mrb[0].mxu0
  %v1135 = vadd.f32 0.0, %v1134
  %v1136 = vpop.f32.mrb[0].mxu0
  %v1137 = vpop.f32.mrb[0].mxu0
  %v1138 = vadd.f32 0.0, %v1137
  %v1139 = vpop.f32.mrb[0].mxu0
  %1140 = vdwg.mxu0
  %v1141 = vadd.f32 %v1082, %v1135
  %v1142 = vadd.f32 %v1083, %v1138
  %v1143 = vxor.u32 %v1141, 2147483648
  %v1144 = vxor.u32 %v1142, 2147483648
  %v1145 = vmul.f32 %v1143, 1.442695
  %v1146 = vpow.pop %v1145
  %v1147 = vmul.f32 %v1144, 1.442695
  %v1148 = vpow.pop %v1147
  %v1149 = vadd.f32 %v1146, 1.0
  %v1150 = vadd.f32 %v1148, 1.0
  %v1151 = vrcp.pop %v1149
  %v1152 = vmul.f32 1.0, %v1151
  %v1153 = vrcp.pop %v1150
  %v1154 = vmul.f32 1.0, %v1153
  %v1155 = vtanh.pop %v1141
  %v1156 = vtanh.pop %v1142
  %1159 = vrot.lane.b32.xlu0 %v1079, 32
  %v1160 = vpop.permute.xlu0 %1159
  %1161 = vrot.lane.b32.xlu0 %v1080, 32
  %v1162 = vpop.permute.xlu0 %1161
  %v1165 = vmul.f32 %v1152, %v1160
  %v1166 = vmul.f32 %v1154, %v1162
  %1169 = vrot.lane.b32.xlu0 %v1155, 64
  %v1170 = vpop.permute.xlu0 %1169
  %1171 = vrot.lane.b32.xlu0 %v1156, 64
  %v1172 = vpop.permute.xlu0 %1171
  %v1175 = vmul.f32 %v1152, %v1170
  %v1176 = vmul.f32 %v1154, %v1172
  %1179 = vrot.lane.b32.xlu0 %v1175, 32
  %v1180 = vpop.permute.xlu0 %1179
  %1181 = vrot.lane.b32.xlu0 %v1176, 32
  %v1182 = vpop.permute.xlu0 %1181
  %v1185 = vadd.f32 %v1165, %v1180
  %v1186 = vadd.f32 %v1166, %v1182
  %v1187 = vtanh.pop %v1185
  %v1188 = vtanh.pop %v1186
  %1191 = vrot.lane.b32.xlu0 %v1187, 64
  %v1192 = vpop.permute.xlu0 %1191
  %1193 = vrot.lane.b32.xlu0 %v1188, 64
  %v1194 = vpop.permute.xlu0 %1193
  %v1197 = vmul.f32 %v1152, %v1192
  %v1198 = vmul.f32 %v1154, %v1194
  %s1199 = scalar_lea.vmem [#allocation3], 8
  %v1200 = vld [vmem:[%s1199] sm:$0xff]
  %v1201 = vunpack.c.l.bf16 %v1200
  %v1202 = vunpack.c.h.bf16 %v1200
  %v1203 = vpack.c.bf16 %v1198, %v1197
  %1205 = vrot.lane.b32.xlu0 %v1203, 32
  %v1206 = vpop.permute.xlu0 %1205
  %v1208 = vsel %vm125, %v1206, 0
  %1210 = vmatprep.subr.bf16.mxu0 0
  %1211 = vmatpush1.bf16.msra.mxu0 %v1093
  %1212 = vmatprep.subr.bf16.mxu0 0
  %1213 = vmatpush1.bf16.msra.mxu0 %v1094
  %1214 = vmatprep.subr.bf16.mxu0 0
  %1215 = vmatpush1.bf16.msra.mxu0 0
  %1216 = vmatprep.subr.bf16.mxu0 0
  %1217 = vmatpush1.bf16.msra.mxu0 0
  %1218 = vmatprep.subr.bf16.mxu0 0
  %1219 = vmatpush1.bf16.msra.mxu0 0
  %1220 = vmatprep.subr.bf16.mxu0 0
  %1221 = vmatpush1.bf16.msra.mxu0 0
  %1222 = vmatprep.subr.bf16.mxu0 0
  %1223 = vmatpush1.bf16.msra.mxu0 0
  %1224 = vmatprep.subr.bf16.mxu0 0
  %1225 = vmatpush1.bf16.msra.mxu0 0
  %1226 = vmatprep.subr.bf16.mxu0 0
  %1227 = vmatpush1.bf16.msra.mxu0 0
  %1228 = vmatprep.subr.bf16.mxu0 0
  %1229 = vmatpush1.bf16.msra.mxu0 0
  %1230 = vmatprep.subr.bf16.mxu0 0
  %1231 = vmatpush1.bf16.msra.mxu0 0
  %1232 = vmatprep.subr.bf16.mxu0 0
  %1233 = vmatpush1.bf16.msra.mxu0 0
  %1234 = vmatprep.subr.bf16.mxu0 0
  %1235 = vmatpush1.bf16.msra.mxu0 0
  %1236 = vmatprep.subr.bf16.mxu0 0
  %1237 = vmatpush1.bf16.msra.mxu0 0
  %1238 = vmatprep.subr.bf16.mxu0 0
  %1239 = vmatpush1.bf16.msra.mxu0 0
  %1240 = vmatprep.subr.bf16.mxu0 0
  %1241 = vmatpush1.bf16.msra.mxu0 0
  %1242 = vmatprep.mubr.bf16.mxu0 0
  %1243 = vmatmul.mubr.bf16.gmra.mrb[0].mxu0 %v1208
  %v1244 = vpop.f32.mrb[0].mxu0
  %v1245 = vadd.f32 0.0, %v1244
  %v1246 = vpop.f32.mrb[0].mxu0
  %v1247 = vpop.f32.mrb[0].mxu0
  %v1248 = vadd.f32 0.0, %v1247
  %v1249 = vpop.f32.mrb[0].mxu0
  %1250 = vdwg.mxu0
  %v1251 = vadd.f32 %v1201, %v1245
  %v1252 = vadd.f32 %v1202, %v1248
  %v1253 = vxor.u32 %v1251, 2147483648
  %v1254 = vxor.u32 %v1252, 2147483648
  %v1255 = vmul.f32 %v1253, 1.442695
  %v1256 = vpow.pop %v1255
  %v1257 = vmul.f32 %v1254, 1.442695
  %v1258 = vpow.pop %v1257
  %v1259 = vadd.f32 %v1256, 1.0
  %v1260 = vadd.f32 %v1258, 1.0
  %v1261 = vrcp.pop %v1259
  %v1262 = vmul.f32 1.0, %v1261
  %v1263 = vrcp.pop %v1260
  %v1264 = vmul.f32 1.0, %v1263
  %v1265 = vtanh.pop %v1251
  %v1266 = vtanh.pop %v1252
  %v1267 = vmul.f32 %v1262, %v1185
  %v1268 = vmul.f32 %v1264, %v1186
  %1271 = vrot.lane.b32.xlu0 %v1265, 64
  %v1272 = vpop.permute.xlu0 %1271
  %1273 = vrot.lane.b32.xlu0 %v1266, 64
  %v1274 = vpop.permute.xlu0 %1273
  %v1277 = vmul.f32 %v1262, %v1272
  %v1278 = vmul.f32 %v1264, %v1274
  %1281 = vrot.lane.b32.xlu0 %v1277, 32
  %v1282 = vpop.permute.xlu0 %1281
  %1283 = vrot.lane.b32.xlu0 %v1278, 32
  %v1284 = vpop.permute.xlu0 %1283
  %v1287 = vadd.f32 %v1267, %v1282
  %v1288 = vadd.f32 %v1268, %v1284
  %v1289 = vtanh.pop %v1287
  %v1290 = vtanh.pop %v1288
  %1293 = vrot.lane.b32.xlu0 %v1289, 64
  %v1294 = vpop.permute.xlu0 %1293
  %1295 = vrot.lane.b32.xlu0 %v1290, 64
  %v1296 = vpop.permute.xlu0 %1295
  %v1299 = vmul.f32 %v1262, %v1294
  %v1300 = vmul.f32 %v1264, %v1296
  %s1301 = scalar_lea.vmem [#allocation3], 16
  %v1302 = vld [vmem:[%s1301] sm:$0xff]
  %v1303 = vunpack.c.l.bf16 %v1302
  %v1304 = vunpack.c.h.bf16 %v1302
  %v1305 = vpack.c.bf16 %v1300, %v1299
  %1307 = vrot.lane.b32.xlu0 %v1305, 32
  %v1308 = vpop.permute.xlu0 %1307
  %v1310 = vsel %vm125, %v1308, 0
  %1312 = vmatprep.subr.bf16.mxu0 0
  %1313 = vmatpush1.bf16.msra.mxu0 %v1093
  %1314 = vmatprep.subr.bf16.mxu0 0
  %1315 = vmatpush1.bf16.msra.mxu0 %v1094
  %1316 = vmatprep.subr.bf16.mxu0 0
  %1317 = vmatpush1.bf16.msra.mxu0 0
  %1318 = vmatprep.subr.bf16.mxu0 0
  %1319 = vmatpush1.bf16.msra.mxu0 0
  %1320 = vmatprep.subr.bf16.mxu0 0
  %1321 = vmatpush1.bf16.msra.mxu0 0
  %1322 = vmatprep.subr.bf16.mxu0 0
  %1323 = vmatpush1.bf16.msra.mxu0 0
  %1324 = vmatprep.subr.bf16.mxu0 0
  %1325 = vmatpush1.bf16.msra.mxu0 0
  %1326 = vmatprep.subr.bf16.mxu0 0
  %1327 = vmatpush1.bf16.msra.mxu0 0
  %1328 = vmatprep.subr.bf16.mxu0 0
  %1329 = vmatpush1.bf16.msra.mxu0 0
  %1330 = vmatprep.subr.bf16.mxu0 0
  %1331 = vmatpush1.bf16.msra.mxu0 0
  %1332 = vmatprep.subr.bf16.mxu0 0
  %1333 = vmatpush1.bf16.msra.mxu0 0
  %1334 = vmatprep.subr.bf16.mxu0 0
  %1335 = vmatpush1.bf16.msra.mxu0 0
  %1336 = vmatprep.subr.bf16.mxu0 0
  %1337 = vmatpush1.bf16.msra.mxu0 0
  %1338 = vmatprep.subr.bf16.mxu0 0
  %1339 = vmatpush1.bf16.msra.mxu0 0
  %1340 = vmatprep.subr.bf16.mxu0 0
  %1341 = vmatpush1.bf16.msra.mxu0 0
  %1342 = vmatprep.subr.bf16.mxu0 0
  %1343 = vmatpush1.bf16.msra.mxu0 0
  %1344 = vmatprep.mubr.bf16.mxu0 0
  %1345 = vmatmul.mubr.bf16.gmra.mrb[0].mxu0 %v1310
  %v1346 = vpop.f32.mrb[0].mxu0
  %v1347 = vadd.f32 0.0, %v1346
  %v1348 = vpop.f32.mrb[0].mxu0
  %v1349 = vpop.f32.mrb[0].mxu0
  %v1350 = vadd.f32 0.0, %v1349
  %v1351 = vpop.f32.mrb[0].mxu0
  %1352 = vdwg.mxu0
  %v1353 = vadd.f32 %v1303, %v1347
  %v1354 = vadd.f32 %v1304, %v1350
  %v1355 = vxor.u32 %v1353, 2147483648
  %v1356 = vxor.u32 %v1354, 2147483648
  %v1357 = vmul.f32 %v1355, 1.442695
  %v1358 = vpow.pop %v1357
  %v1359 = vmul.f32 %v1356, 1.442695
  %v1360 = vpow.pop %v1359
  %v1361 = vadd.f32 %v1358, 1.0
  %v1362 = vadd.f32 %v1360, 1.0
  %v1363 = vrcp.pop %v1361
  %v1364 = vmul.f32 1.0, %v1363
  %v1365 = vrcp.pop %v1362
  %v1366 = vmul.f32 1.0, %v1365
  %v1367 = vtanh.pop %v1353
  %v1368 = vtanh.pop %v1354
  %v1369 = vmul.f32 %v1364, %v1287
  %v1370 = vmul.f32 %v1366, %v1288
  %1373 = vrot.lane.b32.xlu0 %v1367, 64
  %v1374 = vpop.permute.xlu0 %1373
  %1375 = vrot.lane.b32.xlu0 %v1368, 64
  %v1376 = vpop.permute.xlu0 %1375
  %v1379 = vmul.f32 %v1364, %v1374
  %v1380 = vmul.f32 %v1366, %v1376
  %1383 = vrot.lane.b32.xlu0 %v1379, 32
  %v1384 = vpop.permute.xlu0 %1383
  %1385 = vrot.lane.b32.xlu0 %v1380, 32
  %v1386 = vpop.permute.xlu0 %1385
  %v1389 = vadd.f32 %v1369, %v1384
  %v1390 = vadd.f32 %v1370, %v1386
  %v1391 = vtanh.pop %v1389
  %v1392 = vtanh.pop %v1390
  %1395 = vrot.lane.b32.xlu0 %v1391, 64
  %v1396 = vpop.permute.xlu0 %1395
  %1397 = vrot.lane.b32.xlu0 %v1392, 64
  %v1398 = vpop.permute.xlu0 %1397
  %v1401 = vmul.f32 %v1364, %v1396
  %v1402 = vmul.f32 %v1366, %v1398
  %s1403 = scalar_lea.vmem [#allocation3], 24
  %v1404 = vld [vmem:[%s1403] sm:$0xff]
  %v1405 = vunpack.c.l.bf16 %v1404
  %v1406 = vunpack.c.h.bf16 %v1404
  %v1407 = vpack.c.bf16 %v1402, %v1401
  %1409 = vrot.lane.b32.xlu0 %v1407, 32
  %v1410 = vpop.permute.xlu0 %1409
  %v1412 = vsel %vm125, %v1410, 0
  %1414 = vmatprep.subr.bf16.mxu0 0
  %1415 = vmatpush1.bf16.msra.mxu0 %v1093
  %1416 = vmatprep.subr.bf16.mxu0 0
  %1417 = vmatpush1.bf16.msra.mxu0 %v1094
  %1418 = vmatprep.subr.bf16.mxu0 0
  %1419 = vmatpush1.bf16.msra.mxu0 0
  %1420 = vmatprep.subr.bf16.mxu0 0
  %1421 = vmatpush1.bf16.msra.mxu0 0
  %1422 = vmatprep.subr.bf16.mxu0 0
  %1423 = vmatpush1.bf16.msra.mxu0 0
  %1424 = vmatprep.subr.bf16.mxu0 0
  %1425 = vmatpush1.bf16.msra.mxu0 0
  %1426 = vmatprep.subr.bf16.mxu0 0
  %1427 = vmatpush1.bf16.msra.mxu0 0
  %1428 = vmatprep.subr.bf16.mxu0 0
  %1429 = vmatpush1.bf16.msra.mxu0 0
  %1430 = vmatprep.subr.bf16.mxu0 0
  %1431 = vmatpush1.bf16.msra.mxu0 0
  %1432 = vmatprep.subr.bf16.mxu0 0
  %1433 = vmatpush1.bf16.msra.mxu0 0
  %1434 = vmatprep.subr.bf16.mxu0 0
  %1435 = vmatpush1.bf16.msra.mxu0 0
  %1436 = vmatprep.subr.bf16.mxu0 0
  %1437 = vmatpush1.bf16.msra.mxu0 0
  %1438 = vmatprep.subr.bf16.mxu0 0
  %1439 = vmatpush1.bf16.msra.mxu0 0
  %1440 = vmatprep.subr.bf16.mxu0 0
  %1441 = vmatpush1.bf16.msra.mxu0 0
  %1442 = vmatprep.subr.bf16.mxu0 0
  %1443 = vmatpush1.bf16.msra.mxu0 0
  %1444 = vmatprep.subr.bf16.mxu0 0
  %1445 = vmatpush1.bf16.msra.mxu0 0
  %1446 = vmatprep.mubr.bf16.mxu0 0
  %1447 = vmatmul.mubr.bf16.gmra.mrb[0].mxu0 %v1412
  %v1448 = vpop.f32.mrb[0].mxu0
  %v1449 = vadd.f32 0.0, %v1448
  %v1450 = vpop.f32.mrb[0].mxu0
  %v1451 = vpop.f32.mrb[0].mxu0
  %v1452 = vadd.f32 0.0, %v1451
  %v1453 = vpop.f32.mrb[0].mxu0
  %1454 = vdwg.mxu0
  %v1455 = vadd.f32 %v1405, %v1449
  %v1456 = vadd.f32 %v1406, %v1452
  %v1457 = vxor.u32 %v1455, 2147483648
  %v1458 = vxor.u32 %v1456, 2147483648
  %v1459 = vmul.f32 %v1457, 1.442695
  %v1460 = vpow.pop %v1459
  %v1461 = vmul.f32 %v1458, 1.442695
  %v1462 = vpow.pop %v1461
  %v1463 = vadd.f32 %v1460, 1.0
  %v1464 = vadd.f32 %v1462, 1.0
  %v1465 = vrcp.pop %v1463
  %v1466 = vmul.f32 1.0, %v1465
  %v1467 = vrcp.pop %v1464
  %v1468 = vmul.f32 1.0, %v1467
  %v1469 = vtanh.pop %v1455
  %v1470 = vtanh.pop %v1456
  %v1471 = vmul.f32 %v1466, %v1389
  %v1472 = vmul.f32 %v1468, %v1390
  %1475 = vrot.lane.b32.xlu0 %v1469, 64
  %v1476 = vpop.permute.xlu0 %1475
  %1477 = vrot.lane.b32.xlu0 %v1470, 64
  %v1478 = vpop.permute.xlu0 %1477
  %v1481 = vmul.f32 %v1466, %v1476
  %v1482 = vmul.f32 %v1468, %v1478
  %1485 = vrot.lane.b32.xlu0 %v1481, 32
  %v1486 = vpop.permute.xlu0 %1485
  %1487 = vrot.lane.b32.xlu0 %v1482, 32
  %v1488 = vpop.permute.xlu0 %1487
  %v1491 = vadd.f32 %v1471, %v1486
  %v1492 = vadd.f32 %v1472, %v1488
  %v1493 = vtanh.pop %v1491
  %v1494 = vtanh.pop %v1492
  %1497 = vrot.lane.b32.xlu0 %v1493, 64
  %v1498 = vpop.permute.xlu0 %1497
  %1499 = vrot.lane.b32.xlu0 %v1494, 64
  %v1500 = vpop.permute.xlu0 %1499
  %v1503 = vmul.f32 %v1466, %v1498
  %v1504 = vmul.f32 %v1468, %v1500
  %s1505 = scalar_lea.vmem [#allocation3], 32
  %v1506 = vld [vmem:[%s1505] sm:$0xff]
  %v1507 = vunpack.c.l.bf16 %v1506
  %v1508 = vunpack.c.h.bf16 %v1506
  %v1509 = vpack.c.bf16 %v1504, %v1503
  %1511 = vrot.lane.b32.xlu0 %v1509, 32
  %v1512 = vpop.permute.xlu0 %1511
  %v1514 = vsel %vm125, %v1512, 0
  %1516 = vmatprep.subr.bf16.mxu0 0
  %1517 = vmatpush1.bf16.msra.mxu0 %v1093
  %1518 = vmatprep.subr.bf16.mxu0 0
  %1519 = vmatpush1.bf16.msra.mxu0 %v1094
  %1520 = vmatprep.subr.bf16.mxu0 0
  %1521 = vmatpush1.bf16.msra.mxu0 0
  %1522 = vmatprep.subr.bf16.mxu0 0
  %1523 = vmatpush1.bf16.msra.mxu0 0
  %1524 = vmatprep.subr.bf16.mxu0 0
  %1525 = vmatpush1.bf16.msra.mxu0 0
  %1526 = vmatprep.subr.bf16.mxu0 0
  %1527 = vmatpush1.bf16.msra.mxu0 0
  %1528 = vmatprep.subr.bf16.mxu0 0
  %1529 = vmatpush1.bf16.msra.mxu0 0
  %1530 = vmatprep.subr.bf16.mxu0 0
  %1531 = vmatpush1.bf16.msra.mxu0 0
  %1532 = vmatprep.subr.bf16.mxu0 0
  %1533 = vmatpush1.bf16.msra.mxu0 0
  %1534 = vmatprep.subr.bf16.mxu0 0
  %1535 = vmatpush1.bf16.msra.mxu0 0
  %1536 = vmatprep.subr.bf16.mxu0 0
  %1537 = vmatpush1.bf16.msra.mxu0 0
  %1538 = vmatprep.subr.bf16.mxu0 0
  %1539 = vmatpush1.bf16.msra.mxu0 0
  %1540 = vmatprep.subr.bf16.mxu0 0
  %1541 = vmatpush1.bf16.msra.mxu0 0
  %1542 = vmatprep.subr.bf16.mxu0 0
  %1543 = vmatpush1.bf16.msra.mxu0 0
  %1544 = vmatprep.subr.bf16.mxu0 0
  %1545 = vmatpush1.bf16.msra.mxu0 0
  %1546 = vmatprep.subr.bf16.mxu0 0
  %1547 = vmatpush1.bf16.msra.mxu0 0
  %1548 = vmatprep.mubr.bf16.mxu0 0
  %1549 = vmatmul.mubr.bf16.gmra.mrb[0].mxu0 %v1514
  %v1550 = vpop.f32.mrb[0].mxu0
  %v1551 = vadd.f32 0.0, %v1550
  %v1552 = vpop.f32.mrb[0].mxu0
  %v1553 = vpop.f32.mrb[0].mxu0
  %v1554 = vadd.f32 0.0, %v1553
  %v1555 = vpop.f32.mrb[0].mxu0
  %1556 = vdwg.mxu0
  %v1557 = vadd.f32 %v1507, %v1551
  %v1558 = vadd.f32 %v1508, %v1554
  %v1559 = vxor.u32 %v1557, 2147483648
  %v1560 = vxor.u32 %v1558, 2147483648
  %v1561 = vmul.f32 %v1559, 1.442695
  %v1562 = vpow.pop %v1561
  %v1563 = vmul.f32 %v1560, 1.442695
  %v1564 = vpow.pop %v1563
  %v1565 = vadd.f32 %v1562, 1.0
  %v1566 = vadd.f32 %v1564, 1.0
  %v1567 = vrcp.pop %v1565
  %v1568 = vmul.f32 1.0, %v1567
  %v1569 = vrcp.pop %v1566
  %v1570 = vmul.f32 1.0, %v1569
  %v1571 = vtanh.pop %v1557
  %v1572 = vtanh.pop %v1558
  %v1573 = vmul.f32 %v1568, %v1491
  %v1574 = vmul.f32 %v1570, %v1492
  %1577 = vrot.lane.b32.xlu0 %v1571, 64
  %v1578 = vpop.permute.xlu0 %1577
  %1579 = vrot.lane.b32.xlu0 %v1572, 64
  %v1580 = vpop.permute.xlu0 %1579
  %v1583 = vmul.f32 %v1568, %v1578
  %v1584 = vmul.f32 %v1570, %v1580
  %1587 = vrot.lane.b32.xlu0 %v1583, 32
  %v1588 = vpop.permute.xlu0 %1587
  %1589 = vrot.lane.b32.xlu0 %v1584, 32
  %v1590 = vpop.permute.xlu0 %1589
  %v1593 = vadd.f32 %v1573, %v1588
  %v1594 = vadd.f32 %v1574, %v1590
  %v1595 = vtanh.pop %v1593
  %v1596 = vtanh.pop %v1594
  %1599 = vrot.lane.b32.xlu0 %v1595, 64
  %v1600 = vpop.permute.xlu0 %1599
  %1601 = vrot.lane.b32.xlu0 %v1596, 64
  %v1602 = vpop.permute.xlu0 %1601
  %v1605 = vmul.f32 %v1568, %v1600
  %v1606 = vmul.f32 %v1570, %v1602
  %s1607 = scalar_lea.vmem [#allocation3], 40
  %v1608 = vld [vmem:[%s1607] sm:$0xff]
  %v1609 = vunpack.c.l.bf16 %v1608
  %v1610 = vunpack.c.h.bf16 %v1608
  %v1611 = vpack.c.bf16 %v1606, %v1605
  %1613 = vrot.lane.b32.xlu0 %v1611, 32
  %v1614 = vpop.permute.xlu0 %1613
  %v1616 = vsel %vm125, %v1614, 0
  %1618 = vmatprep.subr.bf16.mxu0 0
  %1619 = vmatpush1.bf16.msra.mxu0 %v1093
  %1620 = vmatprep.subr.bf16.mxu0 0
  %1621 = vmatpush1.bf16.msra.mxu0 %v1094
  %1622 = vmatprep.subr.bf16.mxu0 0
  %1623 = vmatpush1.bf16.msra.mxu0 0
  %1624 = vmatprep.subr.bf16.mxu0 0
  %1625 = vmatpush1.bf16.msra.mxu0 0
  %1626 = vmatprep.subr.bf16.mxu0 0
  %1627 = vmatpush1.bf16.msra.mxu0 0
  %1628 = vmatprep.subr.bf16.mxu0 0
  %1629 = vmatpush1.bf16.msra.mxu0 0
  %1630 = vmatprep.subr.bf16.mxu0 0
  %1631 = vmatpush1.bf16.msra.mxu0 0
  %1632 = vmatprep.subr.bf16.mxu0 0
  %1633 = vmatpush1.bf16.msra.mxu0 0
  %1634 = vmatprep.subr.bf16.mxu0 0
  %1635 = vmatpush1.bf16.msra.mxu0 0
  %1636 = vmatprep.subr.bf16.mxu0 0
  %1637 = vmatpush1.bf16.msra.mxu0 0
  %1638 = vmatprep.subr.bf16.mxu0 0
  %1639 = vmatpush1.bf16.msra.mxu0 0
  %1640 = vmatprep.subr.bf16.mxu0 0
  %1641 = vmatpush1.bf16.msra.mxu0 0
  %1642 = vmatprep.subr.bf16.mxu0 0
  %1643 = vmatpush1.bf16.msra.mxu0 0
  %1644 = vmatprep.subr.bf16.mxu0 0
  %1645 = vmatpush1.bf16.msra.mxu0 0
  %1646 = vmatprep.subr.bf16.mxu0 0
  %1647 = vmatpush1.bf16.msra.mxu0 0
  %1648 = vmatprep.subr.bf16.mxu0 0
  %1649 = vmatpush1.bf16.msra.mxu0 0
  %1650 = vmatprep.mubr.bf16.mxu0 0
  %1651 = vmatmul.mubr.bf16.gmra.mrb[0].mxu0 %v1616
  %v1652 = vpop.f32.mrb[0].mxu0
  %v1653 = vadd.f32 0.0, %v1652
  %v1654 = vpop.f32.mrb[0].mxu0
  %v1655 = vpop.f32.mrb[0].mxu0
  %v1656 = vadd.f32 0.0, %v1655
  %v1657 = vpop.f32.mrb[0].mxu0
  %1658 = vdwg.mxu0
  %v1659 = vadd.f32 %v1609, %v1653
  %v1660 = vadd.f32 %v1610, %v1656
  %v1661 = vxor.u32 %v1659, 2147483648
  %v1662 = vxor.u32 %v1660, 2147483648
  %v1663 = vmul.f32 %v1661, 1.442695
  %v1664 = vpow.pop %v1663
  %v1665 = vmul.f32 %v1662, 1.442695
  %v1666 = vpow.pop %v1665
  %v1667 = vadd.f32 %v1664, 1.0
  %v1668 = vadd.f32 %v1666, 1.0
  %v1669 = vrcp.pop %v1667
  %v1670 = vmul.f32 1.0, %v1669
  %v1671 = vrcp.pop %v1668
  %v1672 = vmul.f32 1.0, %v1671
  %v1673 = vtanh.pop %v1659
  %v1674 = vtanh.pop %v1660
  %v1675 = vmul.f32 %v1670, %v1593
  %v1676 = vmul.f32 %v1672, %v1594
  %1679 = vrot.lane.b32.xlu0 %v1673, 64
  %v1680 = vpop.permute.xlu0 %1679
  %1681 = vrot.lane.b32.xlu0 %v1674, 64
  %v1682 = vpop.permute.xlu0 %1681
  %v1685 = vmul.f32 %v1670, %v1680
  %v1686 = vmul.f32 %v1672, %v1682
  %1689 = vrot.lane.b32.xlu0 %v1685, 32
  %v1690 = vpop.permute.xlu0 %1689
  %1691 = vrot.lane.b32.xlu0 %v1686, 32
  %v1692 = vpop.permute.xlu0 %1691
  %v1695 = vadd.f32 %v1675, %v1690
  %v1696 = vadd.f32 %v1676, %v1692
  %v1697 = vtanh.pop %v1695
  %v1698 = vtanh.pop %v1696
  %1701 = vrot.lane.b32.xlu0 %v1697, 64
  %v1702 = vpop.permute.xlu0 %1701
  %1703 = vrot.lane.b32.xlu0 %v1698, 64
  %v1704 = vpop.permute.xlu0 %1703
  %v1707 = vmul.f32 %v1670, %v1702
  %v1708 = vmul.f32 %v1672, %v1704
  %s1709 = scalar_lea.vmem [#allocation3], 48
  %v1710 = vld [vmem:[%s1709] sm:$0xff]
  %v1711 = vunpack.c.l.bf16 %v1710
  %v1712 = vunpack.c.h.bf16 %v1710
  %v1713 = vpack.c.bf16 %v1708, %v1707
  %1715 = vrot.lane.b32.xlu0 %v1713, 32
  %v1716 = vpop.permute.xlu0 %1715
  %v1718 = vsel %vm125, %v1716, 0
  %1720 = vmatprep.subr.bf16.mxu0 0
  %1721 = vmatpush1.bf16.msra.mxu0 %v1093
  %1722 = vmatprep.subr.bf16.mxu0 0
  %1723 = vmatpush1.bf16.msra.mxu0 %v1094
  %1724 = vmatprep.subr.bf16.mxu0 0
  %1725 = vmatpush1.bf16.msra.mxu0 0
  %1726 = vmatprep.subr.bf16.mxu0 0
  %1727 = vmatpush1.bf16.msra.mxu0 0
  %1728 = vmatprep.subr.bf16.mxu0 0
  %1729 = vmatpush1.bf16.msra.mxu0 0
  %1730 = vmatprep.subr.bf16.mxu0 0
  %1731 = vmatpush1.bf16.msra.mxu0 0
  %1732 = vmatprep.subr.bf16.mxu0 0
  %1733 = vmatpush1.bf16.msra.mxu0 0
  %1734 = vmatprep.subr.bf16.mxu0 0
  %1735 = vmatpush1.bf16.msra.mxu0 0
  %1736 = vmatprep.subr.bf16.mxu0 0
  %1737 = vmatpush1.bf16.msra.mxu0 0
  %1738 = vmatprep.subr.bf16.mxu0 0
  %1739 = vmatpush1.bf16.msra.mxu0 0
  %1740 = vmatprep.subr.bf16.mxu0 0
  %1741 = vmatpush1.bf16.msra.mxu0 0
  %1742 = vmatprep.subr.bf16.mxu0 0
  %1743 = vmatpush1.bf16.msra.mxu0 0
  %1744 = vmatprep.subr.bf16.mxu0 0
  %1745 = vmatpush1.bf16.msra.mxu0 0
  %1746 = vmatprep.subr.bf16.mxu0 0
  %1747 = vmatpush1.bf16.msra.mxu0 0
  %1748 = vmatprep.subr.bf16.mxu0 0
  %1749 = vmatpush1.bf16.msra.mxu0 0
  %1750 = vmatprep.subr.bf16.mxu0 0
  %1751 = vmatpush1.bf16.msra.mxu0 0
  %1752 = vmatprep.mubr.bf16.mxu0 0
  %1753 = vmatmul.mubr.bf16.gmra.mrb[0].mxu0 %v1718
  %v1754 = vpop.f32.mrb[0].mxu0
  %v1755 = vadd.f32 0.0, %v1754
  %v1756 = vpop.f32.mrb[0].mxu0
  %v1757 = vpop.f32.mrb[0].mxu0
  %v1758 = vadd.f32 0.0, %v1757
  %v1759 = vpop.f32.mrb[0].mxu0
  %1760 = vdwg.mxu0
  %v1761 = vadd.f32 %v1711, %v1755
  %v1762 = vadd.f32 %v1712, %v1758
  %v1763 = vxor.u32 %v1761, 2147483648
  %v1764 = vxor.u32 %v1762, 2147483648
  %v1765 = vmul.f32 %v1763, 1.442695
  %v1766 = vpow.pop %v1765
  %v1767 = vmul.f32 %v1764, 1.442695
  %v1768 = vpow.pop %v1767
  %v1769 = vadd.f32 %v1766, 1.0
  %v1770 = vadd.f32 %v1768, 1.0
  %v1771 = vrcp.pop %v1769
  %v1772 = vmul.f32 1.0, %v1771
  %v1773 = vrcp.pop %v1770
  %v1774 = vmul.f32 1.0, %v1773
  %v1775 = vtanh.pop %v1761
  %v1776 = vtanh.pop %v1762
  %v1777 = vmul.f32 %v1772, %v1695
  %v1778 = vmul.f32 %v1774, %v1696
  %1781 = vrot.lane.b32.xlu0 %v1775, 64
  %v1782 = vpop.permute.xlu0 %1781
  %1783 = vrot.lane.b32.xlu0 %v1776, 64
  %v1784 = vpop.permute.xlu0 %1783
  %v1787 = vmul.f32 %v1772, %v1782
  %v1788 = vmul.f32 %v1774, %v1784
  %1791 = vrot.lane.b32.xlu0 %v1787, 32
  %v1792 = vpop.permute.xlu0 %1791
  %1793 = vrot.lane.b32.xlu0 %v1788, 32
  %v1794 = vpop.permute.xlu0 %1793
  %v1797 = vadd.f32 %v1777, %v1792
  %v1798 = vadd.f32 %v1778, %v1794
  %v1799 = vtanh.pop %v1797
  %v1800 = vtanh.pop %v1798
  %1803 = vrot.lane.b32.xlu0 %v1799, 64
  %v1804 = vpop.permute.xlu0 %1803
  %1805 = vrot.lane.b32.xlu0 %v1800, 64
  %v1806 = vpop.permute.xlu0 %1805
  %v1809 = vmul.f32 %v1772, %v1804
  %v1810 = vmul.f32 %v1774, %v1806
  %s1811 = scalar_lea.vmem [#allocation3], 56
  %v1812 = vld [vmem:[%s1811] sm:$0xff]
  %v1813 = vunpack.c.l.bf16 %v1812
  %v1814 = vunpack.c.h.bf16 %v1812
  %v1815 = vpack.c.bf16 %v1810, %v1809
  %1817 = vrot.lane.b32.xlu0 %v1815, 32
  %v1818 = vpop.permute.xlu0 %1817
  %v1820 = vsel %vm125, %v1818, 0
  %1822 = vmatprep.subr.bf16.mxu0 0
  %1823 = vmatpush1.bf16.msra.mxu0 %v1093
  %1824 = vmatprep.subr.bf16.mxu0 0
  %1825 = vmatpush1.bf16.msra.mxu0 %v1094
  %1826 = vmatprep.subr.bf16.mxu0 0
  %1827 = vmatpush1.bf16.msra.mxu0 0
  %1828 = vmatprep.subr.bf16.mxu0 0
  %1829 = vmatpush1.bf16.msra.mxu0 0
  %1830 = vmatprep.subr.bf16.mxu0 0
  %1831 = vmatpush1.bf16.msra.mxu0 0
  %1832 = vmatprep.subr.bf16.mxu0 0
  %1833 = vmatpush1.bf16.msra.mxu0 0
  %1834 = vmatprep.subr.bf16.mxu0 0
  %1835 = vmatpush1.bf16.msra.mxu0 0
  %1836 = vmatprep.subr.bf16.mxu0 0
  %1837 = vmatpush1.bf16.msra.mxu0 0
  %1838 = vmatprep.subr.bf16.mxu0 0
  %1839 = vmatpush1.bf16.msra.mxu0 0
  %1840 = vmatprep.subr.bf16.mxu0 0
  %1841 = vmatpush1.bf16.msra.mxu0 0
  %1842 = vmatprep.subr.bf16.mxu0 0
  %1843 = vmatpush1.bf16.msra.mxu0 0
  %1844 = vmatprep.subr.bf16.mxu0 0
  %1845 = vmatpush1.bf16.msra.mxu0 0
  %1846 = vmatprep.subr.bf16.mxu0 0
  %1847 = vmatpush1.bf16.msra.mxu0 0
  %1848 = vmatprep.subr.bf16.mxu0 0
  %1849 = vmatpush1.bf16.msra.mxu0 0
  %1850 = vmatprep.subr.bf16.mxu0 0
  %1851 = vmatpush1.bf16.msra.mxu0 0
  %1852 = vmatprep.subr.bf16.mxu0 0
  %1853 = vmatpush1.bf16.msra.mxu0 0
  %1854 = vmatprep.mubr.bf16.mxu0 0
  %1855 = vmatmul.mubr.bf16.gmra.mrb[0].mxu0 %v1820
  %v1856 = vpop.f32.mrb[0].mxu0
  %v1857 = vadd.f32 0.0, %v1856
  %v1858 = vpop.f32.mrb[0].mxu0
  %v1859 = vpop.f32.mrb[0].mxu0
  %v1860 = vadd.f32 0.0, %v1859
  %v1861 = vpop.f32.mrb[0].mxu0
  %1862 = vdwg.mxu0
  %v1863 = vadd.f32 %v1813, %v1857
  %v1864 = vadd.f32 %v1814, %v1860
  %v1865 = vxor.u32 %v1863, 2147483648
  %v1866 = vxor.u32 %v1864, 2147483648
  %v1867 = vmul.f32 %v1865, 1.442695
  %v1868 = vpow.pop %v1867
  %v1869 = vmul.f32 %v1866, 1.442695
  %v1870 = vpow.pop %v1869
  %v1871 = vadd.f32 %v1868, 1.0
  %v1872 = vadd.f32 %v1870, 1.0
  %v1873 = vrcp.pop %v1871
  %v1874 = vmul.f32 1.0, %v1873
  %v1875 = vrcp.pop %v1872
  %v1876 = vmul.f32 1.0, %v1875
  %v1877 = vtanh.pop %v1863
  %v1878 = vtanh.pop %v1864
  %v1879 = vmul.f32 %v1874, %v1797
  %v1880 = vmul.f32 %v1876, %v1798
  %1883 = vrot.lane.b32.xlu0 %v1877, 64
  %v1884 = vpop.permute.xlu0 %1883
  %1885 = vrot.lane.b32.xlu0 %v1878, 64
  %v1886 = vpop.permute.xlu0 %1885
  %v1889 = vmul.f32 %v1874, %v1884
  %v1890 = vmul.f32 %v1876, %v1886
  %1893 = vrot.lane.b32.xlu0 %v1889, 32
  %v1894 = vpop.permute.xlu0 %1893
  %1895 = vrot.lane.b32.xlu0 %v1890, 32
  %v1896 = vpop.permute.xlu0 %1895
  %v1899 = vadd.f32 %v1879, %v1894
  %v1900 = vadd.f32 %v1880, %v1896
  %v1901 = vtanh.pop %v1899
  %v1902 = vtanh.pop %v1900
  %1905 = vrot.lane.b32.xlu0 %v1901, 64
  %v1906 = vpop.permute.xlu0 %1905
  %1907 = vrot.lane.b32.xlu0 %v1902, 64
  %v1908 = vpop.permute.xlu0 %1907
  %v1911 = vmul.f32 %v1874, %v1906
  %v1912 = vmul.f32 %v1876, %v1908
  %s1913 = scalar_lea.vmem [#allocation3], 64
  %v1914 = vld [vmem:[%s1913] sm:$0xff]
  %v1915 = vunpack.c.l.bf16 %v1914
  %v1916 = vunpack.c.h.bf16 %v1914
  %v1917 = vpack.c.bf16 %v1912, %v1911
  %1919 = vrot.lane.b32.xlu0 %v1917, 32
  %v1920 = vpop.permute.xlu0 %1919
  %v1922 = vsel %vm125, %v1920, 0
  %1924 = vmatprep.subr.bf16.mxu0 0
  %1925 = vmatpush1.bf16.msra.mxu0 %v1093
  %1926 = vmatprep.subr.bf16.mxu0 0
  %1927 = vmatpush1.bf16.msra.mxu0 %v1094
  %1928 = vmatprep.subr.bf16.mxu0 0
  %1929 = vmatpush1.bf16.msra.mxu0 0
  %1930 = vmatprep.subr.bf16.mxu0 0
  %1931 = vmatpush1.bf16.msra.mxu0 0
  %1932 = vmatprep.subr.bf16.mxu0 0
  %1933 = vmatpush1.bf16.msra.mxu0 0
  %1934 = vmatprep.subr.bf16.mxu0 0
  %1935 = vmatpush1.bf16.msra.mxu0 0
  %1936 = vmatprep.subr.bf16.mxu0 0
  %1937 = vmatpush1.bf16.msra.mxu0 0
  %1938 = vmatprep.subr.bf16.mxu0 0
  %1939 = vmatpush1.bf16.msra.mxu0 0
  %1940 = vmatprep.subr.bf16.mxu0 0
  %1941 = vmatpush1.bf16.msra.mxu0 0
  %1942 = vmatprep.subr.bf16.mxu0 0
  %1943 = vmatpush1.bf16.msra.mxu0 0
  %1944 = vmatprep.subr.bf16.mxu0 0
  %1945 = vmatpush1.bf16.msra.mxu0 0
  %1946 = vmatprep.subr.bf16.mxu0 0
  %1947 = vmatpush1.bf16.msra.mxu0 0
  %1948 = vmatprep.subr.bf16.mxu0 0
  %1949 = vmatpush1.bf16.msra.mxu0 0
  %1950 = vmatprep.subr.bf16.mxu0 0
  %1951 = vmatpush1.bf16.msra.mxu0 0
  %1952 = vmatprep.subr.bf16.mxu0 0
  %1953 = vmatpush1.bf16.msra.mxu0 0
  %1954 = vmatprep.subr.bf16.mxu0 0
  %1955 = vmatpush1.bf16.msra.mxu0 0
  %1956 = vmatprep.mubr.bf16.mxu0 0
  %1957 = vmatmul.mubr.bf16.gmra.mrb[0].mxu0 %v1922
  %v1958 = vpop.f32.mrb[0].mxu0
  %v1959 = vadd.f32 0.0, %v1958
  %v1960 = vpop.f32.mrb[0].mxu0
  %v1961 = vpop.f32.mrb[0].mxu0
  %v1962 = vadd.f32 0.0, %v1961
  %v1963 = vpop.f32.mrb[0].mxu0
  %1964 = vdwg.mxu0
  %v1965 = vadd.f32 %v1915, %v1959
  %v1966 = vadd.f32 %v1916, %v1962
  %v1967 = vxor.u32 %v1965, 2147483648
  %v1968 = vxor.u32 %v1966, 2147483648
  %v1969 = vmul.f32 %v1967, 1.442695
  %v1970 = vpow.pop %v1969
  %v1971 = vmul.f32 %v1968, 1.442695
  %v1972 = vpow.pop %v1971
  %v1973 = vadd.f32 %v1970, 1.0
  %v1974 = vadd.f32 %v1972, 1.0
  %v1975 = vrcp.pop %v1973
  %v1976 = vmul.f32 1.0, %v1975
  %v1977 = vrcp.pop %v1974
  %v1978 = vmul.f32 1.0, %v1977
  %v1979 = vtanh.pop %v1965
  %v1980 = vtanh.pop %v1966
  %v1981 = vmul.f32 %v1976, %v1899
  %v1982 = vmul.f32 %v1978, %v1900
  %1985 = vrot.lane.b32.xlu0 %v1979, 64
  %v1986 = vpop.permute.xlu0 %1985
  %1987 = vrot.lane.b32.xlu0 %v1980, 64
  %v1988 = vpop.permute.xlu0 %1987
  %v1991 = vmul.f32 %v1976, %v1986
  %v1992 = vmul.f32 %v1978, %v1988
  %1995 = vrot.lane.b32.xlu0 %v1991, 32
  %v1996 = vpop.permute.xlu0 %1995
  %1997 = vrot.lane.b32.xlu0 %v1992, 32
  %v1998 = vpop.permute.xlu0 %1997
  %v2001 = vadd.f32 %v1981, %v1996
  %v2002 = vadd.f32 %v1982, %v1998
  %v2003 = vtanh.pop %v2001
  %v2004 = vtanh.pop %v2002
  %2007 = vrot.lane.b32.xlu0 %v2003, 64
  %v2008 = vpop.permute.xlu0 %2007
  %2009 = vrot.lane.b32.xlu0 %v2004, 64
  %v2010 = vpop.permute.xlu0 %2009
  %v2013 = vmul.f32 %v1976, %v2008
  %v2014 = vmul.f32 %v1978, %v2010
  %s2015 = scalar_lea.vmem [#allocation3], 72
  %v2016 = vld [vmem:[%s2015] sm:$0xff]
  %v2017 = vunpack.c.l.bf16 %v2016
  %v2018 = vunpack.c.h.bf16 %v2016
  %v2019 = vpack.c.bf16 %v2014, %v2013
  %2021 = vrot.lane.b32.xlu0 %v2019, 32
  %v2022 = vpop.permute.xlu0 %2021
  %v2024 = vsel %vm125, %v2022, 0
  %2026 = vmatprep.subr.bf16.mxu0 0
  %2027 = vmatpush1.bf16.msra.mxu0 %v1093
  %2028 = vmatprep.subr.bf16.mxu0 0
  %2029 = vmatpush1.bf16.msra.mxu0 %v1094
  %2030 = vmatprep.subr.bf16.mxu0 0
  %2031 = vmatpush1.bf16.msra.mxu0 0
  %2032 = vmatprep.subr.bf16.mxu0 0
  %2033 = vmatpush1.bf16.msra.mxu0 0
  %2034 = vmatprep.subr.bf16.mxu0 0
  %2035 = vmatpush1.bf16.msra.mxu0 0
  %2036 = vmatprep.subr.bf16.mxu0 0
  %2037 = vmatpush1.bf16.msra.mxu0 0
  %2038 = vmatprep.subr.bf16.mxu0 0
  %2039 = vmatpush1.bf16.msra.mxu0 0
  %2040 = vmatprep.subr.bf16.mxu0 0
  %2041 = vmatpush1.bf16.msra.mxu0 0
  %2042 = vmatprep.subr.bf16.mxu0 0
  %2043 = vmatpush1.bf16.msra.mxu0 0
  %2044 = vmatprep.subr.bf16.mxu0 0
  %2045 = vmatpush1.bf16.msra.mxu0 0
  %2046 = vmatprep.subr.bf16.mxu0 0
  %2047 = vmatpush1.bf16.msra.mxu0 0
  %2048 = vmatprep.subr.bf16.mxu0 0
  %2049 = vmatpush1.bf16.msra.mxu0 0
  %2050 = vmatprep.subr.bf16.mxu0 0
  %2051 = vmatpush1.bf16.msra.mxu0 0
  %2052 = vmatprep.subr.bf16.mxu0 0
  %2053 = vmatpush1.bf16.msra.mxu0 0
  %2054 = vmatprep.subr.bf16.mxu0 0
  %2055 = vmatpush1.bf16.msra.mxu0 0
  %2056 = vmatprep.subr.bf16.mxu0 0
  %2057 = vmatpush1.bf16.msra.mxu0 0
  %2058 = vmatprep.mubr.bf16.mxu0 0
  %2059 = vmatmul.mubr.bf16.gmra.mrb[0].mxu0 %v2024
  %v2060 = vpop.f32.mrb[0].mxu0
  %v2061 = vadd.f32 0.0, %v2060
  %v2062 = vpop.f32.mrb[0].mxu0
  %v2063 = vpop.f32.mrb[0].mxu0
  %v2064 = vadd.f32 0.0, %v2063
  %v2065 = vpop.f32.mrb[0].mxu0
  %2066 = vdwg.mxu0
  %v2067 = vadd.f32 %v2017, %v2061
  %v2068 = vadd.f32 %v2018, %v2064
  %v2069 = vxor.u32 %v2067, 2147483648
  %v2070 = vxor.u32 %v2068, 2147483648
  %v2071 = vmul.f32 %v2069, 1.442695
  %v2072 = vpow.pop %v2071
  %v2073 = vmul.f32 %v2070, 1.442695
  %v2074 = vpow.pop %v2073
  %v2075 = vadd.f32 %v2072, 1.0
  %v2076 = vadd.f32 %v2074, 1.0
  %v2077 = vrcp.pop %v2075
  %v2078 = vmul.f32 1.0, %v2077
  %v2079 = vrcp.pop %v2076
  %v2080 = vmul.f32 1.0, %v2079
  %v2081 = vtanh.pop %v2067
  %v2082 = vtanh.pop %v2068
  %v2083 = vmul.f32 %v2078, %v2001
  %v2084 = vmul.f32 %v2080, %v2002
  %2087 = vrot.lane.b32.xlu0 %v2081, 64
  %v2088 = vpop.permute.xlu0 %2087
  %2089 = vrot.lane.b32.xlu0 %v2082, 64
  %v2090 = vpop.permute.xlu0 %2089
  %v2093 = vmul.f32 %v2078, %v2088
  %v2094 = vmul.f32 %v2080, %v2090
  %2097 = vrot.lane.b32.xlu0 %v2093, 32
  %v2098 = vpop.permute.xlu0 %2097
  %2099 = vrot.lane.b32.xlu0 %v2094, 32
  %v2100 = vpop.permute.xlu0 %2099
  %v2103 = vadd.f32 %v2083, %v2098
  %v2104 = vadd.f32 %v2084, %v2100
  %v2105 = vtanh.pop %v2103
  %v2106 = vtanh.pop %v2104
  %2109 = vrot.lane.b32.xlu0 %v2105, 64
  %v2110 = vpop.permute.xlu0 %2109
  %2111 = vrot.lane.b32.xlu0 %v2106, 64
  %v2112 = vpop.permute.xlu0 %2111
  %v2115 = vmul.f32 %v2078, %v2110
  %v2116 = vmul.f32 %v2080, %v2112
  %s2117 = scalar_lea.vmem [#allocation3], 80
  %v2118 = vld [vmem:[%s2117] sm:$0xff]
  %v2119 = vunpack.c.l.bf16 %v2118
  %v2120 = vunpack.c.h.bf16 %v2118
  %v2121 = vpack.c.bf16 %v2116, %v2115
  %2123 = vrot.lane.b32.xlu0 %v2121, 32
  %v2124 = vpop.permute.xlu0 %2123
  %v2126 = vsel %vm125, %v2124, 0
  %2128 = vmatprep.subr.bf16.mxu0 0
  %2129 = vmatpush1.bf16.msra.mxu0 %v1093
  %2130 = vmatprep.subr.bf16.mxu0 0
  %2131 = vmatpush1.bf16.msra.mxu0 %v1094
  %2132 = vmatprep.subr.bf16.mxu0 0
  %2133 = vmatpush1.bf16.msra.mxu0 0
  %2134 = vmatprep.subr.bf16.mxu0 0
  %2135 = vmatpush1.bf16.msra.mxu0 0
  %2136 = vmatprep.subr.bf16.mxu0 0
  %2137 = vmatpush1.bf16.msra.mxu0 0
  %2138 = vmatprep.subr.bf16.mxu0 0
  %2139 = vmatpush1.bf16.msra.mxu0 0
  %2140 = vmatprep.subr.bf16.mxu0 0
  %2141 = vmatpush1.bf16.msra.mxu0 0
  %2142 = vmatprep.subr.bf16.mxu0 0
  %2143 = vmatpush1.bf16.msra.mxu0 0
  %2144 = vmatprep.subr.bf16.mxu0 0
  %2145 = vmatpush1.bf16.msra.mxu0 0
  %2146 = vmatprep.subr.bf16.mxu0 0
  %2147 = vmatpush1.bf16.msra.mxu0 0
  %2148 = vmatprep.subr.bf16.mxu0 0
  %2149 = vmatpush1.bf16.msra.mxu0 0
  %2150 = vmatprep.subr.bf16.mxu0 0
  %2151 = vmatpush1.bf16.msra.mxu0 0
  %2152 = vmatprep.subr.bf16.mxu0 0
  %2153 = vmatpush1.bf16.msra.mxu0 0
  %2154 = vmatprep.subr.bf16.mxu0 0
  %2155 = vmatpush1.bf16.msra.mxu0 0
  %2156 = vmatprep.subr.bf16.mxu0 0
  %2157 = vmatpush1.bf16.msra.mxu0 0
  %2158 = vmatprep.subr.bf16.mxu0 0
  %2159 = vmatpush1.bf16.msra.mxu0 0
  %2160 = vmatprep.mubr.bf16.mxu0 0
  %2161 = vmatmul.mubr.bf16.gmra.mrb[0].mxu0 %v2126
  %v2162 = vpop.f32.mrb[0].mxu0
  %v2163 = vadd.f32 0.0, %v2162
  %v2164 = vpop.f32.mrb[0].mxu0
  %v2165 = vpop.f32.mrb[0].mxu0
  %v2166 = vadd.f32 0.0, %v2165
  %v2167 = vpop.f32.mrb[0].mxu0
  %2168 = vdwg.mxu0
  %v2169 = vadd.f32 %v2119, %v2163
  %v2170 = vadd.f32 %v2120, %v2166
  %v2171 = vxor.u32 %v2169, 2147483648
  %v2172 = vxor.u32 %v2170, 2147483648
  %v2173 = vmul.f32 %v2171, 1.442695
  %v2174 = vpow.pop %v2173
  %v2175 = vmul.f32 %v2172, 1.442695
  %v2176 = vpow.pop %v2175
  %v2177 = vadd.f32 %v2174, 1.0
  %v2178 = vadd.f32 %v2176, 1.0
  %v2179 = vrcp.pop %v2177
  %v2180 = vmul.f32 1.0, %v2179
  %v2181 = vrcp.pop %v2178
  %v2182 = vmul.f32 1.0, %v2181
  %v2183 = vtanh.pop %v2169
  %v2184 = vtanh.pop %v2170
  %v2185 = vmul.f32 %v2180, %v2103
  %v2186 = vmul.f32 %v2182, %v2104
  %2189 = vrot.lane.b32.xlu0 %v2183, 64
  %v2190 = vpop.permute.xlu0 %2189
  %2191 = vrot.lane.b32.xlu0 %v2184, 64
  %v2192 = vpop.permute.xlu0 %2191
  %v2195 = vmul.f32 %v2180, %v2190
  %v2196 = vmul.f32 %v2182, %v2192
  %2199 = vrot.lane.b32.xlu0 %v2195, 32
  %v2200 = vpop.permute.xlu0 %2199
  %2201 = vrot.lane.b32.xlu0 %v2196, 32
  %v2202 = vpop.permute.xlu0 %2201
  %v2205 = vadd.f32 %v2185, %v2200
  %v2206 = vadd.f32 %v2186, %v2202
  %v2207 = vtanh.pop %v2205
  %v2208 = vtanh.pop %v2206
  %2211 = vrot.lane.b32.xlu0 %v2207, 64
  %v2212 = vpop.permute.xlu0 %2211
  %2213 = vrot.lane.b32.xlu0 %v2208, 64
  %v2214 = vpop.permute.xlu0 %2213
  %v2217 = vmul.f32 %v2180, %v2212
  %v2218 = vmul.f32 %v2182, %v2214
  %s2219 = scalar_lea.vmem [#allocation3], 88
  %v2220 = vld [vmem:[%s2219] sm:$0xff]
  %v2221 = vunpack.c.l.bf16 %v2220
  %v2222 = vunpack.c.h.bf16 %v2220
  %v2223 = vpack.c.bf16 %v2218, %v2217
  %2225 = vrot.lane.b32.xlu0 %v2223, 32
  %v2226 = vpop.permute.xlu0 %2225
  %v2228 = vsel %vm125, %v2226, 0
  %2230 = vmatprep.subr.bf16.mxu0 0
  %2231 = vmatpush1.bf16.msra.mxu0 %v1093
  %2232 = vmatprep.subr.bf16.mxu0 0
  %2233 = vmatpush1.bf16.msra.mxu0 %v1094
  %2234 = vmatprep.subr.bf16.mxu0 0
  %2235 = vmatpush1.bf16.msra.mxu0 0
  %2236 = vmatprep.subr.bf16.mxu0 0
  %2237 = vmatpush1.bf16.msra.mxu0 0
  %2238 = vmatprep.subr.bf16.mxu0 0
  %2239 = vmatpush1.bf16.msra.mxu0 0
  %2240 = vmatprep.subr.bf16.mxu0 0
  %2241 = vmatpush1.bf16.msra.mxu0 0
  %2242 = vmatprep.subr.bf16.mxu0 0
  %2243 = vmatpush1.bf16.msra.mxu0 0
  %2244 = vmatprep.subr.bf16.mxu0 0
  %2245 = vmatpush1.bf16.msra.mxu0 0
  %2246 = vmatprep.subr.bf16.mxu0 0
  %2247 = vmatpush1.bf16.msra.mxu0 0
  %2248 = vmatprep.subr.bf16.mxu0 0
  %2249 = vmatpush1.bf16.msra.mxu0 0
  %2250 = vmatprep.subr.bf16.mxu0 0
  %2251 = vmatpush1.bf16.msra.mxu0 0
  %2252 = vmatprep.subr.bf16.mxu0 0
  %2253 = vmatpush1.bf16.msra.mxu0 0
  %2254 = vmatprep.subr.bf16.mxu0 0
  %2255 = vmatpush1.bf16.msra.mxu0 0
  %2256 = vmatprep.subr.bf16.mxu0 0
  %2257 = vmatpush1.bf16.msra.mxu0 0
  %2258 = vmatprep.subr.bf16.mxu0 0
  %2259 = vmatpush1.bf16.msra.mxu0 0
  %2260 = vmatprep.subr.bf16.mxu0 0
  %2261 = vmatpush1.bf16.msra.mxu0 0
  %2262 = vmatprep.mubr.bf16.mxu0 0
  %2263 = vmatmul.mubr.bf16.gmra.mrb[0].mxu0 %v2228
  %v2264 = vpop.f32.mrb[0].mxu0
  %v2265 = vadd.f32 0.0, %v2264
  %v2266 = vpop.f32.mrb[0].mxu0
  %v2267 = vpop.f32.mrb[0].mxu0
  %v2268 = vadd.f32 0.0, %v2267
  %v2269 = vpop.f32.mrb[0].mxu0
  %2270 = vdwg.mxu0
  %v2271 = vadd.f32 %v2221, %v2265
  %v2272 = vadd.f32 %v2222, %v2268
  %v2273 = vxor.u32 %v2271, 2147483648
  %v2274 = vxor.u32 %v2272, 2147483648
  %v2275 = vmul.f32 %v2273, 1.442695
  %v2276 = vpow.pop %v2275
  %v2277 = vmul.f32 %v2274, 1.442695
  %v2278 = vpow.pop %v2277
  %v2279 = vadd.f32 %v2276, 1.0
  %v2280 = vadd.f32 %v2278, 1.0
  %v2281 = vrcp.pop %v2279
  %v2282 = vmul.f32 1.0, %v2281
  %v2283 = vrcp.pop %v2280
  %v2284 = vmul.f32 1.0, %v2283
  %v2285 = vtanh.pop %v2271
  %v2286 = vtanh.pop %v2272
  %v2287 = vmul.f32 %v2282, %v2205
  %v2288 = vmul.f32 %v2284, %v2206
  %2291 = vrot.lane.b32.xlu0 %v2285, 64
  %v2292 = vpop.permute.xlu0 %2291
  %2293 = vrot.lane.b32.xlu0 %v2286, 64
  %v2294 = vpop.permute.xlu0 %2293
  %v2297 = vmul.f32 %v2282, %v2292
  %v2298 = vmul.f32 %v2284, %v2294
  %2301 = vrot.lane.b32.xlu0 %v2297, 32
  %v2302 = vpop.permute.xlu0 %2301
  %2303 = vrot.lane.b32.xlu0 %v2298, 32
  %v2304 = vpop.permute.xlu0 %2303
  %v2307 = vadd.f32 %v2287, %v2302
  %v2308 = vadd.f32 %v2288, %v2304
  %v2309 = vtanh.pop %v2307
  %v2310 = vtanh.pop %v2308
  %2313 = vrot.lane.b32.xlu0 %v2309, 64
  %v2314 = vpop.permute.xlu0 %2313
  %2315 = vrot.lane.b32.xlu0 %v2310, 64
  %v2316 = vpop.permute.xlu0 %2315
  %v2319 = vmul.f32 %v2282, %v2314
  %v2320 = vmul.f32 %v2284, %v2316
  %s2321 = scalar_lea.vmem [#allocation3], 96
  %v2322 = vld [vmem:[%s2321] sm:$0xff]
  %v2323 = vunpack.c.l.bf16 %v2322
  %v2324 = vunpack.c.h.bf16 %v2322
  %v2325 = vpack.c.bf16 %v2320, %v2319
  %2327 = vrot.lane.b32.xlu0 %v2325, 32
  %v2328 = vpop.permute.xlu0 %2327
  %v2330 = vsel %vm125, %v2328, 0
  %2332 = vmatprep.subr.bf16.mxu0 0
  %2333 = vmatpush1.bf16.msra.mxu0 %v1093
  %2334 = vmatprep.subr.bf16.mxu0 0
  %2335 = vmatpush1.bf16.msra.mxu0 %v1094
  %2336 = vmatprep.subr.bf16.mxu0 0
  %2337 = vmatpush1.bf16.msra.mxu0 0
  %2338 = vmatprep.subr.bf16.mxu0 0
  %2339 = vmatpush1.bf16.msra.mxu0 0
  %2340 = vmatprep.subr.bf16.mxu0 0
  %2341 = vmatpush1.bf16.msra.mxu0 0
  %2342 = vmatprep.subr.bf16.mxu0 0
  %2343 = vmatpush1.bf16.msra.mxu0 0
  %2344 = vmatprep.subr.bf16.mxu0 0
  %2345 = vmatpush1.bf16.msra.mxu0 0
  %2346 = vmatprep.subr.bf16.mxu0 0
  %2347 = vmatpush1.bf16.msra.mxu0 0
  %2348 = vmatprep.subr.bf16.mxu0 0
  %2349 = vmatpush1.bf16.msra.mxu0 0
  %2350 = vmatprep.subr.bf16.mxu0 0
  %2351 = vmatpush1.bf16.msra.mxu0 0
  %2352 = vmatprep.subr.bf16.mxu0 0
  %2353 = vmatpush1.bf16.msra.mxu0 0
  %2354 = vmatprep.subr.bf16.mxu0 0
  %2355 = vmatpush1.bf16.msra.mxu0 0
  %2356 = vmatprep.subr.bf16.mxu0 0
  %2357 = vmatpush1.bf16.msra.mxu0 0
  %2358 = vmatprep.subr.bf16.mxu0 0
  %2359 = vmatpush1.bf16.msra.mxu0 0
  %2360 = vmatprep.subr.bf16.mxu0 0
  %2361 = vmatpush1.bf16.msra.mxu0 0
  %2362 = vmatprep.subr.bf16.mxu0 0
  %2363 = vmatpush1.bf16.msra.mxu0 0
  %2364 = vmatprep.mubr.bf16.mxu0 0
  %2365 = vmatmul.mubr.bf16.gmra.mrb[0].mxu0 %v2330
  %v2366 = vpop.f32.mrb[0].mxu0
  %v2367 = vadd.f32 0.0, %v2366
  %v2368 = vpop.f32.mrb[0].mxu0
  %v2369 = vpop.f32.mrb[0].mxu0
  %v2370 = vadd.f32 0.0, %v2369
  %v2371 = vpop.f32.mrb[0].mxu0
  %2372 = vdwg.mxu0
  %v2373 = vadd.f32 %v2323, %v2367
  %v2374 = vadd.f32 %v2324, %v2370
  %v2375 = vxor.u32 %v2373, 2147483648
  %v2376 = vxor.u32 %v2374, 2147483648
  %v2377 = vmul.f32 %v2375, 1.442695
  %v2378 = vpow.pop %v2377
  %v2379 = vmul.f32 %v2376, 1.442695
  %v2380 = vpow.pop %v2379
  %v2381 = vadd.f32 %v2378, 1.0
  %v2382 = vadd.f32 %v2380, 1.0
  %v2383 = vrcp.pop %v2381
  %v2384 = vmul.f32 1.0, %v2383
  %v2385 = vrcp.pop %v2382
  %v2386 = vmul.f32 1.0, %v2385
  %v2387 = vtanh.pop %v2373
  %v2388 = vtanh.pop %v2374
  %v2389 = vmul.f32 %v2384, %v2307
  %v2390 = vmul.f32 %v2386, %v2308
  %2393 = vrot.lane.b32.xlu0 %v2387, 64
  %v2394 = vpop.permute.xlu0 %2393
  %2395 = vrot.lane.b32.xlu0 %v2388, 64
  %v2396 = vpop.permute.xlu0 %2395
  %v2399 = vmul.f32 %v2384, %v2394
  %v2400 = vmul.f32 %v2386, %v2396
  %2403 = vrot.lane.b32.xlu0 %v2399, 32
  %v2404 = vpop.permute.xlu0 %2403
  %2405 = vrot.lane.b32.xlu0 %v2400, 32
  %v2406 = vpop.permute.xlu0 %2405
  %v2409 = vadd.f32 %v2389, %v2404
  %v2410 = vadd.f32 %v2390, %v2406
  %v2411 = vtanh.pop %v2409
  %v2412 = vtanh.pop %v2410
  %2415 = vrot.lane.b32.xlu0 %v2411, 64
  %v2416 = vpop.permute.xlu0 %2415
  %2417 = vrot.lane.b32.xlu0 %v2412, 64
  %v2418 = vpop.permute.xlu0 %2417
  %v2421 = vmul.f32 %v2384, %v2416
  %v2422 = vmul.f32 %v2386, %v2418
  %s2423 = scalar_lea.vmem [#allocation3], 104
  %v2424 = vld [vmem:[%s2423] sm:$0xff]
  %v2425 = vunpack.c.l.bf16 %v2424
  %v2426 = vunpack.c.h.bf16 %v2424
  %v2427 = vpack.c.bf16 %v2422, %v2421
  %2429 = vrot.lane.b32.xlu0 %v2427, 32
  %v2430 = vpop.permute.xlu0 %2429
  %v2432 = vsel %vm125, %v2430, 0
  %2434 = vmatprep.subr.bf16.mxu0 0
  %2435 = vmatpush1.bf16.msra.mxu0 %v1093
  %2436 = vmatprep.subr.bf16.mxu0 0
  %2437 = vmatpush1.bf16.msra.mxu0 %v1094
  %2438 = vmatprep.subr.bf16.mxu0 0
  %2439 = vmatpush1.bf16.msra.mxu0 0
  %2440 = vmatprep.subr.bf16.mxu0 0
  %2441 = vmatpush1.bf16.msra.mxu0 0
  %2442 = vmatprep.subr.bf16.mxu0 0
  %2443 = vmatpush1.bf16.msra.mxu0 0
  %2444 = vmatprep.subr.bf16.mxu0 0
  %2445 = vmatpush1.bf16.msra.mxu0 0
  %2446 = vmatprep.subr.bf16.mxu0 0
  %2447 = vmatpush1.bf16.msra.mxu0 0
  %2448 = vmatprep.subr.bf16.mxu0 0
  %2449 = vmatpush1.bf16.msra.mxu0 0
  %2450 = vmatprep.subr.bf16.mxu0 0
  %2451 = vmatpush1.bf16.msra.mxu0 0
  %2452 = vmatprep.subr.bf16.mxu0 0
  %2453 = vmatpush1.bf16.msra.mxu0 0
  %2454 = vmatprep.subr.bf16.mxu0 0
  %2455 = vmatpush1.bf16.msra.mxu0 0
  %2456 = vmatprep.subr.bf16.mxu0 0
  %2457 = vmatpush1.bf16.msra.mxu0 0
  %2458 = vmatprep.subr.bf16.mxu0 0
  %2459 = vmatpush1.bf16.msra.mxu0 0
  %2460 = vmatprep.subr.bf16.mxu0 0
  %2461 = vmatpush1.bf16.msra.mxu0 0
  %2462 = vmatprep.subr.bf16.mxu0 0
  %2463 = vmatpush1.bf16.msra.mxu0 0
  %2464 = vmatprep.subr.bf16.mxu0 0
  %2465 = vmatpush1.bf16.msra.mxu0 0
  %2466 = vmatprep.mubr.bf16.mxu0 0
  %2467 = vmatmul.mubr.bf16.gmra.mrb[0].mxu0 %v2432
  %v2468 = vpop.f32.mrb[0].mxu0
  %v2469 = vadd.f32 0.0, %v2468
  %v2470 = vpop.f32.mrb[0].mxu0
  %v2471 = vpop.f32.mrb[0].mxu0
  %v2472 = vadd.f32 0.0, %v2471
  %v2473 = vpop.f32.mrb[0].mxu0
  %2474 = vdwg.mxu0
  %v2475 = vadd.f32 %v2425, %v2469
  %v2476 = vadd.f32 %v2426, %v2472
  %v2477 = vxor.u32 %v2475, 2147483648
  %v2478 = vxor.u32 %v2476, 2147483648
  %v2479 = vmul.f32 %v2477, 1.442695
  %v2480 = vpow.pop %v2479
  %v2481 = vmul.f32 %v2478, 1.442695
  %v2482 = vpow.pop %v2481
  %v2483 = vadd.f32 %v2480, 1.0
  %v2484 = vadd.f32 %v2482, 1.0
  %v2485 = vrcp.pop %v2483
  %v2486 = vmul.f32 1.0, %v2485
  %v2487 = vrcp.pop %v2484
  %v2488 = vmul.f32 1.0, %v2487
  %v2489 = vtanh.pop %v2475
  %v2490 = vtanh.pop %v2476
  %v2491 = vmul.f32 %v2486, %v2409
  %v2492 = vmul.f32 %v2488, %v2410
  %2495 = vrot.lane.b32.xlu0 %v2489, 64
  %v2496 = vpop.permute.xlu0 %2495
  %2497 = vrot.lane.b32.xlu0 %v2490, 64
  %v2498 = vpop.permute.xlu0 %2497
  %v2501 = vmul.f32 %v2486, %v2496
  %v2502 = vmul.f32 %v2488, %v2498
  %2505 = vrot.lane.b32.xlu0 %v2501, 32
  %v2506 = vpop.permute.xlu0 %2505
  %2507 = vrot.lane.b32.xlu0 %v2502, 32
  %v2508 = vpop.permute.xlu0 %2507
  %v2511 = vadd.f32 %v2491, %v2506
  %v2512 = vadd.f32 %v2492, %v2508
  %v2513 = vtanh.pop %v2511
  %v2514 = vtanh.pop %v2512
  %2517 = vrot.lane.b32.xlu0 %v2513, 64
  %v2518 = vpop.permute.xlu0 %2517
  %2519 = vrot.lane.b32.xlu0 %v2514, 64
  %v2520 = vpop.permute.xlu0 %2519
  %v2523 = vmul.f32 %v2486, %v2518
  %v2524 = vmul.f32 %v2488, %v2520
  %s2525 = scalar_lea.vmem [#allocation3], 112
  %v2526 = vld [vmem:[%s2525] sm:$0xff]
  %v2527 = vunpack.c.l.bf16 %v2526
  %v2528 = vunpack.c.h.bf16 %v2526
  %v2529 = vpack.c.bf16 %v2524, %v2523
  %2531 = vrot.lane.b32.xlu0 %v2529, 32
  %v2532 = vpop.permute.xlu0 %2531
  %v2534 = vsel %vm125, %v2532, 0
  %2536 = vmatprep.subr.bf16.mxu0 0
  %2537 = vmatpush1.bf16.msra.mxu0 %v1093
  %2538 = vmatprep.subr.bf16.mxu0 0
  %2539 = vmatpush1.bf16.msra.mxu0 %v1094
  %2540 = vmatprep.subr.bf16.mxu0 0
  %2541 = vmatpush1.bf16.msra.mxu0 0
  %2542 = vmatprep.subr.bf16.mxu0 0
  %2543 = vmatpush1.bf16.msra.mxu0 0
  %2544 = vmatprep.subr.bf16.mxu0 0
  %2545 = vmatpush1.bf16.msra.mxu0 0
  %2546 = vmatprep.subr.bf16.mxu0 0
  %2547 = vmatpush1.bf16.msra.mxu0 0
  %2548 = vmatprep.subr.bf16.mxu0 0
  %2549 = vmatpush1.bf16.msra.mxu0 0
  %2550 = vmatprep.subr.bf16.mxu0 0
  %2551 = vmatpush1.bf16.msra.mxu0 0
  %2552 = vmatprep.subr.bf16.mxu0 0
  %2553 = vmatpush1.bf16.msra.mxu0 0
  %2554 = vmatprep.subr.bf16.mxu0 0
  %2555 = vmatpush1.bf16.msra.mxu0 0
  %2556 = vmatprep.subr.bf16.mxu0 0
  %2557 = vmatpush1.bf16.msra.mxu0 0
  %2558 = vmatprep.subr.bf16.mxu0 0
  %2559 = vmatpush1.bf16.msra.mxu0 0
  %2560 = vmatprep.subr.bf16.mxu0 0
  %2561 = vmatpush1.bf16.msra.mxu0 0
  %2562 = vmatprep.subr.bf16.mxu0 0
  %2563 = vmatpush1.bf16.msra.mxu0 0
  %2564 = vmatprep.subr.bf16.mxu0 0
  %2565 = vmatpush1.bf16.msra.mxu0 0
  %2566 = vmatprep.subr.bf16.mxu0 0
  %2567 = vmatpush1.bf16.msra.mxu0 0
  %2568 = vmatprep.mubr.bf16.mxu0 0
  %2569 = vmatmul.mubr.bf16.gmra.mrb[0].mxu0 %v2534
  %v2570 = vpop.f32.mrb[0].mxu0
  %v2571 = vadd.f32 0.0, %v2570
  %v2572 = vpop.f32.mrb[0].mxu0
  %v2573 = vpop.f32.mrb[0].mxu0
  %v2574 = vadd.f32 0.0, %v2573
  %v2575 = vpop.f32.mrb[0].mxu0
  %2576 = vdwg.mxu0
  %v2577 = vadd.f32 %v2527, %v2571
  %v2578 = vadd.f32 %v2528, %v2574
  %v2579 = vxor.u32 %v2577, 2147483648
  %v2580 = vxor.u32 %v2578, 2147483648
  %v2581 = vmul.f32 %v2579, 1.442695
  %v2582 = vpow.pop %v2581
  %v2583 = vmul.f32 %v2580, 1.442695
  %v2584 = vpow.pop %v2583
  %v2585 = vadd.f32 %v2582, 1.0
  %v2586 = vadd.f32 %v2584, 1.0
  %v2587 = vrcp.pop %v2585
  %v2588 = vmul.f32 1.0, %v2587
  %v2589 = vrcp.pop %v2586
  %v2590 = vmul.f32 1.0, %v2589
  %v2591 = vtanh.pop %v2577
  %v2592 = vtanh.pop %v2578
  %v2593 = vmul.f32 %v2588, %v2511
  %v2594 = vmul.f32 %v2590, %v2512
  %2597 = vrot.lane.b32.xlu0 %v2591, 64
  %v2598 = vpop.permute.xlu0 %2597
  %2599 = vrot.lane.b32.xlu0 %v2592, 64
  %v2600 = vpop.permute.xlu0 %2599
  %v2603 = vmul.f32 %v2588, %v2598
  %v2604 = vmul.f32 %v2590, %v2600
  %2607 = vrot.lane.b32.xlu0 %v2603, 32
  %v2608 = vpop.permute.xlu0 %2607
  %2609 = vrot.lane.b32.xlu0 %v2604, 32
  %v2610 = vpop.permute.xlu0 %2609
  %v2613 = vadd.f32 %v2593, %v2608
  %v2614 = vadd.f32 %v2594, %v2610
  %v2615 = vtanh.pop %v2613
  %v2616 = vtanh.pop %v2614
  %2619 = vrot.lane.b32.xlu0 %v2615, 64
  %v2620 = vpop.permute.xlu0 %2619
  %2621 = vrot.lane.b32.xlu0 %v2616, 64
  %v2622 = vpop.permute.xlu0 %2621
  %v2625 = vmul.f32 %v2588, %v2620
  %v2626 = vmul.f32 %v2590, %v2622
  %s2627 = scalar_lea.vmem [#allocation3], 120
  %v2628 = vld [vmem:[%s2627] sm:$0xff]
  %v2629 = vunpack.c.l.bf16 %v2628
  %v2630 = vunpack.c.h.bf16 %v2628
  %v2631 = vpack.c.bf16 %v2626, %v2625
  %2633 = vrot.lane.b32.xlu0 %v2631, 32
  %v2634 = vpop.permute.xlu0 %2633
  %v2636 = vsel %vm125, %v2634, 0
  %2638 = vmatprep.subr.bf16.mxu0 0
  %2639 = vmatpush1.bf16.msra.mxu0 %v1093
  %2640 = vmatprep.subr.bf16.mxu0 0
  %2641 = vmatpush1.bf16.msra.mxu0 %v1094
  %2642 = vmatprep.subr.bf16.mxu0 0
  %2643 = vmatpush1.bf16.msra.mxu0 0
  %2644 = vmatprep.subr.bf16.mxu0 0
  %2645 = vmatpush1.bf16.msra.mxu0 0
  %2646 = vmatprep.subr.bf16.mxu0 0
  %2647 = vmatpush1.bf16.msra.mxu0 0
  %2648 = vmatprep.subr.bf16.mxu0 0
  %2649 = vmatpush1.bf16.msra.mxu0 0
  %2650 = vmatprep.subr.bf16.mxu0 0
  %2651 = vmatpush1.bf16.msra.mxu0 0
  %2652 = vmatprep.subr.bf16.mxu0 0
  %2653 = vmatpush1.bf16.msra.mxu0 0
  %2654 = vmatprep.subr.bf16.mxu0 0
  %2655 = vmatpush1.bf16.msra.mxu0 0
  %2656 = vmatprep.subr.bf16.mxu0 0
  %2657 = vmatpush1.bf16.msra.mxu0 0
  %2658 = vmatprep.subr.bf16.mxu0 0
  %2659 = vmatpush1.bf16.msra.mxu0 0
  %2660 = vmatprep.subr.bf16.mxu0 0
  %2661 = vmatpush1.bf16.msra.mxu0 0
  %2662 = vmatprep.subr.bf16.mxu0 0
  %2663 = vmatpush1.bf16.msra.mxu0 0
  %2664 = vmatprep.subr.bf16.mxu0 0
  %2665 = vmatpush1.bf16.msra.mxu0 0
  %2666 = vmatprep.subr.bf16.mxu0 0
  %2667 = vmatpush1.bf16.msra.mxu0 0
  %2668 = vmatprep.subr.bf16.mxu0 0
  %2669 = vmatpush1.bf16.msra.mxu0 0
  %2670 = vmatprep.mubr.bf16.mxu0 0
  %2671 = vmatmul.mubr.bf16.gmra.mrb[0].mxu0 %v2636
  %v2672 = vpop.f32.mrb[0].mxu0
  %v2673 = vadd.f32 0.0, %v2672
  %v2674 = vpop.f32.mrb[0].mxu0
  %v2675 = vpop.f32.mrb[0].mxu0
  %v2676 = vadd.f32 0.0, %v2675
  %v2677 = vpop.f32.mrb[0].mxu0
  %2678 = vdwg.mxu0
  %v2679 = vadd.f32 %v2629, %v2673
  %v2680 = vadd.f32 %v2630, %v2676
  %v2681 = vxor.u32 %v2679, 2147483648
  %v2682 = vxor.u32 %v2680, 2147483648
  %v2683 = vmul.f32 %v2681, 1.442695
  %v2684 = vpow.pop %v2683
  %v2685 = vmul.f32 %v2682, 1.442695
  %v2686 = vpow.pop %v2685
  %v2687 = vadd.f32 %v2684, 1.0
  %v2688 = vadd.f32 %v2686, 1.0
  %v2689 = vrcp.pop %v2687
  %v2690 = vmul.f32 1.0, %v2689
  %v2691 = vrcp.pop %v2688
  %v2692 = vmul.f32 1.0, %v2691
  %v2693 = vtanh.pop %v2679
  %v2694 = vtanh.pop %v2680
  %v2695 = vmul.f32 %v2690, %v2613
  %v2696 = vmul.f32 %v2692, %v2614
  %2699 = vrot.lane.b32.xlu0 %v2693, 64
  %v2700 = vpop.permute.xlu0 %2699
  %2701 = vrot.lane.b32.xlu0 %v2694, 64
  %v2702 = vpop.permute.xlu0 %2701
  %v2705 = vmul.f32 %v2690, %v2700
  %v2706 = vmul.f32 %v2692, %v2702
  %2709 = vrot.lane.b32.xlu0 %v2705, 32
  %v2710 = vpop.permute.xlu0 %2709
  %2711 = vrot.lane.b32.xlu0 %v2706, 32
  %v2712 = vpop.permute.xlu0 %2711
  %v2715 = vadd.f32 %v2695, %v2710
  %v2716 = vadd.f32 %v2696, %v2712
  %v2717 = vtanh.pop %v2715
  %v2718 = vtanh.pop %v2716
  %2721 = vrot.lane.b32.xlu0 %v2717, 64
  %v2722 = vpop.permute.xlu0 %2721
  %2723 = vrot.lane.b32.xlu0 %v2718, 64
  %v2724 = vpop.permute.xlu0 %2723
  %v2727 = vmul.f32 %v2690, %v2722
  %v2728 = vmul.f32 %v2692, %v2724
  %s2729 = scalar_lea.vmem [#allocation3], 128
  %v2730 = vld [vmem:[%s2729] sm:$0xff]
  %v2731 = vunpack.c.l.bf16 %v2730
  %v2732 = vunpack.c.h.bf16 %v2730
  %v2733 = vpack.c.bf16 %v2728, %v2727
  %2735 = vrot.lane.b32.xlu0 %v2733, 32
  %v2736 = vpop.permute.xlu0 %2735
  %v2738 = vsel %vm125, %v2736, 0
  %2740 = vmatprep.subr.bf16.mxu0 0
  %2741 = vmatpush1.bf16.msra.mxu0 %v1093
  %2742 = vmatprep.subr.bf16.mxu0 0
  %2743 = vmatpush1.bf16.msra.mxu0 %v1094
  %2744 = vmatprep.subr.bf16.mxu0 0
  %2745 = vmatpush1.bf16.msra.mxu0 0
  %2746 = vmatprep.subr.bf16.mxu0 0
  %2747 = vmatpush1.bf16.msra.mxu0 0
  %2748 = vmatprep.subr.bf16.mxu0 0
  %2749 = vmatpush1.bf16.msra.mxu0 0
  %2750 = vmatprep.subr.bf16.mxu0 0
  %2751 = vmatpush1.bf16.msra.mxu0 0
  %2752 = vmatprep.subr.bf16.mxu0 0
  %2753 = vmatpush1.bf16.msra.mxu0 0
  %2754 = vmatprep.subr.bf16.mxu0 0
  %2755 = vmatpush1.bf16.msra.mxu0 0
  %2756 = vmatprep.subr.bf16.mxu0 0
  %2757 = vmatpush1.bf16.msra.mxu0 0
  %2758 = vmatprep.subr.bf16.mxu0 0
  %2759 = vmatpush1.bf16.msra.mxu0 0
  %2760 = vmatprep.subr.bf16.mxu0 0
  %2761 = vmatpush1.bf16.msra.mxu0 0
  %2762 = vmatprep.subr.bf16.mxu0 0
  %2763 = vmatpush1.bf16.msra.mxu0 0
  %2764 = vmatprep.subr.bf16.mxu0 0
  %2765 = vmatpush1.bf16.msra.mxu0 0
  %2766 = vmatprep.subr.bf16.mxu0 0
  %2767 = vmatpush1.bf16.msra.mxu0 0
  %2768 = vmatprep.subr.bf16.mxu0 0
  %2769 = vmatpush1.bf16.msra.mxu0 0
  %2770 = vmatprep.subr.bf16.mxu0 0
  %2771 = vmatpush1.bf16.msra.mxu0 0
  %2772 = vmatprep.mubr.bf16.mxu0 0
  %2773 = vmatmul.mubr.bf16.gmra.mrb[0].mxu0 %v2738
  %v2774 = vpop.f32.mrb[0].mxu0
  %v2775 = vadd.f32 0.0, %v2774
  %v2776 = vpop.f32.mrb[0].mxu0
  %v2777 = vpop.f32.mrb[0].mxu0
  %v2778 = vadd.f32 0.0, %v2777
  %v2779 = vpop.f32.mrb[0].mxu0
  %2780 = vdwg.mxu0
  %v2781 = vadd.f32 %v2731, %v2775
  %v2782 = vadd.f32 %v2732, %v2778
  %v2783 = vxor.u32 %v2781, 2147483648
  %v2784 = vxor.u32 %v2782, 2147483648
  %v2785 = vmul.f32 %v2783, 1.442695
  %v2786 = vpow.pop %v2785
  %v2787 = vmul.f32 %v2784, 1.442695
  %v2788 = vpow.pop %v2787
  %v2789 = vadd.f32 %v2786, 1.0
  %v2790 = vadd.f32 %v2788, 1.0
  %v2791 = vrcp.pop %v2789
  %v2792 = vmul.f32 1.0, %v2791
  %v2793 = vrcp.pop %v2790
  %v2794 = vmul.f32 1.0, %v2793
  %v2795 = vtanh.pop %v2781
  %v2796 = vtanh.pop %v2782
  %v2797 = vmul.f32 %v2792, %v2715
  %v2798 = vmul.f32 %v2794, %v2716
  %2801 = vrot.lane.b32.xlu0 %v2795, 64
  %v2802 = vpop.permute.xlu0 %2801
  %2803 = vrot.lane.b32.xlu0 %v2796, 64
  %v2804 = vpop.permute.xlu0 %2803
  %v2807 = vmul.f32 %v2792, %v2802
  %v2808 = vmul.f32 %v2794, %v2804
  %2811 = vrot.lane.b32.xlu0 %v2807, 32
  %v2812 = vpop.permute.xlu0 %2811
  %2813 = vrot.lane.b32.xlu0 %v2808, 32
  %v2814 = vpop.permute.xlu0 %2813
  %v2817 = vadd.f32 %v2797, %v2812
  %v2818 = vadd.f32 %v2798, %v2814
  %v2819 = vtanh.pop %v2817
  %v2820 = vtanh.pop %v2818
  %2823 = vrot.lane.b32.xlu0 %v2819, 64
  %v2824 = vpop.permute.xlu0 %2823
  %2825 = vrot.lane.b32.xlu0 %v2820, 64
  %v2826 = vpop.permute.xlu0 %2825
  %v2829 = vmul.f32 %v2792, %v2824
  %v2830 = vmul.f32 %v2794, %v2826
  %s2831 = scalar_lea.vmem [#allocation3], 136
  %v2832 = vld [vmem:[%s2831] sm:$0xff]
  %v2833 = vunpack.c.l.bf16 %v2832
  %v2834 = vunpack.c.h.bf16 %v2832
  %v2835 = vpack.c.bf16 %v2830, %v2829
  %2837 = vrot.lane.b32.xlu0 %v2835, 32
  %v2838 = vpop.permute.xlu0 %2837
  %v2840 = vsel %vm125, %v2838, 0
  %2842 = vmatprep.subr.bf16.mxu0 0
  %2843 = vmatpush1.bf16.msra.mxu0 %v1093
  %2844 = vmatprep.subr.bf16.mxu0 0
  %2845 = vmatpush1.bf16.msra.mxu0 %v1094
  %2846 = vmatprep.subr.bf16.mxu0 0
  %2847 = vmatpush1.bf16.msra.mxu0 0
  %2848 = vmatprep.subr.bf16.mxu0 0
  %2849 = vmatpush1.bf16.msra.mxu0 0
  %2850 = vmatprep.subr.bf16.mxu0 0
  %2851 = vmatpush1.bf16.msra.mxu0 0
  %2852 = vmatprep.subr.bf16.mxu0 0
  %2853 = vmatpush1.bf16.msra.mxu0 0
  %2854 = vmatprep.subr.bf16.mxu0 0
  %2855 = vmatpush1.bf16.msra.mxu0 0
  %2856 = vmatprep.subr.bf16.mxu0 0
  %2857 = vmatpush1.bf16.msra.mxu0 0
  %2858 = vmatprep.subr.bf16.mxu0 0
  %2859 = vmatpush1.bf16.msra.mxu0 0
  %2860 = vmatprep.subr.bf16.mxu0 0
  %2861 = vmatpush1.bf16.msra.mxu0 0
  %2862 = vmatprep.subr.bf16.mxu0 0
  %2863 = vmatpush1.bf16.msra.mxu0 0
  %2864 = vmatprep.subr.bf16.mxu0 0
  %2865 = vmatpush1.bf16.msra.mxu0 0
  %2866 = vmatprep.subr.bf16.mxu0 0
  %2867 = vmatpush1.bf16.msra.mxu0 0
  %2868 = vmatprep.subr.bf16.mxu0 0
  %2869 = vmatpush1.bf16.msra.mxu0 0
  %2870 = vmatprep.subr.bf16.mxu0 0
  %2871 = vmatpush1.bf16.msra.mxu0 0
  %2872 = vmatprep.subr.bf16.mxu0 0
  %2873 = vmatpush1.bf16.msra.mxu0 0
  %2874 = vmatprep.mubr.bf16.mxu0 0
  %2875 = vmatmul.mubr.bf16.gmra.mrb[0].mxu0 %v2840
  %v2876 = vpop.f32.mrb[0].mxu0
  %v2877 = vadd.f32 0.0, %v2876
  %v2878 = vpop.f32.mrb[0].mxu0
  %v2879 = vpop.f32.mrb[0].mxu0
  %v2880 = vadd.f32 0.0, %v2879
  %v2881 = vpop.f32.mrb[0].mxu0
  %2882 = vdwg.mxu0
  %v2883 = vadd.f32 %v2833, %v2877
  %v2884 = vadd.f32 %v2834, %v2880
  %v2885 = vxor.u32 %v2883, 2147483648
  %v2886 = vxor.u32 %v2884, 2147483648
  %v2887 = vmul.f32 %v2885, 1.442695
  %v2888 = vpow.pop %v2887
  %v2889 = vmul.f32 %v2886, 1.442695
  %v2890 = vpow.pop %v2889
  %v2891 = vadd.f32 %v2888, 1.0
  %v2892 = vadd.f32 %v2890, 1.0
  %v2893 = vrcp.pop %v2891
  %v2894 = vmul.f32 1.0, %v2893
  %v2895 = vrcp.pop %v2892
  %v2896 = vmul.f32 1.0, %v2895
  %v2897 = vtanh.pop %v2883
  %v2898 = vtanh.pop %v2884
  %v2899 = vmul.f32 %v2894, %v2817
  %v2900 = vmul.f32 %v2896, %v2818
  %2903 = vrot.lane.b32.xlu0 %v2897, 64
  %v2904 = vpop.permute.xlu0 %2903
  %2905 = vrot.lane.b32.xlu0 %v2898, 64
  %v2906 = vpop.permute.xlu0 %2905
  %v2909 = vmul.f32 %v2894, %v2904
  %v2910 = vmul.f32 %v2896, %v2906
  %2913 = vrot.lane.b32.xlu0 %v2909, 32
  %v2914 = vpop.permute.xlu0 %2913
  %2915 = vrot.lane.b32.xlu0 %v2910, 32
  %v2916 = vpop.permute.xlu0 %2915
  %v2919 = vadd.f32 %v2899, %v2914
  %v2920 = vadd.f32 %v2900, %v2916
  %v2921 = vtanh.pop %v2919
  %v2922 = vtanh.pop %v2920
  %2925 = vrot.lane.b32.xlu0 %v2921, 64
  %v2926 = vpop.permute.xlu0 %2925
  %2927 = vrot.lane.b32.xlu0 %v2922, 64
  %v2928 = vpop.permute.xlu0 %2927
  %v2931 = vmul.f32 %v2894, %v2926
  %v2932 = vmul.f32 %v2896, %v2928
  %s2933 = scalar_lea.vmem [#allocation3], 144
  %v2934 = vld [vmem:[%s2933] sm:$0xff]
  %v2935 = vunpack.c.l.bf16 %v2934
  %v2936 = vunpack.c.h.bf16 %v2934
  %v2937 = vpack.c.bf16 %v2932, %v2931
  %2939 = vrot.lane.b32.xlu0 %v2937, 32
  %v2940 = vpop.permute.xlu0 %2939
  %v2942 = vsel %vm125, %v2940, 0
  %2944 = vmatprep.subr.bf16.mxu0 0
  %2945 = vmatpush1.bf16.msra.mxu0 %v1093
  %2946 = vmatprep.subr.bf16.mxu0 0
  %2947 = vmatpush1.bf16.msra.mxu0 %v1094
  %2948 = vmatprep.subr.bf16.mxu0 0
  %2949 = vmatpush1.bf16.msra.mxu0 0
  %2950 = vmatprep.subr.bf16.mxu0 0
  %2951 = vmatpush1.bf16.msra.mxu0 0
  %2952 = vmatprep.subr.bf16.mxu0 0
  %2953 = vmatpush1.bf16.msra.mxu0 0
  %2954 = vmatprep.subr.bf16.mxu0 0
  %2955 = vmatpush1.bf16.msra.mxu0 0
  %2956 = vmatprep.subr.bf16.mxu0 0
  %2957 = vmatpush1.bf16.msra.mxu0 0
  %2958 = vmatprep.subr.bf16.mxu0 0
  %2959 = vmatpush1.bf16.msra.mxu0 0
  %2960 = vmatprep.subr.bf16.mxu0 0
  %2961 = vmatpush1.bf16.msra.mxu0 0
  %2962 = vmatprep.subr.bf16.mxu0 0
  %2963 = vmatpush1.bf16.msra.mxu0 0
  %2964 = vmatprep.subr.bf16.mxu0 0
  %2965 = vmatpush1.bf16.msra.mxu0 0
  %2966 = vmatprep.subr.bf16.mxu0 0
  %2967 = vmatpush1.bf16.msra.mxu0 0
  %2968 = vmatprep.subr.bf16.mxu0 0
  %2969 = vmatpush1.bf16.msra.mxu0 0
  %2970 = vmatprep.subr.bf16.mxu0 0
  %2971 = vmatpush1.bf16.msra.mxu0 0
  %2972 = vmatprep.subr.bf16.mxu0 0
  %2973 = vmatpush1.bf16.msra.mxu0 0
  %2974 = vmatprep.subr.bf16.mxu0 0
  %2975 = vmatpush1.bf16.msra.mxu0 0
  %2976 = vmatprep.mubr.bf16.mxu0 0
  %2977 = vmatmul.mubr.bf16.gmra.mrb[0].mxu0 %v2942
  %v2978 = vpop.f32.mrb[0].mxu0
  %v2979 = vadd.f32 0.0, %v2978
  %v2980 = vpop.f32.mrb[0].mxu0
  %v2981 = vpop.f32.mrb[0].mxu0
  %v2982 = vadd.f32 0.0, %v2981
  %v2983 = vpop.f32.mrb[0].mxu0
  %2984 = vdwg.mxu0
  %v2985 = vadd.f32 %v2935, %v2979
  %v2986 = vadd.f32 %v2936, %v2982
  %v2987 = vxor.u32 %v2985, 2147483648
  %v2988 = vxor.u32 %v2986, 2147483648
  %v2989 = vmul.f32 %v2987, 1.442695
  %v2990 = vpow.pop %v2989
  %v2991 = vmul.f32 %v2988, 1.442695
  %v2992 = vpow.pop %v2991
  %v2993 = vadd.f32 %v2990, 1.0
  %v2994 = vadd.f32 %v2992, 1.0
  %v2995 = vrcp.pop %v2993
  %v2996 = vmul.f32 1.0, %v2995
  %v2997 = vrcp.pop %v2994
  %v2998 = vmul.f32 1.0, %v2997
  %v2999 = vtanh.pop %v2985
  %v3000 = vtanh.pop %v2986
  %v3001 = vmul.f32 %v2996, %v2919
  %v3002 = vmul.f32 %v2998, %v2920
  %3005 = vrot.lane.b32.xlu0 %v2999, 64
  %v3006 = vpop.permute.xlu0 %3005
  %3007 = vrot.lane.b32.xlu0 %v3000, 64
  %v3008 = vpop.permute.xlu0 %3007
  %v3011 = vmul.f32 %v2996, %v3006
  %v3012 = vmul.f32 %v2998, %v3008
  %3015 = vrot.lane.b32.xlu0 %v3011, 32
  %v3016 = vpop.permute.xlu0 %3015
  %3017 = vrot.lane.b32.xlu0 %v3012, 32
  %v3018 = vpop.permute.xlu0 %3017
  %v3021 = vadd.f32 %v3001, %v3016
  %v3022 = vadd.f32 %v3002, %v3018
  %v3023 = vtanh.pop %v3021
  %v3024 = vtanh.pop %v3022
  %3027 = vrot.lane.b32.xlu0 %v3023, 64
  %v3028 = vpop.permute.xlu0 %3027
  %3029 = vrot.lane.b32.xlu0 %v3024, 64
  %v3030 = vpop.permute.xlu0 %3029
  %v3033 = vmul.f32 %v2996, %v3028
  %v3034 = vmul.f32 %v2998, %v3030
  %s3035 = scalar_lea.vmem [#allocation3], 152
  %v3036 = vld [vmem:[%s3035] sm:$0xff]
  %v3037 = vunpack.c.l.bf16 %v3036
  %v3038 = vunpack.c.h.bf16 %v3036
  %v3039 = vpack.c.bf16 %v3034, %v3033
  %3041 = vrot.lane.b32.xlu0 %v3039, 32
  %v3042 = vpop.permute.xlu0 %3041
  %v3044 = vsel %vm125, %v3042, 0
  %3046 = vmatprep.subr.bf16.mxu0 0
  %3047 = vmatpush1.bf16.msra.mxu0 %v1093
  %3048 = vmatprep.subr.bf16.mxu0 0
  %3049 = vmatpush1.bf16.msra.mxu0 %v1094
  %3050 = vmatprep.subr.bf16.mxu0 0
  %3051 = vmatpush1.bf16.msra.mxu0 0
  %3052 = vmatprep.subr.bf16.mxu0 0
  %3053 = vmatpush1.bf16.msra.mxu0 0
  %3054 = vmatprep.subr.bf16.mxu0 0
  %3055 = vmatpush1.bf16.msra.mxu0 0
  %3056 = vmatprep.subr.bf16.mxu0 0
  %3057 = vmatpush1.bf16.msra.mxu0 0
  %3058 = vmatprep.subr.bf16.mxu0 0
  %3059 = vmatpush1.bf16.msra.mxu0 0
  %3060 = vmatprep.subr.bf16.mxu0 0
  %3061 = vmatpush1.bf16.msra.mxu0 0
  %3062 = vmatprep.subr.bf16.mxu0 0
  %3063 = vmatpush1.bf16.msra.mxu0 0
  %3064 = vmatprep.subr.bf16.mxu0 0
  %3065 = vmatpush1.bf16.msra.mxu0 0
  %3066 = vmatprep.subr.bf16.mxu0 0
  %3067 = vmatpush1.bf16.msra.mxu0 0
  %3068 = vmatprep.subr.bf16.mxu0 0
  %3069 = vmatpush1.bf16.msra.mxu0 0
  %3070 = vmatprep.subr.bf16.mxu0 0
  %3071 = vmatpush1.bf16.msra.mxu0 0
  %3072 = vmatprep.subr.bf16.mxu0 0
  %3073 = vmatpush1.bf16.msra.mxu0 0
  %3074 = vmatprep.subr.bf16.mxu0 0
  %3075 = vmatpush1.bf16.msra.mxu0 0
  %3076 = vmatprep.subr.bf16.mxu0 0
  %3077 = vmatpush1.bf16.msra.mxu0 0
  %3078 = vmatprep.mubr.bf16.mxu0 0
  %3079 = vmatmul.mubr.bf16.gmra.mrb[0].mxu0 %v3044
  %v3080 = vpop.f32.mrb[0].mxu0
  %v3081 = vadd.f32 0.0, %v3080
  %v3082 = vpop.f32.mrb[0].mxu0
  %v3083 = vpop.f32.mrb[0].mxu0
  %v3084 = vadd.f32 0.0, %v3083
  %v3085 = vpop.f32.mrb[0].mxu0
  %3086 = vdwg.mxu0
  %v3087 = vadd.f32 %v3037, %v3081
  %v3088 = vadd.f32 %v3038, %v3084
  %v3089 = vxor.u32 %v3087, 2147483648
  %v3090 = vxor.u32 %v3088, 2147483648
  %v3091 = vmul.f32 %v3089, 1.442695
  %v3092 = vpow.pop %v3091
  %v3093 = vmul.f32 %v3090, 1.442695
  %v3094 = vpow.pop %v3093
  %v3095 = vadd.f32 %v3092, 1.0
  %v3096 = vadd.f32 %v3094, 1.0
  %v3097 = vrcp.pop %v3095
  %v3098 = vmul.f32 1.0, %v3097
  %v3099 = vrcp.pop %v3096
  %v3100 = vmul.f32 1.0, %v3099
  %v3101 = vtanh.pop %v3087
  %v3102 = vtanh.pop %v3088
  %v3103 = vmul.f32 %v3098, %v3021
  %v3104 = vmul.f32 %v3100, %v3022
  %3107 = vrot.lane.b32.xlu0 %v3101, 64
  %v3108 = vpop.permute.xlu0 %3107
  %3109 = vrot.lane.b32.xlu0 %v3102, 64
  %v3110 = vpop.permute.xlu0 %3109
  %v3113 = vmul.f32 %v3098, %v3108
  %v3114 = vmul.f32 %v3100, %v3110
  %3117 = vrot.lane.b32.xlu0 %v3113, 32
  %v3118 = vpop.permute.xlu0 %3117
  %3119 = vrot.lane.b32.xlu0 %v3114, 32
  %v3120 = vpop.permute.xlu0 %3119
  %v3123 = vadd.f32 %v3103, %v3118
  %v3124 = vadd.f32 %v3104, %v3120
  %v3125 = vtanh.pop %v3123
  %v3126 = vtanh.pop %v3124
  %3129 = vrot.lane.b32.xlu0 %v3125, 64
  %v3130 = vpop.permute.xlu0 %3129
  %3131 = vrot.lane.b32.xlu0 %v3126, 64
  %v3132 = vpop.permute.xlu0 %3131
  %v3135 = vmul.f32 %v3098, %v3130
  %v3136 = vmul.f32 %v3100, %v3132
  %s3137 = scalar_lea.vmem [#allocation3], 160
  %v3138 = vld [vmem:[%s3137] sm:$0xff]
  %v3139 = vunpack.c.l.bf16 %v3138
  %v3140 = vunpack.c.h.bf16 %v3138
  %v3141 = vpack.c.bf16 %v3136, %v3135
  %3143 = vrot.lane.b32.xlu0 %v3141, 32
  %v3144 = vpop.permute.xlu0 %3143
  %v3146 = vsel %vm125, %v3144, 0
  %3148 = vmatprep.subr.bf16.mxu0 0
  %3149 = vmatpush1.bf16.msra.mxu0 %v1093
  %3150 = vmatprep.subr.bf16.mxu0 0
  %3151 = vmatpush1.bf16.msra.mxu0 %v1094
  %3152 = vmatprep.subr.bf16.mxu0 0
  %3153 = vmatpush1.bf16.msra.mxu0 0
  %3154 = vmatprep.subr.bf16.mxu0 0
  %3155 = vmatpush1.bf16.msra.mxu0 0
  %3156 = vmatprep.subr.bf16.mxu0 0
  %3157 = vmatpush1.bf16.msra.mxu0 0
  %3158 = vmatprep.subr.bf16.mxu0 0
  %3159 = vmatpush1.bf16.msra.mxu0 0
  %3160 = vmatprep.subr.bf16.mxu0 0
  %3161 = vmatpush1.bf16.msra.mxu0 0
  %3162 = vmatprep.subr.bf16.mxu0 0
  %3163 = vmatpush1.bf16.msra.mxu0 0
  %3164 = vmatprep.subr.bf16.mxu0 0
  %3165 = vmatpush1.bf16.msra.mxu0 0
  %3166 = vmatprep.subr.bf16.mxu0 0
  %3167 = vmatpush1.bf16.msra.mxu0 0
  %3168 = vmatprep.subr.bf16.mxu0 0
  %3169 = vmatpush1.bf16.msra.mxu0 0
  %3170 = vmatprep.subr.bf16.mxu0 0
  %3171 = vmatpush1.bf16.msra.mxu0 0
  %3172 = vmatprep.subr.bf16.mxu0 0
  %3173 = vmatpush1.bf16.msra.mxu0 0
  %3174 = vmatprep.subr.bf16.mxu0 0
  %3175 = vmatpush1.bf16.msra.mxu0 0
  %3176 = vmatprep.subr.bf16.mxu0 0
  %3177 = vmatpush1.bf16.msra.mxu0 0
  %3178 = vmatprep.subr.bf16.mxu0 0
  %3179 = vmatpush1.bf16.msra.mxu0 0
  %3180 = vmatprep.mubr.bf16.mxu0 0
  %3181 = vmatmul.mubr.bf16.gmra.mrb[0].mxu0 %v3146
  %v3182 = vpop.f32.mrb[0].mxu0
  %v3183 = vadd.f32 0.0, %v3182
  %v3184 = vpop.f32.mrb[0].mxu0
  %v3185 = vpop.f32.mrb[0].mxu0
  %v3186 = vadd.f32 0.0, %v3185
  %v3187 = vpop.f32.mrb[0].mxu0
  %3188 = vdwg.mxu0
  %v3189 = vadd.f32 %v3139, %v3183
  %v3190 = vadd.f32 %v3140, %v3186
  %v3191 = vxor.u32 %v3189, 2147483648
  %v3192 = vxor.u32 %v3190, 2147483648
  %v3193 = vmul.f32 %v3191, 1.442695
  %v3194 = vpow.pop %v3193
  %v3195 = vmul.f32 %v3192, 1.442695
  %v3196 = vpow.pop %v3195
  %v3197 = vadd.f32 %v3194, 1.0
  %v3198 = vadd.f32 %v3196, 1.0
  %v3199 = vrcp.pop %v3197
  %v3200 = vmul.f32 1.0, %v3199
  %v3201 = vrcp.pop %v3198
  %v3202 = vmul.f32 1.0, %v3201
  %v3203 = vtanh.pop %v3189
  %v3204 = vtanh.pop %v3190
  %v3205 = vmul.f32 %v3200, %v3123
  %v3206 = vmul.f32 %v3202, %v3124
  %3209 = vrot.lane.b32.xlu0 %v3203, 64
  %v3210 = vpop.permute.xlu0 %3209
  %3211 = vrot.lane.b32.xlu0 %v3204, 64
  %v3212 = vpop.permute.xlu0 %3211
  %v3215 = vmul.f32 %v3200, %v3210
  %v3216 = vmul.f32 %v3202, %v3212
  %3219 = vrot.lane.b32.xlu0 %v3215, 32
  %v3220 = vpop.permute.xlu0 %3219
  %3221 = vrot.lane.b32.xlu0 %v3216, 32
  %v3222 = vpop.permute.xlu0 %3221
  %v3225 = vadd.f32 %v3205, %v3220
  %v3226 = vadd.f32 %v3206, %v3222
  %v3227 = vtanh.pop %v3225
  %v3228 = vtanh.pop %v3226
  %3231 = vrot.lane.b32.xlu0 %v3227, 64
  %v3232 = vpop.permute.xlu0 %3231
  %3233 = vrot.lane.b32.xlu0 %v3228, 64
  %v3234 = vpop.permute.xlu0 %3233
  %v3237 = vmul.f32 %v3200, %v3232
  %v3238 = vmul.f32 %v3202, %v3234
  %v3239 = vld [vmem:[%s12] sm:$0xff]
  %v3240 = vld [vmem:[%s12 + $0x8] sm:$0xff]
  %v3241 = vld [vmem:[%s12 + $0x10] sm:$0xff]
  %v3242 = vld [vmem:[%s12 + $0x18] sm:$0xff]
  %v3243 = vld [vmem:[%s13] sm:$0x1]
  %v3245 = vlaneseq
  %v3246 = vshrl.u32 %v3245, 7
  %v3247 = vsub.s32 0, %v3246
  %v3248 = vrot.slane %v3243, %v3247
  %3252 = vrot.lane.b32.xlu0 %v3237, 32
  %v3253 = vpop.permute.xlu0 %3252
  %3254 = vrot.lane.b32.xlu0 %v3238, 32
  %v3255 = vpop.permute.xlu0 %3254
  %v3256 = vsel %vm125, %v3253, 0
  %v3258 = vsel %vm125, %v3255, 0
  %3260 = vmatprep.subr.mxu0 0.0
  %3261 = vmatpush1.msra.mxu0 %v3239
  %3262 = vmatprep.subr.mxu0 0.0
  %3263 = vmatpush1.msra.mxu0 %v3240
  %3264 = vmatprep.subr.mxu0 0.0
  %3265 = vmatpush1.msra.mxu0 %v3241
  %3266 = vmatprep.subr.mxu0 0.0
  %3267 = vmatpush1.msra.mxu0 %v3242
  %3268 = vmatprep.subr.mxu0 0.0
  %3269 = vmatpush1.msra.mxu0 0.0
  %3270 = vmatprep.subr.mxu0 0.0
  %3271 = vmatpush1.msra.mxu0 0.0
  %3272 = vmatprep.subr.mxu0 0.0
  %3273 = vmatpush1.msra.mxu0 0.0
  %3274 = vmatprep.subr.mxu0 0.0
  %3275 = vmatpush1.msra.mxu0 0.0
  %3276 = vmatprep.subr.mxu0 0.0
  %3277 = vmatpush1.msra.mxu0 0.0
  %3278 = vmatprep.subr.mxu0 0.0
  %3279 = vmatpush1.msra.mxu0 0.0
  %3280 = vmatprep.subr.mxu0 0.0
  %3281 = vmatpush1.msra.mxu0 0.0
  %3282 = vmatprep.subr.mxu0 0.0
  %3283 = vmatpush1.msra.mxu0 0.0
  %3284 = vmatprep.subr.mxu0 0.0
  %3285 = vmatpush1.msra.mxu0 0.0
  %3286 = vmatprep.subr.mxu0 0.0
  %3287 = vmatpush1.msra.mxu0 0.0
  %3288 = vmatprep.subr.mxu0 0.0
  %3289 = vmatpush1.msra.mxu0 0.0
  %3290 = vmatprep.subr.mxu0 0.0
  %3291 = vmatpush1.msra.mxu0 0.0
  %3292 = vmatprep.subr.mxu0 0.0
  %3293 = vmatpush1.msra.mxu0 0.0
  %3294 = vmatprep.subr.mxu0 0.0
  %3295 = vmatpush1.msra.mxu0 0.0
  %3296 = vmatprep.subr.mxu0 0.0
  %3297 = vmatpush1.msra.mxu0 0.0
  %3298 = vmatprep.subr.mxu0 0.0
  %3299 = vmatpush1.msra.mxu0 0.0
  %3300 = vmatprep.subr.mxu0 0.0
  %3301 = vmatpush1.msra.mxu0 0.0
  %3302 = vmatprep.subr.mxu0 0.0
  %3303 = vmatpush1.msra.mxu0 0.0
  %3304 = vmatprep.subr.mxu0 0.0
  %3305 = vmatpush1.msra.mxu0 0.0
  %3306 = vmatprep.subr.mxu0 0.0
  %3307 = vmatpush1.msra.mxu0 0.0
  %3308 = vmatprep.subr.mxu0 0.0
  %3309 = vmatpush1.msra.mxu0 0.0
  %3310 = vmatprep.subr.mxu0 0.0
  %3311 = vmatpush1.msra.mxu0 0.0
  %3312 = vmatprep.subr.mxu0 0.0
  %3313 = vmatpush1.msra.mxu0 0.0
  %3314 = vmatprep.subr.mxu0 0.0
  %3315 = vmatpush1.msra.mxu0 0.0
  %3316 = vmatprep.subr.mxu0 0.0
  %3317 = vmatpush1.msra.mxu0 0.0
  %3318 = vmatprep.subr.mxu0 0.0
  %3319 = vmatpush1.msra.mxu0 0.0
  %3320 = vmatprep.subr.mxu0 0.0
  %3321 = vmatpush1.msra.mxu0 0.0
  %3322 = vmatprep.subr.mxu0 0.0
  %3323 = vmatpush1.msra.mxu0 0.0
  %3324 = vmatprep.mubr.f32.mxu0 0.0
  %3325 = vmatmul.mubr.f32.gmra.mrb[0].mxu0 %v3256
  %v3326 = vpop.f32.mrb[0].mxu0
  %v3327 = vadd.f32 %v3248, %v3326
  %v3328 = vpop.f32.mrb[0].mxu0
  %3329 = vmatprep.mubr.f32.mxu0 0.0
  %3330 = vmatmul.mubr.f32.gmra.mrb[0].mxu0 %v3258
  %v3331 = vpop.f32.mrb[0].mxu0
  %v3332 = vadd.f32 %v3248, %v3331
  %v3333 = vpop.f32.mrb[0].mxu0
  %3334 = vdwg.mxu0
  %vm3335 = vcmask 15360
  %3336 = vst.msk [vmem:[%s14] sm:$0xff] %vm3335, %v3327
  %3337 = vst.msk [vmem:[%s14 + $0x8] sm:$0xff] %vm3335, %v3332
  // Predicated region
  $region58: #{tpu_custom_call.1} parent=0 // pred_check
    _
  $region59: #{tpu_custom_call.1} parent=0 // pred_check_branch
    %3339 = sbr.rel (0) target = $region61
  $region60: #{tpu_custom_call.1} parent=0 // pred_region
    _
  $region61: #{tpu_custom_call.1} parent=0 // pred_fallthru
    _
  // Predicated region
  $region62: #{tpu_custom_call.1} parent=0 // pred_check
    _
  $region63: #{tpu_custom_call.1} parent=0 // pred_check_branch
    %3341 = sbr.rel (0) target = $region65
  $region64: #{tpu_custom_call.1} parent=0 // pred_region
    _
  $region65: #{tpu_custom_call.1} parent=0 // pred_fallthru
    _

</llo_original>
